<compile_context>
chip_gen: v7x
topology: tpu7x:2x2x1
jax: 0.10.0
libtpu: 0.0.40
codegen_flags: <defaults>
</compile_context>

<pallas_src>
import math

import jax
import jax.numpy as jnp
from jax import lax
from jax.experimental import pallas as pl
from jax.experimental.pallas import tpu as pltpu

BN_EPS = 1e-5


def _make_basic_block_kernel(H, W, Cin, Cout, stride, has_proj):
    """Returns the fused BasicBlock kernel for one batch element."""
    s = stride
    Ho = (H - 1) // s + 1          # PyTorch conv3x3, padding=1
    Wo = (W - 1) // s + 1

    def kernel(x_pad_ref, w1_ref, b1_ref, w2_ref, b2_ref, *rest):
        if has_proj:
            ws_ref, bs_ref, out_ref, pad_ref = rest
        else:
            out_ref, pad_ref = rest

        # ---- gather the nine shifted patches of the zero-padded input ------
        if s == 1:
            xp = x_pad_ref[0]                                   # (H+2, W+2, Cin)
            patches = [xp[ky:ky + Ho, kx:kx + Wo, :]
                       for ky in range(3) for kx in range(3)]
        else:
            # stride > 1: strided loads straight from the ref.
            patches = [x_pad_ref[0, pl.ds(ky, Ho, stride=s),
                                 pl.ds(kx, Wo, stride=s), :]
                       for ky in range(3) for kx in range(3)]

        # ---- convBN1: im2col + single bf16 MXU matmul, f32 accumulation ----
        col1 = jnp.concatenate(
            [p.reshape(Ho * Wo, Cin) for p in patches], axis=-1)  # (Ho*Wo, 9*Cin)
        acc1 = jnp.dot(col1.astype(jnp.bfloat16), w1_ref[...],
                       preferred_element_type=jnp.float32)
        h1 = jnp.maximum(acc1 + b1_ref[...], 0.0).reshape(Ho, Wo, Cout)

        # ---- stage conv1 output in a padded VMEM scratch --------------------
        # Only the halo ring + interior are written (no full-buffer zero pass).
        zr = jnp.zeros((Wo + 2, Cout), jnp.float32)
        zc = jnp.zeros((Ho, 1, Cout), jnp.float32)
        pad_ref[0] = zr                              # top halo row
        pad_ref[Ho + 1] = zr                         # bottom halo row
        pad_ref[1:Ho + 1, 0:1, :] = zc               # left halo column
        pad_ref[1:Ho + 1, Wo + 1:Wo + 2, :] = zc     # right halo column
        pad_ref[1:Ho + 1, 1:Wo + 1, :] = h1          # interior

        # ---- convBN2: im2col + single bf16 MXU matmul ------------------------
        col2 = jnp.concatenate(
            [pad_ref[ky:ky + Ho, kx:kx + Wo, :].reshape(Ho * Wo, Cout)
             for ky in range(3) for kx in range(3)], axis=-1)     # (Ho*Wo, 9*Cout)
        h2 = jnp.dot(col2.astype(jnp.bfloat16), w2_ref[...],
                     preferred_element_type=jnp.float32) + b2_ref[...]

        # ---- shortcut --------------------------------------------------------
        if has_proj:
            if s == 1:
                x0 = xp[1:1 + Ho, 1:1 + Wo, :]
            else:
                x0 = x_pad_ref[0, pl.ds(1, Ho, stride=s),
                               pl.ds(1, Wo, stride=s), :]
            sc = jnp.dot(x0.reshape(Ho * Wo, Cin).astype(jnp.bfloat16),
                         ws_ref[...],
                         preferred_element_type=jnp.float32) + bs_ref[...]
        else:
            sc = xp[1:1 + H, 1:1 + W, :].reshape(Ho * Wo, Cout)  # identity (f32, exact)

        # ---- eltwise add + ReLU ----------------------------------------------
        out = jnp.maximum(h2 + sc, 0.0)
        out_ref[0] = out.reshape(Ho, Wo, Cout).astype(out_ref.dtype)

    return kernel, Ho, Wo


def basic_block_pallas(x_nhwc, params, stride):
    """x_nhwc: (N, H, W, Cin) float32.  params: BN-folded conv weights (HWIO)."""
    N, H, W, Cin = x_nhwc.shape
    Cout = params["w1"].shape[-1]
    has_proj = (stride != 1) or (Cin != Cout)

    kernel, Ho, Wo = _make_basic_block_kernel(H, W, Cin, Cout, stride, has_proj)

    # Spatial zero-padding for the first 3x3 conv (done once in the glue).
    x_pad = jnp.pad(x_nhwc, ((0, 0), (1, 1), (1, 1), (0, 0))).astype(jnp.float32)

    # Weights reshaped to im2col form and pre-cast to bf16 (MXU operand dtype);
    # biases stay f32 (added to the f32 accumulator).
    w1 = params["w1"].reshape(9 * Cin, Cout).astype(jnp.bfloat16)
    w2 = params["w2"].reshape(9 * Cout, Cout).astype(jnp.bfloat16)
    b1 = params["b1"].reshape(1, Cout).astype(jnp.float32)
    b2 = params["b2"].reshape(1, Cout).astype(jnp.float32)

    inputs = [x_pad, w1, b1, w2, b2]
    in_specs = [
        pl.BlockSpec((1, H + 2, W + 2, Cin), lambda n: (n, 0, 0, 0)),
        pl.BlockSpec((9 * Cin, Cout), lambda n: (0, 0)),
        pl.BlockSpec((1, Cout), lambda n: (0, 0)),
        pl.BlockSpec((9 * Cout, Cout), lambda n: (0, 0)),
        pl.BlockSpec((1, Cout), lambda n: (0, 0)),
    ]
    if has_proj:
        inputs += [params["ws"].reshape(Cin, Cout).astype(jnp.bfloat16),
                   params["bs"].reshape(1, Cout).astype(jnp.float32)]
        in_specs += [pl.BlockSpec((Cin, Cout), lambda n: (0, 0)),
                     pl.BlockSpec((1, Cout), lambda n: (0, 0))]

    # NOTE: for real ResNet shapes (e.g. 56x56x64+) add a spatial row-tile grid
    # axis (with a 1-row conv halo) so per-step VMEM stays under v7x's 64 MiB
    # and both of its TensorCores stay busy even when N is small/odd.
    return pl.pallas_call(
        kernel,
        out_shape=jax.ShapeDtypeStruct((N, Ho, Wo, Cout), jnp.float32),
        grid=(N,),
        in_specs=in_specs,
        out_specs=pl.BlockSpec((1, Ho, Wo, Cout), lambda n: (n, 0, 0, 0)),
        scratch_shapes=[pltpu.VMEM((Ho + 2, Wo + 2, Cout), jnp.float32)],
        compiler_params=pltpu.CompilerParams(
            dimension_semantics=("parallel",),
            vmem_limit_bytes=32 * 1024 * 1024),
    )(*inputs)


# ---------------------------------------------------------------------------
# Deterministic parameter init (shapes follow BasicBlock.__init__) + BN folding
# ---------------------------------------------------------------------------
def init_basic_block_params(key, in_planes, planes, stride):
    expansion = 1
    out_planes = planes * expansion
    ks = jax.random.split(key, 6)

    def bn_params(k, c):
        k1, k2, k3, k4 = jax.random.split(k, 4)
        gamma = jax.random.uniform(k1, (c,), minval=0.5, maxval=1.5)
        beta = jax.random.normal(k2, (c,)) * 0.1
        mean = jax.random.normal(k3, (c,)) * 0.1
        var = jax.random.uniform(k4, (c,), minval=0.5, maxval=1.5)
        return gamma, beta, mean, var

    def fold(w_oihw, gamma, beta, mean, var):
        scale = gamma / jnp.sqrt(var + BN_EPS)
        w = w_oihw * scale[:, None, None, None]
        b = beta - mean * scale
        w_hwio = jnp.transpose(w, (2, 3, 1, 0)).astype(jnp.float32)  # OIHW -> HWIO
        return w_hwio, b.astype(jnp.float32)

    w1_raw = jax.random.normal(ks[0], (out_planes, in_planes, 3, 3)) \
        * (1.0 / math.sqrt(in_planes * 9))
    w1, b1 = fold(w1_raw, *bn_params(ks[1], out_planes))

    w2_raw = jax.random.normal(ks[2], (out_planes, out_planes, 3, 3)) \
        * (1.0 / math.sqrt(out_planes * 9))
    w2, b2 = fold(w2_raw, *bn_params(ks[3], out_planes))

    params = dict(w1=w1, b1=b1, w2=w2, b2=b2)

    if stride != 1 or in_planes != out_planes:
        ws_raw = jax.random.normal(ks[4], (out_planes, in_planes, 1, 1)) \
            * (1.0 / math.sqrt(in_planes))
        ws, bs = fold(ws_raw, *bn_params(ks[5], out_planes))
        params["ws"], params["bs"] = ws, bs
    return params


# ---------------------------------------------------------------------------
# Pure-JAX reference (for correctness check)
# ---------------------------------------------------------------------------
def ref_basic_block(x_nhwc, params, stride):
    Cin = x_nhwc.shape[-1]
    Cout = params["w1"].shape[-1]
    has_proj = (stride != 1) or (Cin != Cout)
    dn = ("NHWC", "HWIO", "NHWC")

    def conv(x, w, b, s, pad):
        y = lax.conv_general_dilated(x, w, (s, s), pad, dimension_numbers=dn)
        return y + b

    h = jax.nn.relu(conv(x_nhwc, params["w1"], params["b1"], stride,
                         ((1, 1), (1, 1))))
    h = conv(h, params["w2"], params["b2"], 1, ((1, 1), (1, 1)))
    if has_proj:
        sc = conv(x_nhwc, params["ws"], params["bs"], stride, ((0, 0), (0, 0)))
    else:
        sc = x_nhwc
    return jax.nn.relu(h + sc)


def _round_bf16(a):
    return a.astype(jnp.bfloat16).astype(jnp.float32)


if __name__ == "__main__":
    def run_case(key, N, Cin, H, W, planes, stride):
        k_x, k_p = jax.random.split(key)
        # PyTorch-style NCHW input -> NHWC for the kernel.
        x_nchw = _round_bf16(
            jax.random.normal(k_x, (N, Cin, H, W), dtype=jnp.float32))
        x_nhwc = jnp.transpose(x_nchw, (0, 2, 3, 1))
        params = init_basic_block_params(k_p, Cin, planes, stride)
        # Round conv weights to bf16-representable values so the bf16-operand
        # kernel and the f32 reference see identical operands.
        params = {k: (_round_bf16(v) if k in ("w1", "w2", "ws") else v)
                  for k, v in params.items()}

        out = basic_block_pallas(x_nhwc, params, stride)
        out = jax.block_until_ready(out)

        ref = ref_basic_block(x_nhwc, params, stride)
        assert out.shape == ref.shape, (out.shape, ref.shape)
        max_err = float(jnp.max(jnp.abs(out - ref)))
        assert jnp.allclose(out, ref, atol=5e-2, rtol=5e-2), f"max_err={max_err}"

    key = jax.random.PRNGKey(0)
    k1, k2 = jax.random.split(key)
    # projection (1x1 ConvBN) shortcut: in_planes != planes
    run_case(k1, N=2, Cin=4, H=16, W=16, planes=8, stride=1)
    # identity shortcut: in_planes == planes, stride == 1
    run_case(k2, N=2, Cin=8, H=16, W=16, planes=8, stride=1)

    print("KERNEL_OK")
</pallas_src>

<mosaic_0001>
module attributes {stable_mosaic.version = 11 : i64} {
  func.func @kernel(%arg0: i32, %arg1: memref<1x18x18x4xf32, #tpu.memory_space<vmem>>, %arg2: memref<36x8xbf16, #tpu.memory_space<vmem>>, %arg3: memref<1x8xf32, #tpu.memory_space<vmem>>, %arg4: memref<72x8xbf16, #tpu.memory_space<vmem>>, %arg5: memref<1x8xf32, #tpu.memory_space<vmem>>, %arg6: memref<4x8xbf16, #tpu.memory_space<vmem>>, %arg7: memref<1x8xf32, #tpu.memory_space<vmem>>, %arg8: memref<1x16x16x8xf32, #tpu.memory_space<vmem>>, %arg9: memref<18x18x8xf32, #tpu.memory_space<vmem>>) attributes {dimension_semantics = [#tpu.dimension_semantics<parallel>], iteration_bounds = array<i64: 2>, scalar_prefetch = 0 : i64, scratch_operands = 1 : i64, tpu.core_type = #tpu.core_type<tc>, window_params = [{transform_indices = @transform_0, window_bounds = array<i64: 1, 18, 18, 4>}, {pipeline_mode = #tpu.pipeline_mode<synchronous>, transform_indices = @transform_1, window_bounds = array<i64: 36, 8>}, {pipeline_mode = #tpu.pipeline_mode<synchronous>, transform_indices = @transform_2, window_bounds = array<i64: 1, 8>}, {pipeline_mode = #tpu.pipeline_mode<synchronous>, transform_indices = @transform_3, window_bounds = array<i64: 72, 8>}, {pipeline_mode = #tpu.pipeline_mode<synchronous>, transform_indices = @transform_4, window_bounds = array<i64: 1, 8>}, {pipeline_mode = #tpu.pipeline_mode<synchronous>, transform_indices = @transform_5, window_bounds = array<i64: 4, 8>}, {pipeline_mode = #tpu.pipeline_mode<synchronous>, transform_indices = @transform_6, window_bounds = array<i64: 1, 8>}, {transform_indices = @transform_7, window_bounds = array<i64: 1, 16, 16, 8>}]} {
    %c0 = arith.constant 0 : index
    %c0_0 = arith.constant 0 : index
    %c0_1 = arith.constant 0 : index
    %c0_2 = arith.constant 0 : index
    %0 = vector.load %arg1[%c0, %c0_0, %c0_1, %c0_2] : memref<1x18x18x4xf32, #tpu.memory_space<vmem>>, vector<1x18x18x4xf32>
    %1 = vector.shape_cast %0 : vector<1x18x18x4xf32> to vector<18x18x4xf32>
    %2 = vector.extract_strided_slice %1 {offsets = [0, 0, 0], sizes = [16, 16, 4], strides = [1, 1, 1]} : vector<18x18x4xf32> to vector<16x16x4xf32>
    %3 = vector.extract_strided_slice %1 {offsets = [0, 1, 0], sizes = [16, 16, 4], strides = [1, 1, 1]} : vector<18x18x4xf32> to vector<16x16x4xf32>
    %4 = vector.extract_strided_slice %1 {offsets = [0, 2, 0], sizes = [16, 16, 4], strides = [1, 1, 1]} : vector<18x18x4xf32> to vector<16x16x4xf32>
    %5 = vector.extract_strided_slice %1 {offsets = [1, 0, 0], sizes = [16, 16, 4], strides = [1, 1, 1]} : vector<18x18x4xf32> to vector<16x16x4xf32>
    %6 = vector.extract_strided_slice %1 {offsets = [1, 1, 0], sizes = [16, 16, 4], strides = [1, 1, 1]} : vector<18x18x4xf32> to vector<16x16x4xf32>
    %7 = vector.extract_strided_slice %1 {offsets = [1, 2, 0], sizes = [16, 16, 4], strides = [1, 1, 1]} : vector<18x18x4xf32> to vector<16x16x4xf32>
    %8 = vector.extract_strided_slice %1 {offsets = [2, 0, 0], sizes = [16, 16, 4], strides = [1, 1, 1]} : vector<18x18x4xf32> to vector<16x16x4xf32>
    %9 = vector.extract_strided_slice %1 {offsets = [2, 1, 0], sizes = [16, 16, 4], strides = [1, 1, 1]} : vector<18x18x4xf32> to vector<16x16x4xf32>
    %10 = vector.extract_strided_slice %1 {offsets = [2, 2, 0], sizes = [16, 16, 4], strides = [1, 1, 1]} : vector<18x18x4xf32> to vector<16x16x4xf32>
    %11 = vector.shape_cast %2 : vector<16x16x4xf32> to vector<256x4xf32>
    %12 = vector.shape_cast %3 : vector<16x16x4xf32> to vector<256x4xf32>
    %13 = vector.shape_cast %4 : vector<16x16x4xf32> to vector<256x4xf32>
    %14 = vector.shape_cast %5 : vector<16x16x4xf32> to vector<256x4xf32>
    %15 = vector.shape_cast %6 : vector<16x16x4xf32> to vector<256x4xf32>
    %16 = vector.shape_cast %7 : vector<16x16x4xf32> to vector<256x4xf32>
    %17 = vector.shape_cast %8 : vector<16x16x4xf32> to vector<256x4xf32>
    %18 = vector.shape_cast %9 : vector<16x16x4xf32> to vector<256x4xf32>
    %19 = vector.shape_cast %10 : vector<16x16x4xf32> to vector<256x4xf32>
    %20 = tpu.concatenate %11, %12, %13, %14, %15, %16, %17, %18, %19 in 1 : vector<256x4xf32>, vector<256x4xf32>, vector<256x4xf32>, vector<256x4xf32>, vector<256x4xf32>, vector<256x4xf32>, vector<256x4xf32>, vector<256x4xf32>, vector<256x4xf32> -> vector<256x36xf32>
    %21 = arith.truncf %20 : vector<256x36xf32> to vector<256x36xbf16>
    %c0_3 = arith.constant 0 : index
    %c0_4 = arith.constant 0 : index
    %22 = vector.load %arg2[%c0_3, %c0_4] : memref<36x8xbf16, #tpu.memory_space<vmem>>, vector<36x8xbf16>
    %cst = arith.constant dense<0.000000e+00> : vector<256x8xf32>
    %23 = tpu.matmul %21, %22, %cst {dimension_numbers = #tpu.dot_dimension_numbers<[1], [0], [0], [1], [0, 0, 1, 1], [], []>} : vector<256x36xbf16>, vector<36x8xbf16>, vector<256x8xf32> -> vector<256x8xf32>
    %c0_5 = arith.constant 0 : index
    %c0_6 = arith.constant 0 : index
    %24 = vector.load %arg3[%c0_5, %c0_6] : memref<1x8xf32, #tpu.memory_space<vmem>>, vector<1x8xf32>
    %25 = vector.broadcast %24 : vector<1x8xf32> to vector<256x8xf32>
    %26 = arith.addf %23, %25 : vector<256x8xf32>
    %cst_7 = arith.constant 0.000000e+00 : f32
    %27 = vector.broadcast %cst_7 : f32 to vector<256x8xf32>
    %28 = arith.maximumf %26, %27 : vector<256x8xf32>
    %29 = vector.shape_cast %28 : vector<256x8xf32> to vector<16x16x8xf32>
    %cst_8 = arith.constant 0.000000e+00 : f32
    %30 = vector.broadcast %cst_8 : f32 to vector<18x8xf32>
    %cst_9 = arith.constant 0.000000e+00 : f32
    %31 = vector.broadcast %cst_9 : f32 to vector<16x1x8xf32>
    %c0_10 = arith.constant 0 : index
    %c0_11 = arith.constant 0 : index
    %c0_12 = arith.constant 0 : index
    %32 = vector.load %arg9[%c0_10, %c0_11, %c0_12] : memref<18x18x8xf32, #tpu.memory_space<vmem>>, vector<1x18x8xf32>
    %33 = vector.shape_cast %32 : vector<1x18x8xf32> to vector<18x8xf32>
    %34 = vector.shape_cast %30 : vector<18x8xf32> to vector<1x18x8xf32>
    tpu.vector_store %arg9[%c0_10, %c0_11, %c0_12], %34 {strides = array<i32>} : memref<18x18x8xf32, #tpu.memory_space<vmem>>, vector<1x18x8xf32>,
    %c17 = arith.constant 17 : index
    %c0_13 = arith.constant 0 : index
    %c0_14 = arith.constant 0 : index
    %35 = vector.load %arg9[%c17, %c0_13, %c0_14] : memref<18x18x8xf32, #tpu.memory_space<vmem>>, vector<1x18x8xf32>
    %36 = vector.shape_cast %35 : vector<1x18x8xf32> to vector<18x8xf32>
    %37 = vector.shape_cast %30 : vector<18x8xf32> to vector<1x18x8xf32>
    tpu.vector_store %arg9[%c17, %c0_13, %c0_14], %37 {strides = array<i32>} : memref<18x18x8xf32, #tpu.memory_space<vmem>>, vector<1x18x8xf32>,
    %c1 = arith.constant 1 : index
    %c0_15 = arith.constant 0 : index
    %c0_16 = arith.constant 0 : index
    %38 = vector.load %arg9[%c1, %c0_15, %c0_16] : memref<18x18x8xf32, #tpu.memory_space<vmem>>, vector<16x1x8xf32>
    tpu.vector_store %arg9[%c1, %c0_15, %c0_16], %31 {strides = array<i32>} : memref<18x18x8xf32, #tpu.memory_space<vmem>>, vector<16x1x8xf32>,
    %c1_17 = arith.constant 1 : index
    %c17_18 = arith.constant 17 : index
    %c0_19 = arith.constant 0 : index
    %39 = vector.load %arg9[%c1_17, %c17_18, %c0_19] : memref<18x18x8xf32, #tpu.memory_space<vmem>>, vector<16x1x8xf32>
    tpu.vector_store %arg9[%c1_17, %c17_18, %c0_19], %31 {strides = array<i32>} : memref<18x18x8xf32, #tpu.memory_space<vmem>>, vector<16x1x8xf32>,
    %c1_20 = arith.constant 1 : index
    %c1_21 = arith.constant 1 : index
    %c0_22 = arith.constant 0 : index
    %40 = vector.load %arg9[%c1_20, %c1_21, %c0_22] : memref<18x18x8xf32, #tpu.memory_space<vmem>>, vector<16x16x8xf32>
    tpu.vector_store %arg9[%c1_20, %c1_21, %c0_22], %29 {strides = array<i32>} : memref<18x18x8xf32, #tpu.memory_space<vmem>>, vector<16x16x8xf32>,
    %c0_23 = arith.constant 0 : index
    %c0_24 = arith.constant 0 : index
    %c0_25 = arith.constant 0 : index
    %41 = vector.load %arg9[%c0_23, %c0_24, %c0_25] : memref<18x18x8xf32, #tpu.memory_space<vmem>>, vector<16x16x8xf32>
    %42 = vector.shape_cast %41 : vector<16x16x8xf32> to vector<256x8xf32>
    %c0_26 = arith.constant 0 : index
    %c1_27 = arith.constant 1 : index
    %c0_28 = arith.constant 0 : index
    %43 = vector.load %arg9[%c0_26, %c1_27, %c0_28] : memref<18x18x8xf32, #tpu.memory_space<vmem>>, vector<16x16x8xf32>
    %44 = vector.shape_cast %43 : vector<16x16x8xf32> to vector<256x8xf32>
    %c0_29 = arith.constant 0 : index
    %c2 = arith.constant 2 : index
    %c0_30 = arith.constant 0 : index
    %45 = vector.load %arg9[%c0_29, %c2, %c0_30] : memref<18x18x8xf32, #tpu.memory_space<vmem>>, vector<16x16x8xf32>
    %46 = vector.shape_cast %45 : vector<16x16x8xf32> to vector<256x8xf32>
    %c1_31 = arith.constant 1 : index
    %c0_32 = arith.constant 0 : index
    %c0_33 = arith.constant 0 : index
    %47 = vector.load %arg9[%c1_31, %c0_32, %c0_33] : memref<18x18x8xf32, #tpu.memory_space<vmem>>, vector<16x16x8xf32>
    %48 = vector.shape_cast %47 : vector<16x16x8xf32> to vector<256x8xf32>
    %c1_34 = arith.constant 1 : index
    %c1_35 = arith.constant 1 : index
    %c0_36 = arith.constant 0 : index
    %49 = vector.load %arg9[%c1_34, %c1_35, %c0_36] : memref<18x18x8xf32, #tpu.memory_space<vmem>>, vector<16x16x8xf32>
    %50 = vector.shape_cast %49 : vector<16x16x8xf32> to vector<256x8xf32>
    %c1_37 = arith.constant 1 : index
    %c2_38 = arith.constant 2 : index
    %c0_39 = arith.constant 0 : index
    %51 = vector.load %arg9[%c1_37, %c2_38, %c0_39] : memref<18x18x8xf32, #tpu.memory_space<vmem>>, vector<16x16x8xf32>
    %52 = vector.shape_cast %51 : vector<16x16x8xf32> to vector<256x8xf32>
    %c2_40 = arith.constant 2 : index
    %c0_41 = arith.constant 0 : index
    %c0_42 = arith.constant 0 : index
    %53 = vector.load %arg9[%c2_40, %c0_41, %c0_42] : memref<18x18x8xf32, #tpu.memory_space<vmem>>, vector<16x16x8xf32>
    %54 = vector.shape_cast %53 : vector<16x16x8xf32> to vector<256x8xf32>
    %c2_43 = arith.constant 2 : index
    %c1_44 = arith.constant 1 : index
    %c0_45 = arith.constant 0 : index
    %55 = vector.load %arg9[%c2_43, %c1_44, %c0_45] : memref<18x18x8xf32, #tpu.memory_space<vmem>>, vector<16x16x8xf32>
    %56 = vector.shape_cast %55 : vector<16x16x8xf32> to vector<256x8xf32>
    %c2_46 = arith.constant 2 : index
    %c2_47 = arith.constant 2 : index
    %c0_48 = arith.constant 0 : index
    %57 = vector.load %arg9[%c2_46, %c2_47, %c0_48] : memref<18x18x8xf32, #tpu.memory_space<vmem>>, vector<16x16x8xf32>
    %58 = vector.shape_cast %57 : vector<16x16x8xf32> to vector<256x8xf32>
    %59 = tpu.concatenate %42, %44, %46, %48, %50, %52, %54, %56, %58 in 1 : vector<256x8xf32>, vector<256x8xf32>, vector<256x8xf32>, vector<256x8xf32>, vector<256x8xf32>, vector<256x8xf32>, vector<256x8xf32>, vector<256x8xf32>, vector<256x8xf32> -> vector<256x72xf32>
    %60 = arith.truncf %59 : vector<256x72xf32> to vector<256x72xbf16>
    %c0_49 = arith.constant 0 : index
    %c0_50 = arith.constant 0 : index
    %61 = vector.load %arg4[%c0_49, %c0_50] : memref<72x8xbf16, #tpu.memory_space<vmem>>, vector<72x8xbf16>
    %cst_51 = arith.constant dense<0.000000e+00> : vector<256x8xf32>
    %62 = tpu.matmul %60, %61, %cst_51 {dimension_numbers = #tpu.dot_dimension_numbers<[1], [0], [0], [1], [0, 0, 1, 1], [], []>} : vector<256x72xbf16>, vector<72x8xbf16>, vector<256x8xf32> -> vector<256x8xf32>
    %c0_52 = arith.constant 0 : index
    %c0_53 = arith.constant 0 : index
    %63 = vector.load %arg5[%c0_52, %c0_53] : memref<1x8xf32, #tpu.memory_space<vmem>>, vector<1x8xf32>
    %64 = vector.broadcast %63 : vector<1x8xf32> to vector<256x8xf32>
    %65 = arith.addf %62, %64 : vector<256x8xf32>
    %66 = vector.extract_strided_slice %1 {offsets = [1, 1, 0], sizes = [16, 16, 4], strides = [1, 1, 1]} : vector<18x18x4xf32> to vector<16x16x4xf32>
    %67 = vector.shape_cast %66 : vector<16x16x4xf32> to vector<256x4xf32>
    %68 = arith.truncf %67 : vector<256x4xf32> to vector<256x4xbf16>
    %c0_54 = arith.constant 0 : index
    %c0_55 = arith.constant 0 : index
    %69 = vector.load %arg6[%c0_54, %c0_55] : memref<4x8xbf16, #tpu.memory_space<vmem>>, vector<4x8xbf16>
    %cst_56 = arith.constant dense<0.000000e+00> : vector<256x8xf32>
    %70 = tpu.matmul %68, %69, %cst_56 {dimension_numbers = #tpu.dot_dimension_numbers<[1], [0], [0], [1], [0, 0, 1, 1], [], []>} : vector<256x4xbf16>, vector<4x8xbf16>, vector<256x8xf32> -> vector<256x8xf32>
    %c0_57 = arith.constant 0 : index
    %c0_58 = arith.constant 0 : index
    %71 = vector.load %arg7[%c0_57, %c0_58] : memref<1x8xf32, #tpu.memory_space<vmem>>, vector<1x8xf32>
    %72 = vector.broadcast %71 : vector<1x8xf32> to vector<256x8xf32>
    %73 = arith.addf %70, %72 : vector<256x8xf32>
    %74 = arith.addf %65, %73 : vector<256x8xf32>
    %cst_59 = arith.constant 0.000000e+00 : f32
    %75 = vector.broadcast %cst_59 : f32 to vector<256x8xf32>
    %76 = arith.maximumf %74, %75 : vector<256x8xf32>
    %77 = vector.shape_cast %76 : vector<256x8xf32> to vector<16x16x8xf32>
    %c0_60 = arith.constant 0 : index
    %c0_61 = arith.constant 0 : index
    %c0_62 = arith.constant 0 : index
    %c0_63 = arith.constant 0 : index
    %78 = vector.load %arg8[%c0_60, %c0_61, %c0_62, %c0_63] : memref<1x16x16x8xf32, #tpu.memory_space<vmem>>, vector<1x16x16x8xf32>
    %79 = vector.shape_cast %78 : vector<1x16x16x8xf32> to vector<16x16x8xf32>
    %80 = vector.shape_cast %77 : vector<16x16x8xf32> to vector<1x16x16x8xf32>
    tpu.vector_store %arg8[%c0_60, %c0_61, %c0_62, %c0_63], %80 {strides = array<i32>} : memref<1x16x16x8xf32, #tpu.memory_space<vmem>>, vector<1x16x16x8xf32>,
    return
  }
  func.func @transform_0(%arg0: i32) -> (i32, i32, i32, i32) {
    %c0_i32 = arith.constant 0 : i32
    %c0_i32_0 = arith.constant 0 : i32
    %c0_i32_1 = arith.constant 0 : i32
    %c0_i32_2 = arith.constant 0 : i32
    return %arg0, %c0_i32, %c0_i32_0, %c0_i32_1 : i32, i32, i32, i32
  }
  func.func @transform_1(%arg0: i32) -> (i32, i32) {
    %c0_i32 = arith.constant 0 : i32
    %c0_i32_0 = arith.constant 0 : i32
    %c0_i32_1 = arith.constant 0 : i32
    return %c0_i32, %c0_i32_0 : i32, i32
  }
  func.func @transform_2(%arg0: i32) -> (i32, i32) {
    %c0_i32 = arith.constant 0 : i32
    %c0_i32_0 = arith.constant 0 : i32
    %c0_i32_1 = arith.constant 0 : i32
    return %c0_i32, %c0_i32_0 : i32, i32
  }
  func.func @transform_3(%arg0: i32) -> (i32, i32) {
    %c0_i32 = arith.constant 0 : i32
    %c0_i32_0 = arith.constant 0 : i32
    %c0_i32_1 = arith.constant 0 : i32
    return %c0_i32, %c0_i32_0 : i32, i32
  }
  func.func @transform_4(%arg0: i32) -> (i32, i32) {
    %c0_i32 = arith.constant 0 : i32
    %c0_i32_0 = arith.constant 0 : i32
    %c0_i32_1 = arith.constant 0 : i32
    return %c0_i32, %c0_i32_0 : i32, i32
  }
  func.func @transform_5(%arg0: i32) -> (i32, i32) {
    %c0_i32 = arith.constant 0 : i32
    %c0_i32_0 = arith.constant 0 : i32
    %c0_i32_1 = arith.constant 0 : i32
    return %c0_i32, %c0_i32_0 : i32, i32
  }
  func.func @transform_6(%arg0: i32) -> (i32, i32) {
    %c0_i32 = arith.constant 0 : i32
    %c0_i32_0 = arith.constant 0 : i32
    %c0_i32_1 = arith.constant 0 : i32
    return %c0_i32, %c0_i32_0 : i32, i32
  }
  func.func @transform_7(%arg0: i32) -> (i32, i32, i32, i32) {
    %c0_i32 = arith.constant 0 : i32
    %c0_i32_0 = arith.constant 0 : i32
    %c0_i32_1 = arith.constant 0 : i32
    %c0_i32_2 = arith.constant 0 : i32
    return %arg0, %c0_i32, %c0_i32_0, %c0_i32_1 : i32, i32, i32, i32
  }
}

</mosaic_0001>

<llo_original>
// kernel: tpu_custom_call.1
$region0: #{tpu_custom_call.1}
  #allocation0 [shape = 'u32[]', space=smem, size = 0x4, offset = 0x4, fixed_abs, tag = 'smem constant byte address 0x4 - core index']
  #allocation1 [shape = 'u32[144,128]{1,0:T(1,128)}', space=vmem, size = 0x12000, scoped, tag = 'internal scratch']
  #allocation2 [shape = 'f32[18,18,8]{2,1,0:T(8,128)}', space=vmem, size = 0x36000, scoped, tag = 'scratch operand']
  %s0 = inlined_call_operand.vmem [shape: f32[2,18,18,4], index: 0, kind: input, shape index: {}]
  %s1 = inlined_call_operand.vmem [shape: bf16[36,8], index: 1, kind: input, shape index: {}]
  %s2 = inlined_call_operand.vmem [shape: f32[1,8], index: 2, kind: input, shape index: {}]
  %s3 = inlined_call_operand.vmem [shape: bf16[72,8], index: 3, kind: input, shape index: {}]
  %s4 = inlined_call_operand.vmem [shape: f32[1,8], index: 4, kind: input, shape index: {}]
  %s5 = inlined_call_operand.vmem [shape: bf16[4,8], index: 5, kind: input, shape index: {}]
  %s6 = inlined_call_operand.vmem [shape: f32[1,8], index: 6, kind: input, shape index: {}]
  %s7 = inlined_call_operand.vmem [shape: f32[2,16,16,8], index: 7, kind: output, shape index: {}]
  %s8 = sld [smem:[#allocation0]]
  $region61: #{tpu_custom_call.1} parent=0
    _
  %s10 = ssub.s32 1, %s8
  %s11 = scalar_select 0, %s10, %s8
  loop: start=0, step=1, limit=4
  $region2: #{tpu_custom_call.1} parent=0 // loop_pre_header
    _
  $region3: #{tpu_custom_call.1} parent=0 // loop_header
    %s13 = sphi 0, %s17
    %p14 = scmp.ge.s32.totalorder %s13, 4
    %s23 = sphi 0, %s25
    %s26 = sphi 0, %s23
    %s27 = sphi 0, %s26
    %s43 = sphi 0, %s27
    %s47 = sphi 0, %s47
    %s49 = sphi 0, %s47
    %s50 = sphi 0, %s49
    %s64 = sphi 0, %s50
    %s68 = sphi 0, %s68
    %s70 = sphi 0, %s68
    %s71 = sphi 0, %s70
    %s85 = sphi 0, %s71
    %s89 = sphi 0, %s89
    %s91 = sphi 0, %s89
    %s92 = sphi 0, %s91
    %s106 = sphi 0, %s92
    %s110 = sphi 0, %s110
    %s112 = sphi 0, %s110
    %s113 = sphi 0, %s112
    %s127 = sphi 0, %s113
    %s131 = sphi 0, %s131
    %s133 = sphi 0, %s131
    %s134 = sphi 0, %s133
    %s148 = sphi 0, %s134
    %s152 = sphi 0, %s152
    %s154 = sphi 0, %s152
    %s155 = sphi 0, %s154
    %s169 = sphi 0, %s155
    %s175 = sphi 0, %s177
    %s178 = sphi 0, %s175
    %s179 = sphi 0, %s178
    %s195 = sphi 0, %s179
  $region4: #{tpu_custom_call.1} parent=0 // loop_header_branch
    %16 = sbr.rel (%p14) target = $region8
  $region5: #{tpu_custom_call.1} parent=0 // loop_body
    %s18 = ssub.s32 %s13, 1
    %s19 = ssub.s32 %s13, 2
    %s20 = sadd.s32 %s13, 1
    %s21 = ssub.s32 %s13, %s20
    %p22 = scmp.eq.s32.totalorder %s21, 0
    %s24 = sadd.s32 %s23, 1
    %s25 = scalar_select %p22, %s23, %s24
    %p28 = pneg %p22
    %p29 = scmp.eq.s32.totalorder %s13, 1
    %p30 = por %p28, %p29
    %p31 = scmp.ne.s32.totalorder %s23, %s26
    %p32 = scmp.eq.s32.totalorder %s13, 0
    %p33 = por %p31, %p32
    %p34 = scmp.ne.s32.totalorder %s23, %s26
    %p35 = scmp.eq.s32.totalorder %s18, 1
    %p36 = por %p34, %p35
    %p37 = scmp.ne.s32.totalorder %s26, %s27
    %p38 = scmp.eq.s32.totalorder %s18, 0
    %p39 = por %p37, %p38
    %p40 = scmp.ne.s32.totalorder %s26, %s27
    %p41 = scmp.eq.s32.totalorder %s19, 1
    %p42 = por %p40, %p41
    %p44 = scmp.ne.s32.totalorder %s27, %s43
    %p45 = scmp.eq.s32.totalorder %s19, 0
    %p46 = por %p44, %p45
    %s48 = sadd.s32 %s47, 1
    %p51 = scmp.eq.s32.totalorder %s13, 1
    %p52 = scmp.ne.s32.totalorder %s47, %s49
    %p53 = scmp.eq.s32.totalorder %s13, 0
    %p54 = por %p52, %p53
    %p55 = scmp.ne.s32.totalorder %s47, %s49
    %p56 = scmp.eq.s32.totalorder %s18, 1
    %p57 = por %p55, %p56
    %p58 = scmp.ne.s32.totalorder %s49, %s50
    %p59 = scmp.eq.s32.totalorder %s18, 0
    %p60 = por %p58, %p59
    %p61 = scmp.ne.s32.totalorder %s49, %s50
    %p62 = scmp.eq.s32.totalorder %s19, 1
    %p63 = por %p61, %p62
    %p65 = scmp.ne.s32.totalorder %s50, %s64
    %p66 = scmp.eq.s32.totalorder %s19, 0
    %p67 = por %p65, %p66
    %s69 = sadd.s32 %s68, 1
    %p72 = scmp.eq.s32.totalorder %s13, 1
    %p73 = scmp.ne.s32.totalorder %s68, %s70
    %p74 = scmp.eq.s32.totalorder %s13, 0
    %p75 = por %p73, %p74
    %p76 = scmp.ne.s32.totalorder %s68, %s70
    %p77 = scmp.eq.s32.totalorder %s18, 1
    %p78 = por %p76, %p77
    %p79 = scmp.ne.s32.totalorder %s70, %s71
    %p80 = scmp.eq.s32.totalorder %s18, 0
    %p81 = por %p79, %p80
    %p82 = scmp.ne.s32.totalorder %s70, %s71
    %p83 = scmp.eq.s32.totalorder %s19, 1
    %p84 = por %p82, %p83
    %p86 = scmp.ne.s32.totalorder %s71, %s85
    %p87 = scmp.eq.s32.totalorder %s19, 0
    %p88 = por %p86, %p87
    %s90 = sadd.s32 %s89, 1
    %p93 = scmp.eq.s32.totalorder %s13, 1
    %p94 = scmp.ne.s32.totalorder %s89, %s91
    %p95 = scmp.eq.s32.totalorder %s13, 0
    %p96 = por %p94, %p95
    %p97 = scmp.ne.s32.totalorder %s89, %s91
    %p98 = scmp.eq.s32.totalorder %s18, 1
    %p99 = por %p97, %p98
    %p100 = scmp.ne.s32.totalorder %s91, %s92
    %p101 = scmp.eq.s32.totalorder %s18, 0
    %p102 = por %p100, %p101
    %p103 = scmp.ne.s32.totalorder %s91, %s92
    %p104 = scmp.eq.s32.totalorder %s19, 1
    %p105 = por %p103, %p104
    %p107 = scmp.ne.s32.totalorder %s92, %s106
    %p108 = scmp.eq.s32.totalorder %s19, 0
    %p109 = por %p107, %p108
    %s111 = sadd.s32 %s110, 1
    %p114 = scmp.eq.s32.totalorder %s13, 1
    %p115 = scmp.ne.s32.totalorder %s110, %s112
    %p116 = scmp.eq.s32.totalorder %s13, 0
    %p117 = por %p115, %p116
    %p118 = scmp.ne.s32.totalorder %s110, %s112
    %p119 = scmp.eq.s32.totalorder %s18, 1
    %p120 = por %p118, %p119
    %p121 = scmp.ne.s32.totalorder %s112, %s113
    %p122 = scmp.eq.s32.totalorder %s18, 0
    %p123 = por %p121, %p122
    %p124 = scmp.ne.s32.totalorder %s112, %s113
    %p125 = scmp.eq.s32.totalorder %s19, 1
    %p126 = por %p124, %p125
    %p128 = scmp.ne.s32.totalorder %s113, %s127
    %p129 = scmp.eq.s32.totalorder %s19, 0
    %p130 = por %p128, %p129
    %s132 = sadd.s32 %s131, 1
    %p135 = scmp.eq.s32.totalorder %s13, 1
    %p136 = scmp.ne.s32.totalorder %s131, %s133
    %p137 = scmp.eq.s32.totalorder %s13, 0
    %p138 = por %p136, %p137
    %p139 = scmp.ne.s32.totalorder %s131, %s133
    %p140 = scmp.eq.s32.totalorder %s18, 1
    %p141 = por %p139, %p140
    %p142 = scmp.ne.s32.totalorder %s133, %s134
    %p143 = scmp.eq.s32.totalorder %s18, 0
    %p144 = por %p142, %p143
    %p145 = scmp.ne.s32.totalorder %s133, %s134
    %p146 = scmp.eq.s32.totalorder %s19, 1
    %p147 = por %p145, %p146
    %p149 = scmp.ne.s32.totalorder %s134, %s148
    %p150 = scmp.eq.s32.totalorder %s19, 0
    %p151 = por %p149, %p150
    %s153 = sadd.s32 %s152, 1
    %p156 = scmp.eq.s32.totalorder %s13, 1
    %p157 = scmp.ne.s32.totalorder %s152, %s154
    %p158 = scmp.eq.s32.totalorder %s13, 0
    %p159 = por %p157, %p158
    %p160 = scmp.ne.s32.totalorder %s152, %s154
    %p161 = scmp.eq.s32.totalorder %s18, 1
    %p162 = por %p160, %p161
    %p163 = scmp.ne.s32.totalorder %s154, %s155
    %p164 = scmp.eq.s32.totalorder %s18, 0
    %p165 = por %p163, %p164
    %p166 = scmp.ne.s32.totalorder %s154, %s155
    %p167 = scmp.eq.s32.totalorder %s19, 1
    %p168 = por %p166, %p167
    %p170 = scmp.ne.s32.totalorder %s155, %s169
    %p171 = scmp.eq.s32.totalorder %s19, 0
    %p172 = por %p170, %p171
    %s173 = ssub.s32 %s13, %s20
    %p174 = scmp.eq.s32.totalorder %s173, 0
    %s176 = sadd.s32 %s175, 1
    %s177 = scalar_select %p174, %s175, %s176
    %p180 = pneg %p174
    %p181 = scmp.eq.s32.totalorder %s13, 1
    %p182 = por %p180, %p181
    %p183 = scmp.ne.s32.totalorder %s175, %s178
    %p184 = scmp.eq.s32.totalorder %s13, 0
    %p185 = por %p183, %p184
    %p186 = scmp.ne.s32.totalorder %s175, %s178
    %p187 = scmp.eq.s32.totalorder %s18, 1
    %p188 = por %p186, %p187
    %p189 = scmp.ne.s32.totalorder %s178, %s179
    %p190 = scmp.eq.s32.totalorder %s18, 0
    %p191 = por %p189, %p190
    %p192 = scmp.ne.s32.totalorder %s178, %s179
    %p193 = scmp.eq.s32.totalorder %s19, 1
    %p194 = por %p192, %p193
    %p196 = scmp.ne.s32.totalorder %s179, %s195
    %p197 = scmp.eq.s32.totalorder %s19, 0
    %p198 = por %p196, %p197
    %p199 = scmp.le.s32.totalorder 1, %s13
    %p200 = scmp.lt.s32.totalorder %s13, 3
    %p201 = pnand %p199, %p200
    %p202 = pneg %p201
    // Predicated region
    $region9: #{tpu_custom_call.1} parent=5 // pred_check
      _
    $region10: #{tpu_custom_call.1} parent=5 // pred_check_branch
      %204 = sbr.rel (%p201) target = $region12
    $region11: #{tpu_custom_call.1} parent=5 // pred_region
      %s205 = ssub.s32 %s13, 1
      // Predicated region
      $region13: #{tpu_custom_call.1} parent=11 // pred_check
        %p206 = pneg %p60
      $region14: #{tpu_custom_call.1} parent=11 // pred_check_branch
        %208 = sbr.rel (%p206) target = $region16
      $region15: #{tpu_custom_call.1} parent=11 // pred_region
        _
      $region16: #{tpu_custom_call.1} parent=11 // pred_fallthru
        _
      // Predicated region
      $region17: #{tpu_custom_call.1} parent=11 // pred_check
        %p209 = pneg %p81
      $region18: #{tpu_custom_call.1} parent=11 // pred_check_branch
        %211 = sbr.rel (%p209) target = $region20
      $region19: #{tpu_custom_call.1} parent=11 // pred_region
        _
      $region20: #{tpu_custom_call.1} parent=11 // pred_fallthru
        _
      // Predicated region
      $region21: #{tpu_custom_call.1} parent=11 // pred_check
        %p212 = pneg %p102
      $region22: #{tpu_custom_call.1} parent=11 // pred_check_branch
        %214 = sbr.rel (%p212) target = $region24
      $region23: #{tpu_custom_call.1} parent=11 // pred_region
        _
      $region24: #{tpu_custom_call.1} parent=11 // pred_fallthru
        _
      // Predicated region
      $region25: #{tpu_custom_call.1} parent=11 // pred_check
        %p215 = pneg %p123
      $region26: #{tpu_custom_call.1} parent=11 // pred_check_branch
        %217 = sbr.rel (%p215) target = $region28
      $region27: #{tpu_custom_call.1} parent=11 // pred_region
        _
      $region28: #{tpu_custom_call.1} parent=11 // pred_fallthru
        _
      // Predicated region
      $region29: #{tpu_custom_call.1} parent=11 // pred_check
        %p218 = pneg %p144
      $region30: #{tpu_custom_call.1} parent=11 // pred_check_branch
        %220 = sbr.rel (%p218) target = $region32
      $region31: #{tpu_custom_call.1} parent=11 // pred_region
        _
      $region32: #{tpu_custom_call.1} parent=11 // pred_fallthru
        _
      // Predicated region
      $region33: #{tpu_custom_call.1} parent=11 // pred_check
        %p221 = pneg %p165
      $region34: #{tpu_custom_call.1} parent=11 // pred_check_branch
        %223 = sbr.rel (%p221) target = $region36
      $region35: #{tpu_custom_call.1} parent=11 // pred_region
        _
      $region36: #{tpu_custom_call.1} parent=11 // pred_fallthru
        _
    $region12: #{tpu_custom_call.1} parent=5 // pred_fallthru
      _
    %p224 = scmp.lt.s32.totalorder %s13, 2
    // Predicated region
    $region37: #{tpu_custom_call.1} parent=5 // pred_check
      %p225 = pneg %p224
    $region38: #{tpu_custom_call.1} parent=5 // pred_check_branch
      %227 = sbr.rel (%p225) target = $region40
    $region39: #{tpu_custom_call.1} parent=5 // pred_region
      // Predicated region
      $region41: #{tpu_custom_call.1} parent=39 // pred_check
        %p228 = pneg %p33
      $region42: #{tpu_custom_call.1} parent=39 // pred_check_branch
        %230 = sbr.rel (%p228) target = $region44
      $region43: #{tpu_custom_call.1} parent=39 // pred_region
        %p231 = scmp.lt.s32.totalorder %s13, 1
        %s232 = scalar_select %p231, %s13, 1
        %s233 = smul.addr %s232, 54
        %s234 = smul.addr %s233, 8
        %s235 = scalar_lea.vmem %s0, %s234
      $region44: #{tpu_custom_call.1} parent=39 // pred_fallthru
        _
    $region40: #{tpu_custom_call.1} parent=5 // pred_fallthru
      _
    %p236 = scmp.le.s32.totalorder 1, %s13
    %p237 = scmp.lt.s32.totalorder %s13, 3
    %p238 = pnand %p236, %p237
    %p239 = pneg %p238
    // Predicated region
    $region45: #{tpu_custom_call.1} parent=5 // pred_check
      _
    $region46: #{tpu_custom_call.1} parent=5 // pred_check_branch
      %241 = sbr.rel (%p238) target = $region48
    $region47: #{tpu_custom_call.1} parent=5 // pred_region
      %s242 = ssub.s32 %s13, 1
      %p243 = scmp.lt.s32.totalorder %s18, 1
      %s244 = scalar_select %p243, %s18, 1
      %s245 = smul.addr %s244, 54
      %s246 = smul.addr %s245, 8
      %s247 = scalar_lea.vmem %s0, %s246
      %p248 = pneg %p39
      %p249 = pneg %p36
      %p250 = pneg %p60
      %p251 = pneg %p57
      %p252 = pneg %p81
      %p253 = pneg %p78
      %p254 = pneg %p102
      %p255 = pneg %p99
      %p256 = pneg %p123
      %p257 = pneg %p120
      %p258 = pneg %p144
      %p259 = pneg %p141
      %p260 = pneg %p165
      %p261 = pneg %p162
      %p262 = pneg %p191
      %p263 = pneg %p188
      %p264 = scmp.lt.s32.totalorder %s18, 1
      %s265 = scalar_select %p264, %s18, 1
      %s266 = smul.addr %s265, 32
      %s267 = smul.addr %s266, 8
      %s268 = scalar_lea.vmem %s7, %s267
      %p269 = scmp.lt.s32.totalorder %s18, 1
      %s270 = scalar_select %p269, %s18, 1
      %s271 = smul.addr %s270, 54
      %s272 = smul.addr %s271, 8
      %s273 = scalar_lea.vmem %s0, %s272
      %p274 = scmp.lt.s32.totalorder %s18, 1
      %s275 = scalar_select %p274, %s18, 1
      %s276 = smul.addr %s275, 32
      %s277 = smul.addr %s276, 8
      %s278 = scalar_lea.vmem %s7, %s277
      %v280 = vld [vmem:[%s273] sm:$0xff]
      %v281 = vld [vmem:[%s273 + $0x8] sm:$0xff]
      %v282 = vld [vmem:[%s273 + $0x10] sm:$0x3]
      %v283 = vld [vmem:[%s273 + $0x18] sm:$0xff]
      %v284 = vld [vmem:[%s273 + $0x20] sm:$0xff]
      %v285 = vld [vmem:[%s273 + $0x28] sm:$0x3]
      %v286 = vld [vmem:[%s273 + $0x30] sm:$0xff]
      %v287 = vld [vmem:[%s273 + $0x38] sm:$0xff]
      %v288 = vld [vmem:[%s273 + $0x40] sm:$0x3]
      %v289 = vld [vmem:[%s273 + $0x48] sm:$0xff]
      %v290 = vld [vmem:[%s273 + $0x50] sm:$0xff]
      %v291 = vld [vmem:[%s273 + $0x58] sm:$0x3]
      %v292 = vld [vmem:[%s273 + $0x60] sm:$0xff]
      %v293 = vld [vmem:[%s273 + $0x68] sm:$0xff]
      %v294 = vld [vmem:[%s273 + $0x70] sm:$0x3]
      %v295 = vld [vmem:[%s273 + $0x78] sm:$0xff]
      %v296 = vld [vmem:[%s273 + $0x80] sm:$0xff]
      %v297 = vld [vmem:[%s273 + $0x88] sm:$0x3]
      %v298 = vld [vmem:[%s273 + $0x90] sm:$0xff]
      %v299 = vld [vmem:[%s273 + $0x98] sm:$0xff]
      %v300 = vld [vmem:[%s273 + $0xa0] sm:$0x3]
      %v301 = vld [vmem:[%s273 + $0xa8] sm:$0xff]
      %v302 = vld [vmem:[%s273 + $0xb0] sm:$0xff]
      %v303 = vld [vmem:[%s273 + $0xb8] sm:$0x3]
      %v304 = vld [vmem:[%s273 + $0xc0] sm:$0xff]
      %v305 = vld [vmem:[%s273 + $0xc8] sm:$0xff]
      %v306 = vld [vmem:[%s273 + $0xd0] sm:$0x3]
      %v307 = vld [vmem:[%s273 + $0xd8] sm:$0xff]
      %v308 = vld [vmem:[%s273 + $0xe0] sm:$0xff]
      %v309 = vld [vmem:[%s273 + $0xe8] sm:$0x3]
      %v310 = vld [vmem:[%s273 + $0xf0] sm:$0xff]
      %v311 = vld [vmem:[%s273 + $0xf8] sm:$0xff]
      %v312 = vld [vmem:[%s273 + $0x100] sm:$0x3]
      %v313 = vld [vmem:[%s273 + $0x108] sm:$0xff]
      %v314 = vld [vmem:[%s273 + $0x110] sm:$0xff]
      %v315 = vld [vmem:[%s273 + $0x118] sm:$0x3]
      %v316 = vld [vmem:[%s273 + $0x120] sm:$0xff]
      %v317 = vld [vmem:[%s273 + $0x128] sm:$0xff]
      %v318 = vld [vmem:[%s273 + $0x130] sm:$0x3]
      %v319 = vld [vmem:[%s273 + $0x138] sm:$0xff]
      %v320 = vld [vmem:[%s273 + $0x140] sm:$0xff]
      %v321 = vld [vmem:[%s273 + $0x148] sm:$0x3]
      %v322 = vld [vmem:[%s273 + $0x150] sm:$0xff]
      %v323 = vld [vmem:[%s273 + $0x158] sm:$0xff]
      %v324 = vld [vmem:[%s273 + $0x160] sm:$0x3]
      %v325 = vld [vmem:[%s273 + $0x168] sm:$0xff]
      %v326 = vld [vmem:[%s273 + $0x170] sm:$0xff]
      %v327 = vld [vmem:[%s273 + $0x178] sm:$0x3]
      %v328 = vld [vmem:[%s273 + $0x180] sm:$0xff]
      %v329 = vld [vmem:[%s273 + $0x188] sm:$0xff]
      %v330 = vld [vmem:[%s273 + $0x190] sm:$0x3]
      %v331 = vld [vmem:[%s273 + $0x198] sm:$0xff]
      %v332 = vld [vmem:[%s273 + $0x1a0] sm:$0xff]
      %v333 = vld [vmem:[%s273 + $0x1a8] sm:$0x3]
      %vm382 = vcmask 1046528
      %v383 = vrot.slane %v280, 1
      %v384 = vrot.slane %v281, 1
      %v385 = vsel %vm382, %v383, %v384
      %v386 = vrot.slane %v282, 1
      %v387 = vsel %vm382, %v384, %v386
      %v388 = vrot.slane %v283, 1
      %v389 = vrot.slane %v284, 1
      %v390 = vsel %vm382, %v388, %v389
      %v391 = vrot.slane %v285, 1
      %v392 = vsel %vm382, %v389, %v391
      %v393 = vrot.slane %v286, 1
      %v394 = vrot.slane %v287, 1
      %v395 = vsel %vm382, %v393, %v394
      %v396 = vrot.slane %v288, 1
      %v397 = vsel %vm382, %v394, %v396
      %v398 = vrot.slane %v289, 1
      %v399 = vrot.slane %v290, 1
      %v400 = vsel %vm382, %v398, %v399
      %v401 = vrot.slane %v291, 1
      %v402 = vsel %vm382, %v399, %v401
      %v403 = vrot.slane %v292, 1
      %v404 = vrot.slane %v293, 1
      %v405 = vsel %vm382, %v403, %v404
      %v406 = vrot.slane %v294, 1
      %v407 = vsel %vm382, %v404, %v406
      %v408 = vrot.slane %v295, 1
      %v409 = vrot.slane %v296, 1
      %v410 = vsel %vm382, %v408, %v409
      %v411 = vrot.slane %v297, 1
      %v412 = vsel %vm382, %v409, %v411
      %v413 = vrot.slane %v298, 1
      %v414 = vrot.slane %v299, 1
      %v415 = vsel %vm382, %v413, %v414
      %v416 = vrot.slane %v300, 1
      %v417 = vsel %vm382, %v414, %v416
      %v418 = vrot.slane %v301, 1
      %v419 = vrot.slane %v302, 1
      %v420 = vsel %vm382, %v418, %v419
      %v421 = vrot.slane %v303, 1
      %v422 = vsel %vm382, %v419, %v421
      %v423 = vrot.slane %v304, 1
      %v424 = vrot.slane %v305, 1
      %v425 = vsel %vm382, %v423, %v424
      %v426 = vrot.slane %v306, 1
      %v427 = vsel %vm382, %v424, %v426
      %v428 = vrot.slane %v307, 1
      %v429 = vrot.slane %v308, 1
      %v430 = vsel %vm382, %v428, %v429
      %v431 = vrot.slane %v309, 1
      %v432 = vsel %vm382, %v429, %v431
      %v433 = vrot.slane %v310, 1
      %v434 = vrot.slane %v311, 1
      %v435 = vsel %vm382, %v433, %v434
      %v436 = vrot.slane %v312, 1
      %v437 = vsel %vm382, %v434, %v436
      %v438 = vrot.slane %v313, 1
      %v439 = vrot.slane %v314, 1
      %v440 = vsel %vm382, %v438, %v439
      %v441 = vrot.slane %v315, 1
      %v442 = vsel %vm382, %v439, %v441
      %v443 = vrot.slane %v316, 1
      %v444 = vrot.slane %v317, 1
      %v445 = vsel %vm382, %v443, %v444
      %v446 = vrot.slane %v318, 1
      %v447 = vsel %vm382, %v444, %v446
      %v448 = vrot.slane %v319, 1
      %v449 = vrot.slane %v320, 1
      %v450 = vsel %vm382, %v448, %v449
      %v451 = vrot.slane %v321, 1
      %v452 = vsel %vm382, %v449, %v451
      %v453 = vrot.slane %v322, 1
      %v454 = vrot.slane %v323, 1
      %v455 = vsel %vm382, %v453, %v454
      %v456 = vrot.slane %v324, 1
      %v457 = vsel %vm382, %v454, %v456
      %v458 = vrot.slane %v325, 1
      %v459 = vrot.slane %v326, 1
      %v460 = vsel %vm382, %v458, %v459
      %v461 = vrot.slane %v327, 1
      %v462 = vsel %vm382, %v459, %v461
      %vm463 = vcmask 1045504
      %v464 = vrot.slane %v280, 2
      %v465 = vrot.slane %v281, 2
      %v466 = vsel %vm463, %v464, %v465
      %v467 = vrot.slane %v282, 2
      %v468 = vsel %vm463, %v465, %v467
      %v469 = vrot.slane %v283, 2
      %v470 = vrot.slane %v284, 2
      %v471 = vsel %vm463, %v469, %v470
      %v472 = vrot.slane %v285, 2
      %v473 = vsel %vm463, %v470, %v472
      %v474 = vrot.slane %v286, 2
      %v475 = vrot.slane %v287, 2
      %v476 = vsel %vm463, %v474, %v475
      %v477 = vrot.slane %v288, 2
      %v478 = vsel %vm463, %v475, %v477
      %v479 = vrot.slane %v289, 2
      %v480 = vrot.slane %v290, 2
      %v481 = vsel %vm463, %v479, %v480
      %v482 = vrot.slane %v291, 2
      %v483 = vsel %vm463, %v480, %v482
      %v484 = vrot.slane %v292, 2
      %v485 = vrot.slane %v293, 2
      %v486 = vsel %vm463, %v484, %v485
      %v487 = vrot.slane %v294, 2
      %v488 = vsel %vm463, %v485, %v487
      %v489 = vrot.slane %v295, 2
      %v490 = vrot.slane %v296, 2
      %v491 = vsel %vm463, %v489, %v490
      %v492 = vrot.slane %v297, 2
      %v493 = vsel %vm463, %v490, %v492
      %v494 = vrot.slane %v298, 2
      %v495 = vrot.slane %v299, 2
      %v496 = vsel %vm463, %v494, %v495
      %v497 = vrot.slane %v300, 2
      %v498 = vsel %vm463, %v495, %v497
      %v499 = vrot.slane %v301, 2
      %v500 = vrot.slane %v302, 2
      %v501 = vsel %vm463, %v499, %v500
      %v502 = vrot.slane %v303, 2
      %v503 = vsel %vm463, %v500, %v502
      %v504 = vrot.slane %v304, 2
      %v505 = vrot.slane %v305, 2
      %v506 = vsel %vm463, %v504, %v505
      %v507 = vrot.slane %v306, 2
      %v508 = vsel %vm463, %v505, %v507
      %v509 = vrot.slane %v307, 2
      %v510 = vrot.slane %v308, 2
      %v511 = vsel %vm463, %v509, %v510
      %v512 = vrot.slane %v309, 2
      %v513 = vsel %vm463, %v510, %v512
      %v514 = vrot.slane %v310, 2
      %v515 = vrot.slane %v311, 2
      %v516 = vsel %vm463, %v514, %v515
      %v517 = vrot.slane %v312, 2
      %v518 = vsel %vm463, %v515, %v517
      %v519 = vrot.slane %v313, 2
      %v520 = vrot.slane %v314, 2
      %v521 = vsel %vm463, %v519, %v520
      %v522 = vrot.slane %v315, 2
      %v523 = vsel %vm463, %v520, %v522
      %v524 = vrot.slane %v316, 2
      %v525 = vrot.slane %v317, 2
      %v526 = vsel %vm463, %v524, %v525
      %v527 = vrot.slane %v318, 2
      %v528 = vsel %vm463, %v525, %v527
      %v529 = vrot.slane %v319, 2
      %v530 = vrot.slane %v320, 2
      %v531 = vsel %vm463, %v529, %v530
      %v532 = vrot.slane %v321, 2
      %v533 = vsel %vm463, %v530, %v532
      %v534 = vrot.slane %v322, 2
      %v535 = vrot.slane %v323, 2
      %v536 = vsel %vm463, %v534, %v535
      %v537 = vrot.slane %v324, 2
      %v538 = vsel %vm463, %v535, %v537
      %v539 = vrot.slane %v325, 2
      %v540 = vrot.slane %v326, 2
      %v541 = vsel %vm463, %v539, %v540
      %v542 = vrot.slane %v327, 2
      %v543 = vsel %vm463, %v540, %v542
      %v547 = vrot.slane %v328, 1
      %v548 = vrot.slane %v329, 1
      %v549 = vsel %vm382, %v547, %v548
      %v550 = vrot.slane %v330, 1
      %v551 = vsel %vm382, %v548, %v550
      %v584 = vrot.slane %v328, 2
      %v585 = vrot.slane %v329, 2
      %v586 = vsel %vm463, %v584, %v585
      %v587 = vrot.slane %v330, 2
      %v588 = vsel %vm463, %v585, %v587
      %v592 = vrot.slane %v331, 1
      %v593 = vrot.slane %v332, 1
      %v594 = vsel %vm382, %v592, %v593
      %v595 = vrot.slane %v333, 1
      %v596 = vsel %vm382, %v593, %v595
      %v597 = vrot.slane %v331, 2
      %v598 = vrot.slane %v332, 2
      %v599 = vsel %vm463, %v597, %v598
      %v600 = vrot.slane %v333, 2
      %v601 = vsel %vm463, %v598, %v600
      %602 = vrot.lane.b32.xlu0 %v385, 4
      %v603 = vpop.permute.xlu0 %602
      %604 = vrot.lane.b32.xlu0 %v387, 4
      %v605 = vpop.permute.xlu0 %604
      %606 = vrot.lane.b32.xlu0 %v390, 4
      %v607 = vpop.permute.xlu0 %606
      %608 = vrot.lane.b32.xlu0 %v392, 4
      %v609 = vpop.permute.xlu0 %608
      %610 = vrot.lane.b32.xlu0 %v395, 4
      %v611 = vpop.permute.xlu0 %610
      %612 = vrot.lane.b32.xlu0 %v397, 4
      %v613 = vpop.permute.xlu0 %612
      %614 = vrot.lane.b32.xlu0 %v400, 4
      %v615 = vpop.permute.xlu0 %614
      %616 = vrot.lane.b32.xlu0 %v402, 4
      %v617 = vpop.permute.xlu0 %616
      %618 = vrot.lane.b32.xlu0 %v405, 4
      %v619 = vpop.permute.xlu0 %618
      %620 = vrot.lane.b32.xlu0 %v407, 4
      %v621 = vpop.permute.xlu0 %620
      %622 = vrot.lane.b32.xlu0 %v410, 4
      %v623 = vpop.permute.xlu0 %622
      %624 = vrot.lane.b32.xlu0 %v412, 4
      %v625 = vpop.permute.xlu0 %624
      %626 = vrot.lane.b32.xlu0 %v415, 4
      %v627 = vpop.permute.xlu0 %626
      %628 = vrot.lane.b32.xlu0 %v417, 4
      %v629 = vpop.permute.xlu0 %628
      %630 = vrot.lane.b32.xlu0 %v420, 4
      %v631 = vpop.permute.xlu0 %630
      %632 = vrot.lane.b32.xlu0 %v422, 4
      %v633 = vpop.permute.xlu0 %632
      %634 = vrot.lane.b32.xlu0 %v425, 4
      %v635 = vpop.permute.xlu0 %634
      %636 = vrot.lane.b32.xlu0 %v427, 4
      %v637 = vpop.permute.xlu0 %636
      %638 = vrot.lane.b32.xlu0 %v430, 4
      %v639 = vpop.permute.xlu0 %638
      %640 = vrot.lane.b32.xlu0 %v432, 4
      %v641 = vpop.permute.xlu0 %640
      %642 = vrot.lane.b32.xlu0 %v435, 4
      %v643 = vpop.permute.xlu0 %642
      %644 = vrot.lane.b32.xlu0 %v437, 4
      %v645 = vpop.permute.xlu0 %644
      %646 = vrot.lane.b32.xlu0 %v440, 4
      %v647 = vpop.permute.xlu0 %646
      %648 = vrot.lane.b32.xlu0 %v442, 4
      %v649 = vpop.permute.xlu0 %648
      %650 = vrot.lane.b32.xlu0 %v445, 4
      %v651 = vpop.permute.xlu0 %650
      %652 = vrot.lane.b32.xlu0 %v447, 4
      %v653 = vpop.permute.xlu0 %652
      %654 = vrot.lane.b32.xlu0 %v450, 4
      %v655 = vpop.permute.xlu0 %654
      %656 = vrot.lane.b32.xlu0 %v452, 4
      %v657 = vpop.permute.xlu0 %656
      %658 = vrot.lane.b32.xlu0 %v455, 4
      %v659 = vpop.permute.xlu0 %658
      %660 = vrot.lane.b32.xlu0 %v457, 4
      %v661 = vpop.permute.xlu0 %660
      %662 = vrot.lane.b32.xlu0 %v460, 4
      %v663 = vpop.permute.xlu0 %662
      %664 = vrot.lane.b32.xlu0 %v462, 4
      %v665 = vpop.permute.xlu0 %664
      %698 = vrot.lane.b32.xlu0 %v466, 8
      %v699 = vpop.permute.xlu0 %698
      %700 = vrot.lane.b32.xlu0 %v468, 8
      %v701 = vpop.permute.xlu0 %700
      %702 = vrot.lane.b32.xlu0 %v471, 8
      %v703 = vpop.permute.xlu0 %702
      %704 = vrot.lane.b32.xlu0 %v473, 8
      %v705 = vpop.permute.xlu0 %704
      %706 = vrot.lane.b32.xlu0 %v476, 8
      %v707 = vpop.permute.xlu0 %706
      %708 = vrot.lane.b32.xlu0 %v478, 8
      %v709 = vpop.permute.xlu0 %708
      %710 = vrot.lane.b32.xlu0 %v481, 8
      %v711 = vpop.permute.xlu0 %710
      %712 = vrot.lane.b32.xlu0 %v483, 8
      %v713 = vpop.permute.xlu0 %712
      %714 = vrot.lane.b32.xlu0 %v486, 8
      %v715 = vpop.permute.xlu0 %714
      %716 = vrot.lane.b32.xlu0 %v488, 8
      %v717 = vpop.permute.xlu0 %716
      %718 = vrot.lane.b32.xlu0 %v491, 8
      %v719 = vpop.permute.xlu0 %718
      %720 = vrot.lane.b32.xlu0 %v493, 8
      %v721 = vpop.permute.xlu0 %720
      %722 = vrot.lane.b32.xlu0 %v496, 8
      %v723 = vpop.permute.xlu0 %722
      %724 = vrot.lane.b32.xlu0 %v498, 8
      %v725 = vpop.permute.xlu0 %724
      %726 = vrot.lane.b32.xlu0 %v501, 8
      %v727 = vpop.permute.xlu0 %726
      %728 = vrot.lane.b32.xlu0 %v503, 8
      %v729 = vpop.permute.xlu0 %728
      %730 = vrot.lane.b32.xlu0 %v506, 8
      %v731 = vpop.permute.xlu0 %730
      %732 = vrot.lane.b32.xlu0 %v508, 8
      %v733 = vpop.permute.xlu0 %732
      %734 = vrot.lane.b32.xlu0 %v511, 8
      %v735 = vpop.permute.xlu0 %734
      %736 = vrot.lane.b32.xlu0 %v513, 8
      %v737 = vpop.permute.xlu0 %736
      %738 = vrot.lane.b32.xlu0 %v516, 8
      %v739 = vpop.permute.xlu0 %738
      %740 = vrot.lane.b32.xlu0 %v518, 8
      %v741 = vpop.permute.xlu0 %740
      %742 = vrot.lane.b32.xlu0 %v521, 8
      %v743 = vpop.permute.xlu0 %742
      %744 = vrot.lane.b32.xlu0 %v523, 8
      %v745 = vpop.permute.xlu0 %744
      %746 = vrot.lane.b32.xlu0 %v526, 8
      %v747 = vpop.permute.xlu0 %746
      %748 = vrot.lane.b32.xlu0 %v528, 8
      %v749 = vpop.permute.xlu0 %748
      %750 = vrot.lane.b32.xlu0 %v531, 8
      %v751 = vpop.permute.xlu0 %750
      %752 = vrot.lane.b32.xlu0 %v533, 8
      %v753 = vpop.permute.xlu0 %752
      %754 = vrot.lane.b32.xlu0 %v536, 8
      %v755 = vpop.permute.xlu0 %754
      %756 = vrot.lane.b32.xlu0 %v538, 8
      %v757 = vpop.permute.xlu0 %756
      %758 = vrot.lane.b32.xlu0 %v541, 8
      %v759 = vpop.permute.xlu0 %758
      %760 = vrot.lane.b32.xlu0 %v543, 8
      %v761 = vpop.permute.xlu0 %760
      %794 = vrot.lane.b32.xlu0 %v283, 12
      %v795 = vpop.permute.xlu0 %794
      %796 = vrot.lane.b32.xlu0 %v284, 12
      %v797 = vpop.permute.xlu0 %796
      %798 = vrot.lane.b32.xlu0 %v286, 12
      %v799 = vpop.permute.xlu0 %798
      %800 = vrot.lane.b32.xlu0 %v287, 12
      %v801 = vpop.permute.xlu0 %800
      %802 = vrot.lane.b32.xlu0 %v289, 12
      %v803 = vpop.permute.xlu0 %802
      %804 = vrot.lane.b32.xlu0 %v290, 12
      %v805 = vpop.permute.xlu0 %804
      %806 = vrot.lane.b32.xlu0 %v292, 12
      %v807 = vpop.permute.xlu0 %806
      %808 = vrot.lane.b32.xlu0 %v293, 12
      %v809 = vpop.permute.xlu0 %808
      %810 = vrot.lane.b32.xlu0 %v295, 12
      %v811 = vpop.permute.xlu0 %810
      %812 = vrot.lane.b32.xlu0 %v296, 12
      %v813 = vpop.permute.xlu0 %812
      %814 = vrot.lane.b32.xlu0 %v298, 12
      %v815 = vpop.permute.xlu0 %814
      %816 = vrot.lane.b32.xlu0 %v299, 12
      %v817 = vpop.permute.xlu0 %816
      %818 = vrot.lane.b32.xlu0 %v301, 12
      %v819 = vpop.permute.xlu0 %818
      %820 = vrot.lane.b32.xlu0 %v302, 12
      %v821 = vpop.permute.xlu0 %820
      %822 = vrot.lane.b32.xlu0 %v304, 12
      %v823 = vpop.permute.xlu0 %822
      %824 = vrot.lane.b32.xlu0 %v305, 12
      %v825 = vpop.permute.xlu0 %824
      %826 = vrot.lane.b32.xlu0 %v307, 12
      %v827 = vpop.permute.xlu0 %826
      %828 = vrot.lane.b32.xlu0 %v308, 12
      %v829 = vpop.permute.xlu0 %828
      %830 = vrot.lane.b32.xlu0 %v310, 12
      %v831 = vpop.permute.xlu0 %830
      %832 = vrot.lane.b32.xlu0 %v311, 12
      %v833 = vpop.permute.xlu0 %832
      %834 = vrot.lane.b32.xlu0 %v313, 12
      %v835 = vpop.permute.xlu0 %834
      %836 = vrot.lane.b32.xlu0 %v314, 12
      %v837 = vpop.permute.xlu0 %836
      %838 = vrot.lane.b32.xlu0 %v316, 12
      %v839 = vpop.permute.xlu0 %838
      %840 = vrot.lane.b32.xlu0 %v317, 12
      %v841 = vpop.permute.xlu0 %840
      %842 = vrot.lane.b32.xlu0 %v319, 12
      %v843 = vpop.permute.xlu0 %842
      %844 = vrot.lane.b32.xlu0 %v320, 12
      %v845 = vpop.permute.xlu0 %844
      %846 = vrot.lane.b32.xlu0 %v322, 12
      %v847 = vpop.permute.xlu0 %846
      %848 = vrot.lane.b32.xlu0 %v323, 12
      %v849 = vpop.permute.xlu0 %848
      %850 = vrot.lane.b32.xlu0 %v325, 12
      %v851 = vpop.permute.xlu0 %850
      %852 = vrot.lane.b32.xlu0 %v326, 12
      %v853 = vpop.permute.xlu0 %852
      %854 = vrot.lane.b32.xlu0 %v328, 12
      %v855 = vpop.permute.xlu0 %854
      %856 = vrot.lane.b32.xlu0 %v329, 12
      %v857 = vpop.permute.xlu0 %856
      %890 = vrot.lane.b32.xlu0 %v390, 16
      %v891 = vpop.permute.xlu0 %890
      %892 = vrot.lane.b32.xlu0 %v392, 16
      %v893 = vpop.permute.xlu0 %892
      %894 = vrot.lane.b32.xlu0 %v395, 16
      %v895 = vpop.permute.xlu0 %894
      %896 = vrot.lane.b32.xlu0 %v397, 16
      %v897 = vpop.permute.xlu0 %896
      %898 = vrot.lane.b32.xlu0 %v400, 16
      %v899 = vpop.permute.xlu0 %898
      %900 = vrot.lane.b32.xlu0 %v402, 16
      %v901 = vpop.permute.xlu0 %900
      %902 = vrot.lane.b32.xlu0 %v405, 16
      %v903 = vpop.permute.xlu0 %902
      %904 = vrot.lane.b32.xlu0 %v407, 16
      %v905 = vpop.permute.xlu0 %904
      %906 = vrot.lane.b32.xlu0 %v410, 16
      %v907 = vpop.permute.xlu0 %906
      %908 = vrot.lane.b32.xlu0 %v412, 16
      %v909 = vpop.permute.xlu0 %908
      %910 = vrot.lane.b32.xlu0 %v415, 16
      %v911 = vpop.permute.xlu0 %910
      %912 = vrot.lane.b32.xlu0 %v417, 16
      %v913 = vpop.permute.xlu0 %912
      %914 = vrot.lane.b32.xlu0 %v420, 16
      %v915 = vpop.permute.xlu0 %914
      %916 = vrot.lane.b32.xlu0 %v422, 16
      %v917 = vpop.permute.xlu0 %916
      %918 = vrot.lane.b32.xlu0 %v425, 16
      %v919 = vpop.permute.xlu0 %918
      %920 = vrot.lane.b32.xlu0 %v427, 16
      %v921 = vpop.permute.xlu0 %920
      %922 = vrot.lane.b32.xlu0 %v430, 16
      %v923 = vpop.permute.xlu0 %922
      %924 = vrot.lane.b32.xlu0 %v432, 16
      %v925 = vpop.permute.xlu0 %924
      %926 = vrot.lane.b32.xlu0 %v435, 16
      %v927 = vpop.permute.xlu0 %926
      %928 = vrot.lane.b32.xlu0 %v437, 16
      %v929 = vpop.permute.xlu0 %928
      %930 = vrot.lane.b32.xlu0 %v440, 16
      %v931 = vpop.permute.xlu0 %930
      %932 = vrot.lane.b32.xlu0 %v442, 16
      %v933 = vpop.permute.xlu0 %932
      %934 = vrot.lane.b32.xlu0 %v445, 16
      %v935 = vpop.permute.xlu0 %934
      %936 = vrot.lane.b32.xlu0 %v447, 16
      %v937 = vpop.permute.xlu0 %936
      %938 = vrot.lane.b32.xlu0 %v450, 16
      %v939 = vpop.permute.xlu0 %938
      %940 = vrot.lane.b32.xlu0 %v452, 16
      %v941 = vpop.permute.xlu0 %940
      %942 = vrot.lane.b32.xlu0 %v455, 16
      %v943 = vpop.permute.xlu0 %942
      %944 = vrot.lane.b32.xlu0 %v457, 16
      %v945 = vpop.permute.xlu0 %944
      %946 = vrot.lane.b32.xlu0 %v460, 16
      %v947 = vpop.permute.xlu0 %946
      %948 = vrot.lane.b32.xlu0 %v462, 16
      %v949 = vpop.permute.xlu0 %948
      %950 = vrot.lane.b32.xlu0 %v549, 16
      %v951 = vpop.permute.xlu0 %950
      %952 = vrot.lane.b32.xlu0 %v551, 16
      %v953 = vpop.permute.xlu0 %952
      %986 = vrot.lane.b32.xlu0 %v471, 20
      %v987 = vpop.permute.xlu0 %986
      %988 = vrot.lane.b32.xlu0 %v473, 20
      %v989 = vpop.permute.xlu0 %988
      %990 = vrot.lane.b32.xlu0 %v476, 20
      %v991 = vpop.permute.xlu0 %990
      %992 = vrot.lane.b32.xlu0 %v478, 20
      %v993 = vpop.permute.xlu0 %992
      %994 = vrot.lane.b32.xlu0 %v481, 20
      %v995 = vpop.permute.xlu0 %994
      %996 = vrot.lane.b32.xlu0 %v483, 20
      %v997 = vpop.permute.xlu0 %996
      %998 = vrot.lane.b32.xlu0 %v486, 20
      %v999 = vpop.permute.xlu0 %998
      %1000 = vrot.lane.b32.xlu0 %v488, 20
      %v1001 = vpop.permute.xlu0 %1000
      %1002 = vrot.lane.b32.xlu0 %v491, 20
      %v1003 = vpop.permute.xlu0 %1002
      %1004 = vrot.lane.b32.xlu0 %v493, 20
      %v1005 = vpop.permute.xlu0 %1004
      %1006 = vrot.lane.b32.xlu0 %v496, 20
      %v1007 = vpop.permute.xlu0 %1006
      %1008 = vrot.lane.b32.xlu0 %v498, 20
      %v1009 = vpop.permute.xlu0 %1008
      %1010 = vrot.lane.b32.xlu0 %v501, 20
      %v1011 = vpop.permute.xlu0 %1010
      %1012 = vrot.lane.b32.xlu0 %v503, 20
      %v1013 = vpop.permute.xlu0 %1012
      %1014 = vrot.lane.b32.xlu0 %v506, 20
      %v1015 = vpop.permute.xlu0 %1014
      %1016 = vrot.lane.b32.xlu0 %v508, 20
      %v1017 = vpop.permute.xlu0 %1016
      %1018 = vrot.lane.b32.xlu0 %v511, 20
      %v1019 = vpop.permute.xlu0 %1018
      %1020 = vrot.lane.b32.xlu0 %v513, 20
      %v1021 = vpop.permute.xlu0 %1020
      %1022 = vrot.lane.b32.xlu0 %v516, 20
      %v1023 = vpop.permute.xlu0 %1022
      %1024 = vrot.lane.b32.xlu0 %v518, 20
      %v1025 = vpop.permute.xlu0 %1024
      %1026 = vrot.lane.b32.xlu0 %v521, 20
      %v1027 = vpop.permute.xlu0 %1026
      %1028 = vrot.lane.b32.xlu0 %v523, 20
      %v1029 = vpop.permute.xlu0 %1028
      %1030 = vrot.lane.b32.xlu0 %v526, 20
      %v1031 = vpop.permute.xlu0 %1030
      %1032 = vrot.lane.b32.xlu0 %v528, 20
      %v1033 = vpop.permute.xlu0 %1032
      %1034 = vrot.lane.b32.xlu0 %v531, 20
      %v1035 = vpop.permute.xlu0 %1034
      %1036 = vrot.lane.b32.xlu0 %v533, 20
      %v1037 = vpop.permute.xlu0 %1036
      %1038 = vrot.lane.b32.xlu0 %v536, 20
      %v1039 = vpop.permute.xlu0 %1038
      %1040 = vrot.lane.b32.xlu0 %v538, 20
      %v1041 = vpop.permute.xlu0 %1040
      %1042 = vrot.lane.b32.xlu0 %v541, 20
      %v1043 = vpop.permute.xlu0 %1042
      %1044 = vrot.lane.b32.xlu0 %v543, 20
      %v1045 = vpop.permute.xlu0 %1044
      %1046 = vrot.lane.b32.xlu0 %v586, 20
      %v1047 = vpop.permute.xlu0 %1046
      %1048 = vrot.lane.b32.xlu0 %v588, 20
      %v1049 = vpop.permute.xlu0 %1048
      %1082 = vrot.lane.b32.xlu0 %v286, 24
      %v1083 = vpop.permute.xlu0 %1082
      %1084 = vrot.lane.b32.xlu0 %v287, 24
      %v1085 = vpop.permute.xlu0 %1084
      %1086 = vrot.lane.b32.xlu0 %v289, 24
      %v1087 = vpop.permute.xlu0 %1086
      %1088 = vrot.lane.b32.xlu0 %v290, 24
      %v1089 = vpop.permute.xlu0 %1088
      %1090 = vrot.lane.b32.xlu0 %v292, 24
      %v1091 = vpop.permute.xlu0 %1090
      %1092 = vrot.lane.b32.xlu0 %v293, 24
      %v1093 = vpop.permute.xlu0 %1092
      %1094 = vrot.lane.b32.xlu0 %v295, 24
      %v1095 = vpop.permute.xlu0 %1094
      %1096 = vrot.lane.b32.xlu0 %v296, 24
      %v1097 = vpop.permute.xlu0 %1096
      %1098 = vrot.lane.b32.xlu0 %v298, 24
      %v1099 = vpop.permute.xlu0 %1098
      %1100 = vrot.lane.b32.xlu0 %v299, 24
      %v1101 = vpop.permute.xlu0 %1100
      %1102 = vrot.lane.b32.xlu0 %v301, 24
      %v1103 = vpop.permute.xlu0 %1102
      %1104 = vrot.lane.b32.xlu0 %v302, 24
      %v1105 = vpop.permute.xlu0 %1104
      %1106 = vrot.lane.b32.xlu0 %v304, 24
      %v1107 = vpop.permute.xlu0 %1106
      %1108 = vrot.lane.b32.xlu0 %v305, 24
      %v1109 = vpop.permute.xlu0 %1108
      %1110 = vrot.lane.b32.xlu0 %v307, 24
      %v1111 = vpop.permute.xlu0 %1110
      %1112 = vrot.lane.b32.xlu0 %v308, 24
      %v1113 = vpop.permute.xlu0 %1112
      %1114 = vrot.lane.b32.xlu0 %v310, 24
      %v1115 = vpop.permute.xlu0 %1114
      %1116 = vrot.lane.b32.xlu0 %v311, 24
      %v1117 = vpop.permute.xlu0 %1116
      %1118 = vrot.lane.b32.xlu0 %v313, 24
      %v1119 = vpop.permute.xlu0 %1118
      %1120 = vrot.lane.b32.xlu0 %v314, 24
      %v1121 = vpop.permute.xlu0 %1120
      %1122 = vrot.lane.b32.xlu0 %v316, 24
      %v1123 = vpop.permute.xlu0 %1122
      %1124 = vrot.lane.b32.xlu0 %v317, 24
      %v1125 = vpop.permute.xlu0 %1124
      %1126 = vrot.lane.b32.xlu0 %v319, 24
      %v1127 = vpop.permute.xlu0 %1126
      %1128 = vrot.lane.b32.xlu0 %v320, 24
      %v1129 = vpop.permute.xlu0 %1128
      %1130 = vrot.lane.b32.xlu0 %v322, 24
      %v1131 = vpop.permute.xlu0 %1130
      %1132 = vrot.lane.b32.xlu0 %v323, 24
      %v1133 = vpop.permute.xlu0 %1132
      %1134 = vrot.lane.b32.xlu0 %v325, 24
      %v1135 = vpop.permute.xlu0 %1134
      %1136 = vrot.lane.b32.xlu0 %v326, 24
      %v1137 = vpop.permute.xlu0 %1136
      %1138 = vrot.lane.b32.xlu0 %v328, 24
      %v1139 = vpop.permute.xlu0 %1138
      %1140 = vrot.lane.b32.xlu0 %v329, 24
      %v1141 = vpop.permute.xlu0 %1140
      %1142 = vrot.lane.b32.xlu0 %v331, 24
      %v1143 = vpop.permute.xlu0 %1142
      %1144 = vrot.lane.b32.xlu0 %v332, 24
      %v1145 = vpop.permute.xlu0 %1144
      %1178 = vrot.lane.b32.xlu0 %v395, 28
      %v1179 = vpop.permute.xlu0 %1178
      %1180 = vrot.lane.b32.xlu0 %v397, 28
      %v1181 = vpop.permute.xlu0 %1180
      %1182 = vrot.lane.b32.xlu0 %v400, 28
      %v1183 = vpop.permute.xlu0 %1182
      %1184 = vrot.lane.b32.xlu0 %v402, 28
      %v1185 = vpop.permute.xlu0 %1184
      %1186 = vrot.lane.b32.xlu0 %v405, 28
      %v1187 = vpop.permute.xlu0 %1186
      %1188 = vrot.lane.b32.xlu0 %v407, 28
      %v1189 = vpop.permute.xlu0 %1188
      %1190 = vrot.lane.b32.xlu0 %v410, 28
      %v1191 = vpop.permute.xlu0 %1190
      %1192 = vrot.lane.b32.xlu0 %v412, 28
      %v1193 = vpop.permute.xlu0 %1192
      %1194 = vrot.lane.b32.xlu0 %v415, 28
      %v1195 = vpop.permute.xlu0 %1194
      %1196 = vrot.lane.b32.xlu0 %v417, 28
      %v1197 = vpop.permute.xlu0 %1196
      %1198 = vrot.lane.b32.xlu0 %v420, 28
      %v1199 = vpop.permute.xlu0 %1198
      %1200 = vrot.lane.b32.xlu0 %v422, 28
      %v1201 = vpop.permute.xlu0 %1200
      %1202 = vrot.lane.b32.xlu0 %v425, 28
      %v1203 = vpop.permute.xlu0 %1202
      %1204 = vrot.lane.b32.xlu0 %v427, 28
      %v1205 = vpop.permute.xlu0 %1204
      %1206 = vrot.lane.b32.xlu0 %v430, 28
      %v1207 = vpop.permute.xlu0 %1206
      %1208 = vrot.lane.b32.xlu0 %v432, 28
      %v1209 = vpop.permute.xlu0 %1208
      %1210 = vrot.lane.b32.xlu0 %v435, 28
      %v1211 = vpop.permute.xlu0 %1210
      %1212 = vrot.lane.b32.xlu0 %v437, 28
      %v1213 = vpop.permute.xlu0 %1212
      %1214 = vrot.lane.b32.xlu0 %v440, 28
      %v1215 = vpop.permute.xlu0 %1214
      %1216 = vrot.lane.b32.xlu0 %v442, 28
      %v1217 = vpop.permute.xlu0 %1216
      %1218 = vrot.lane.b32.xlu0 %v445, 28
      %v1219 = vpop.permute.xlu0 %1218
      %1220 = vrot.lane.b32.xlu0 %v447, 28
      %v1221 = vpop.permute.xlu0 %1220
      %1222 = vrot.lane.b32.xlu0 %v450, 28
      %v1223 = vpop.permute.xlu0 %1222
      %1224 = vrot.lane.b32.xlu0 %v452, 28
      %v1225 = vpop.permute.xlu0 %1224
      %1226 = vrot.lane.b32.xlu0 %v455, 28
      %v1227 = vpop.permute.xlu0 %1226
      %1228 = vrot.lane.b32.xlu0 %v457, 28
      %v1229 = vpop.permute.xlu0 %1228
      %1230 = vrot.lane.b32.xlu0 %v460, 28
      %v1231 = vpop.permute.xlu0 %1230
      %1232 = vrot.lane.b32.xlu0 %v462, 28
      %v1233 = vpop.permute.xlu0 %1232
      %1234 = vrot.lane.b32.xlu0 %v549, 28
      %v1235 = vpop.permute.xlu0 %1234
      %1236 = vrot.lane.b32.xlu0 %v551, 28
      %v1237 = vpop.permute.xlu0 %1236
      %1238 = vrot.lane.b32.xlu0 %v594, 28
      %v1239 = vpop.permute.xlu0 %1238
      %1240 = vrot.lane.b32.xlu0 %v596, 28
      %v1241 = vpop.permute.xlu0 %1240
      %1274 = vrot.lane.b32.xlu0 %v476, 32
      %v1275 = vpop.permute.xlu0 %1274
      %1276 = vrot.lane.b32.xlu0 %v478, 32
      %v1277 = vpop.permute.xlu0 %1276
      %1278 = vrot.lane.b32.xlu0 %v481, 32
      %v1279 = vpop.permute.xlu0 %1278
      %1280 = vrot.lane.b32.xlu0 %v483, 32
      %v1281 = vpop.permute.xlu0 %1280
      %1282 = vrot.lane.b32.xlu0 %v486, 32
      %v1283 = vpop.permute.xlu0 %1282
      %1284 = vrot.lane.b32.xlu0 %v488, 32
      %v1285 = vpop.permute.xlu0 %1284
      %1286 = vrot.lane.b32.xlu0 %v491, 32
      %v1287 = vpop.permute.xlu0 %1286
      %1288 = vrot.lane.b32.xlu0 %v493, 32
      %v1289 = vpop.permute.xlu0 %1288
      %1290 = vrot.lane.b32.xlu0 %v496, 32
      %v1291 = vpop.permute.xlu0 %1290
      %1292 = vrot.lane.b32.xlu0 %v498, 32
      %v1293 = vpop.permute.xlu0 %1292
      %1294 = vrot.lane.b32.xlu0 %v501, 32
      %v1295 = vpop.permute.xlu0 %1294
      %1296 = vrot.lane.b32.xlu0 %v503, 32
      %v1297 = vpop.permute.xlu0 %1296
      %1298 = vrot.lane.b32.xlu0 %v506, 32
      %v1299 = vpop.permute.xlu0 %1298
      %1300 = vrot.lane.b32.xlu0 %v508, 32
      %v1301 = vpop.permute.xlu0 %1300
      %1302 = vrot.lane.b32.xlu0 %v511, 32
      %v1303 = vpop.permute.xlu0 %1302
      %1304 = vrot.lane.b32.xlu0 %v513, 32
      %v1305 = vpop.permute.xlu0 %1304
      %1306 = vrot.lane.b32.xlu0 %v516, 32
      %v1307 = vpop.permute.xlu0 %1306
      %1308 = vrot.lane.b32.xlu0 %v518, 32
      %v1309 = vpop.permute.xlu0 %1308
      %1310 = vrot.lane.b32.xlu0 %v521, 32
      %v1311 = vpop.permute.xlu0 %1310
      %1312 = vrot.lane.b32.xlu0 %v523, 32
      %v1313 = vpop.permute.xlu0 %1312
      %1314 = vrot.lane.b32.xlu0 %v526, 32
      %v1315 = vpop.permute.xlu0 %1314
      %1316 = vrot.lane.b32.xlu0 %v528, 32
      %v1317 = vpop.permute.xlu0 %1316
      %1318 = vrot.lane.b32.xlu0 %v531, 32
      %v1319 = vpop.permute.xlu0 %1318
      %1320 = vrot.lane.b32.xlu0 %v533, 32
      %v1321 = vpop.permute.xlu0 %1320
      %1322 = vrot.lane.b32.xlu0 %v536, 32
      %v1323 = vpop.permute.xlu0 %1322
      %1324 = vrot.lane.b32.xlu0 %v538, 32
      %v1325 = vpop.permute.xlu0 %1324
      %1326 = vrot.lane.b32.xlu0 %v541, 32
      %v1327 = vpop.permute.xlu0 %1326
      %1328 = vrot.lane.b32.xlu0 %v543, 32
      %v1329 = vpop.permute.xlu0 %1328
      %1330 = vrot.lane.b32.xlu0 %v586, 32
      %v1331 = vpop.permute.xlu0 %1330
      %1332 = vrot.lane.b32.xlu0 %v588, 32
      %v1333 = vpop.permute.xlu0 %1332
      %1334 = vrot.lane.b32.xlu0 %v599, 32
      %v1335 = vpop.permute.xlu0 %1334
      %1336 = vrot.lane.b32.xlu0 %v601, 32
      %v1337 = vpop.permute.xlu0 %1336
      %vm1370 = vcmask 31744
      %v1371 = vsel %vm1370, %v280, %v603
      %v1372 = vsel %vm1370, %v281, %v605
      %v1373 = vsel %vm1370, %v283, %v607
      %v1374 = vsel %vm1370, %v284, %v609
      %v1375 = vsel %vm1370, %v286, %v611
      %v1376 = vsel %vm1370, %v287, %v613
      %v1377 = vsel %vm1370, %v289, %v615
      %v1378 = vsel %vm1370, %v290, %v617
      %v1379 = vsel %vm1370, %v292, %v619
      %v1380 = vsel %vm1370, %v293, %v621
      %v1381 = vsel %vm1370, %v295, %v623
      %v1382 = vsel %vm1370, %v296, %v625
      %v1383 = vsel %vm1370, %v298, %v627
      %v1384 = vsel %vm1370, %v299, %v629
      %v1385 = vsel %vm1370, %v301, %v631
      %v1386 = vsel %vm1370, %v302, %v633
      %v1387 = vsel %vm1370, %v304, %v635
      %v1388 = vsel %vm1370, %v305, %v637
      %v1389 = vsel %vm1370, %v307, %v639
      %v1390 = vsel %vm1370, %v308, %v641
      %v1391 = vsel %vm1370, %v310, %v643
      %v1392 = vsel %vm1370, %v311, %v645
      %v1393 = vsel %vm1370, %v313, %v647
      %v1394 = vsel %vm1370, %v314, %v649
      %v1395 = vsel %vm1370, %v316, %v651
      %v1396 = vsel %vm1370, %v317, %v653
      %v1397 = vsel %vm1370, %v319, %v655
      %v1398 = vsel %vm1370, %v320, %v657
      %v1399 = vsel %vm1370, %v322, %v659
      %v1400 = vsel %vm1370, %v323, %v661
      %v1401 = vsel %vm1370, %v325, %v663
      %v1402 = vsel %vm1370, %v326, %v665
      %vm1403 = vcmask 64512
      %v1404 = vsel %vm1403, %v1371, %v699
      %v1405 = vsel %vm1403, %v1372, %v701
      %v1406 = vsel %vm1403, %v1373, %v703
      %v1407 = vsel %vm1403, %v1374, %v705
      %v1408 = vsel %vm1403, %v1375, %v707
      %v1409 = vsel %vm1403, %v1376, %v709
      %v1410 = vsel %vm1403, %v1377, %v711
      %v1411 = vsel %vm1403, %v1378, %v713
      %v1412 = vsel %vm1403, %v1379, %v715
      %v1413 = vsel %vm1403, %v1380, %v717
      %v1414 = vsel %vm1403, %v1381, %v719
      %v1415 = vsel %vm1403, %v1382, %v721
      %v1416 = vsel %vm1403, %v1383, %v723
      %v1417 = vsel %vm1403, %v1384, %v725
      %v1418 = vsel %vm1403, %v1385, %v727
      %v1419 = vsel %vm1403, %v1386, %v729
      %v1420 = vsel %vm1403, %v1387, %v731
      %v1421 = vsel %vm1403, %v1388, %v733
      %v1422 = vsel %vm1403, %v1389, %v735
      %v1423 = vsel %vm1403, %v1390, %v737
      %v1424 = vsel %vm1403, %v1391, %v739
      %v1425 = vsel %vm1403, %v1392, %v741
      %v1426 = vsel %vm1403, %v1393, %v743
      %v1427 = vsel %vm1403, %v1394, %v745
      %v1428 = vsel %vm1403, %v1395, %v747
      %v1429 = vsel %vm1403, %v1396, %v749
      %v1430 = vsel %vm1403, %v1397, %v751
      %v1431 = vsel %vm1403, %v1398, %v753
      %v1432 = vsel %vm1403, %v1399, %v755
      %v1433 = vsel %vm1403, %v1400, %v757
      %v1434 = vsel %vm1403, %v1401, %v759
      %v1435 = vsel %vm1403, %v1402, %v761
      %vm1436 = vcmask 97280
      %v1437 = vsel %vm1436, %v1404, %v795
      %v1438 = vsel %vm1436, %v1405, %v797
      %v1439 = vsel %vm1436, %v1406, %v799
      %v1440 = vsel %vm1436, %v1407, %v801
      %v1441 = vsel %vm1436, %v1408, %v803
      %v1442 = vsel %vm1436, %v1409, %v805
      %v1443 = vsel %vm1436, %v1410, %v807
      %v1444 = vsel %vm1436, %v1411, %v809
      %v1445 = vsel %vm1436, %v1412, %v811
      %v1446 = vsel %vm1436, %v1413, %v813
      %v1447 = vsel %vm1436, %v1414, %v815
      %v1448 = vsel %vm1436, %v1415, %v817
      %v1449 = vsel %vm1436, %v1416, %v819
      %v1450 = vsel %vm1436, %v1417, %v821
      %v1451 = vsel %vm1436, %v1418, %v823
      %v1452 = vsel %vm1436, %v1419, %v825
      %v1453 = vsel %vm1436, %v1420, %v827
      %v1454 = vsel %vm1436, %v1421, %v829
      %v1455 = vsel %vm1436, %v1422, %v831
      %v1456 = vsel %vm1436, %v1423, %v833
      %v1457 = vsel %vm1436, %v1424, %v835
      %v1458 = vsel %vm1436, %v1425, %v837
      %v1459 = vsel %vm1436, %v1426, %v839
      %v1460 = vsel %vm1436, %v1427, %v841
      %v1461 = vsel %vm1436, %v1428, %v843
      %v1462 = vsel %vm1436, %v1429, %v845
      %v1463 = vsel %vm1436, %v1430, %v847
      %v1464 = vsel %vm1436, %v1431, %v849
      %v1465 = vsel %vm1436, %v1432, %v851
      %v1466 = vsel %vm1436, %v1433, %v853
      %v1467 = vsel %vm1436, %v1434, %v855
      %v1468 = vsel %vm1436, %v1435, %v857
      %vm1469 = vcmask 130048
      %v1470 = vsel %vm1469, %v1437, %v891
      %v1471 = vsel %vm1469, %v1438, %v893
      %v1472 = vsel %vm1469, %v1439, %v895
      %v1473 = vsel %vm1469, %v1440, %v897
      %v1474 = vsel %vm1469, %v1441, %v899
      %v1475 = vsel %vm1469, %v1442, %v901
      %v1476 = vsel %vm1469, %v1443, %v903
      %v1477 = vsel %vm1469, %v1444, %v905
      %v1478 = vsel %vm1469, %v1445, %v907
      %v1479 = vsel %vm1469, %v1446, %v909
      %v1480 = vsel %vm1469, %v1447, %v911
      %v1481 = vsel %vm1469, %v1448, %v913
      %v1482 = vsel %vm1469, %v1449, %v915
      %v1483 = vsel %vm1469, %v1450, %v917
      %v1484 = vsel %vm1469, %v1451, %v919
      %v1485 = vsel %vm1469, %v1452, %v921
      %v1486 = vsel %vm1469, %v1453, %v923
      %v1487 = vsel %vm1469, %v1454, %v925
      %v1488 = vsel %vm1469, %v1455, %v927
      %v1489 = vsel %vm1469, %v1456, %v929
      %v1490 = vsel %vm1469, %v1457, %v931
      %v1491 = vsel %vm1469, %v1458, %v933
      %v1492 = vsel %vm1469, %v1459, %v935
      %v1493 = vsel %vm1469, %v1460, %v937
      %v1494 = vsel %vm1469, %v1461, %v939
      %v1495 = vsel %vm1469, %v1462, %v941
      %v1496 = vsel %vm1469, %v1463, %v943
      %v1497 = vsel %vm1469, %v1464, %v945
      %v1498 = vsel %vm1469, %v1465, %v947
      %v1499 = vsel %vm1469, %v1466, %v949
      %v1500 = vsel %vm1469, %v1467, %v951
      %v1501 = vsel %vm1469, %v1468, %v953
      %vm1502 = vcmask 162816
      %v1503 = vsel %vm1502, %v1470, %v987
      %v1504 = vsel %vm1502, %v1471, %v989
      %v1505 = vsel %vm1502, %v1472, %v991
      %v1506 = vsel %vm1502, %v1473, %v993
      %v1507 = vsel %vm1502, %v1474, %v995
      %v1508 = vsel %vm1502, %v1475, %v997
      %v1509 = vsel %vm1502, %v1476, %v999
      %v1510 = vsel %vm1502, %v1477, %v1001
      %v1511 = vsel %vm1502, %v1478, %v1003
      %v1512 = vsel %vm1502, %v1479, %v1005
      %v1513 = vsel %vm1502, %v1480, %v1007
      %v1514 = vsel %vm1502, %v1481, %v1009
      %v1515 = vsel %vm1502, %v1482, %v1011
      %v1516 = vsel %vm1502, %v1483, %v1013
      %v1517 = vsel %vm1502, %v1484, %v1015
      %v1518 = vsel %vm1502, %v1485, %v1017
      %v1519 = vsel %vm1502, %v1486, %v1019
      %v1520 = vsel %vm1502, %v1487, %v1021
      %v1521 = vsel %vm1502, %v1488, %v1023
      %v1522 = vsel %vm1502, %v1489, %v1025
      %v1523 = vsel %vm1502, %v1490, %v1027
      %v1524 = vsel %vm1502, %v1491, %v1029
      %v1525 = vsel %vm1502, %v1492, %v1031
      %v1526 = vsel %vm1502, %v1493, %v1033
      %v1527 = vsel %vm1502, %v1494, %v1035
      %v1528 = vsel %vm1502, %v1495, %v1037
      %v1529 = vsel %vm1502, %v1496, %v1039
      %v1530 = vsel %vm1502, %v1497, %v1041
      %v1531 = vsel %vm1502, %v1498, %v1043
      %v1532 = vsel %vm1502, %v1499, %v1045
      %v1533 = vsel %vm1502, %v1500, %v1047
      %v1534 = vsel %vm1502, %v1501, %v1049
      %vm1535 = vcmask 195584
      %v1536 = vsel %vm1535, %v1503, %v1083
      %v1537 = vsel %vm1535, %v1504, %v1085
      %v1538 = vsel %vm1535, %v1505, %v1087
      %v1539 = vsel %vm1535, %v1506, %v1089
      %v1540 = vsel %vm1535, %v1507, %v1091
      %v1541 = vsel %vm1535, %v1508, %v1093
      %v1542 = vsel %vm1535, %v1509, %v1095
      %v1543 = vsel %vm1535, %v1510, %v1097
      %v1544 = vsel %vm1535, %v1511, %v1099
      %v1545 = vsel %vm1535, %v1512, %v1101
      %v1546 = vsel %vm1535, %v1513, %v1103
      %v1547 = vsel %vm1535, %v1514, %v1105
      %v1548 = vsel %vm1535, %v1515, %v1107
      %v1549 = vsel %vm1535, %v1516, %v1109
      %v1550 = vsel %vm1535, %v1517, %v1111
      %v1551 = vsel %vm1535, %v1518, %v1113
      %v1552 = vsel %vm1535, %v1519, %v1115
      %v1553 = vsel %vm1535, %v1520, %v1117
      %v1554 = vsel %vm1535, %v1521, %v1119
      %v1555 = vsel %vm1535, %v1522, %v1121
      %v1556 = vsel %vm1535, %v1523, %v1123
      %v1557 = vsel %vm1535, %v1524, %v1125
      %v1558 = vsel %vm1535, %v1525, %v1127
      %v1559 = vsel %vm1535, %v1526, %v1129
      %v1560 = vsel %vm1535, %v1527, %v1131
      %v1561 = vsel %vm1535, %v1528, %v1133
      %v1562 = vsel %vm1535, %v1529, %v1135
      %v1563 = vsel %vm1535, %v1530, %v1137
      %v1564 = vsel %vm1535, %v1531, %v1139
      %v1565 = vsel %vm1535, %v1532, %v1141
      %v1566 = vsel %vm1535, %v1533, %v1143
      %v1567 = vsel %vm1535, %v1534, %v1145
      %vm1568 = vcmask 228352
      %v1569 = vsel %vm1568, %v1536, %v1179
      %v1570 = vsel %vm1568, %v1537, %v1181
      %v1571 = vsel %vm1568, %v1538, %v1183
      %v1572 = vsel %vm1568, %v1539, %v1185
      %v1573 = vsel %vm1568, %v1540, %v1187
      %v1574 = vsel %vm1568, %v1541, %v1189
      %v1575 = vsel %vm1568, %v1542, %v1191
      %v1576 = vsel %vm1568, %v1543, %v1193
      %v1577 = vsel %vm1568, %v1544, %v1195
      %v1578 = vsel %vm1568, %v1545, %v1197
      %v1579 = vsel %vm1568, %v1546, %v1199
      %v1580 = vsel %vm1568, %v1547, %v1201
      %v1581 = vsel %vm1568, %v1548, %v1203
      %v1582 = vsel %vm1568, %v1549, %v1205
      %v1583 = vsel %vm1568, %v1550, %v1207
      %v1584 = vsel %vm1568, %v1551, %v1209
      %v1585 = vsel %vm1568, %v1552, %v1211
      %v1586 = vsel %vm1568, %v1553, %v1213
      %v1587 = vsel %vm1568, %v1554, %v1215
      %v1588 = vsel %vm1568, %v1555, %v1217
      %v1589 = vsel %vm1568, %v1556, %v1219
      %v1590 = vsel %vm1568, %v1557, %v1221
      %v1591 = vsel %vm1568, %v1558, %v1223
      %v1592 = vsel %vm1568, %v1559, %v1225
      %v1593 = vsel %vm1568, %v1560, %v1227
      %v1594 = vsel %vm1568, %v1561, %v1229
      %v1595 = vsel %vm1568, %v1562, %v1231
      %v1596 = vsel %vm1568, %v1563, %v1233
      %v1597 = vsel %vm1568, %v1564, %v1235
      %v1598 = vsel %vm1568, %v1565, %v1237
      %v1599 = vsel %vm1568, %v1566, %v1239
      %v1600 = vsel %vm1568, %v1567, %v1241
      %vm1601 = vcmask 261120
      %v1602 = vsel %vm1601, %v1569, %v1275
      %v1603 = vsel %vm1601, %v1570, %v1277
      %v1604 = vsel %vm1601, %v1571, %v1279
      %v1605 = vsel %vm1601, %v1572, %v1281
      %v1606 = vsel %vm1601, %v1573, %v1283
      %v1607 = vsel %vm1601, %v1574, %v1285
      %v1608 = vsel %vm1601, %v1575, %v1287
      %v1609 = vsel %vm1601, %v1576, %v1289
      %v1610 = vsel %vm1601, %v1577, %v1291
      %v1611 = vsel %vm1601, %v1578, %v1293
      %v1612 = vsel %vm1601, %v1579, %v1295
      %v1613 = vsel %vm1601, %v1580, %v1297
      %v1614 = vsel %vm1601, %v1581, %v1299
      %v1615 = vsel %vm1601, %v1582, %v1301
      %v1616 = vsel %vm1601, %v1583, %v1303
      %v1617 = vsel %vm1601, %v1584, %v1305
      %v1618 = vsel %vm1601, %v1585, %v1307
      %v1619 = vsel %vm1601, %v1586, %v1309
      %v1620 = vsel %vm1601, %v1587, %v1311
      %v1621 = vsel %vm1601, %v1588, %v1313
      %v1622 = vsel %vm1601, %v1589, %v1315
      %v1623 = vsel %vm1601, %v1590, %v1317
      %v1624 = vsel %vm1601, %v1591, %v1319
      %v1625 = vsel %vm1601, %v1592, %v1321
      %v1626 = vsel %vm1601, %v1593, %v1323
      %v1627 = vsel %vm1601, %v1594, %v1325
      %v1628 = vsel %vm1601, %v1595, %v1327
      %v1629 = vsel %vm1601, %v1596, %v1329
      %v1630 = vsel %vm1601, %v1597, %v1331
      %v1631 = vsel %vm1601, %v1598, %v1333
      %v1632 = vsel %vm1601, %v1599, %v1335
      %v1633 = vsel %vm1601, %v1600, %v1337
      %v1634 = vpack.c.bf16 %v1603, %v1602
      %v1635 = vpack.c.bf16 %v1605, %v1604
      %v1636 = vpack.c.bf16 %v1607, %v1606
      %v1637 = vpack.c.bf16 %v1609, %v1608
      %v1638 = vpack.c.bf16 %v1611, %v1610
      %v1639 = vpack.c.bf16 %v1613, %v1612
      %v1640 = vpack.c.bf16 %v1615, %v1614
      %v1641 = vpack.c.bf16 %v1617, %v1616
      %v1642 = vpack.c.bf16 %v1619, %v1618
      %v1643 = vpack.c.bf16 %v1621, %v1620
      %v1644 = vpack.c.bf16 %v1623, %v1622
      %v1645 = vpack.c.bf16 %v1625, %v1624
      %v1646 = vpack.c.bf16 %v1627, %v1626
      %v1647 = vpack.c.bf16 %v1629, %v1628
      %v1648 = vpack.c.bf16 %v1631, %v1630
      %v1649 = vpack.c.bf16 %v1633, %v1632
      %v1650 = vld [vmem:[%s1] sm:$0xf]
      %v1651 = vld [vmem:[%s1 + $0x4] sm:$0xf]
      %v1652 = vld [vmem:[%s1 + $0x8] sm:$0xf]
      %v1653 = vld [vmem:[%s1 + $0xc] sm:$0xf]
      %v1654 = vld [vmem:[%s1 + $0x10] sm:$0x3]
      %v1655 = vld [vmem:[%s2] sm:$0x1]
      %v1657 = vlaneseq
      %v1658 = vshrl.u32 %v1657, 7
      %v1659 = vsub.s32 0, %v1658
      %v1660 = vrot.slane %v1655, %v1659
      %v1667 = vunpack.c.l.b16 %v1650
      %v1668 = vunpack.c.l.b16 %v1651
      %v1669 = vunpack.c.l.b16 %v1652
      %v1670 = vunpack.c.l.b16 %v1653
      %v1671 = vunpack.c.l.b16 %v1654
      %v1672 = vpack.c.b16 %v1668, %v1667
      %v1673 = vpack.c.b16 %v1670, %v1669
      %v1674 = vpack.c.b16 %v1671, %v1671
      %vm1677 = vcmask 293888
      %v1679 = vsel %vm1677, %v1634, 0
      %v1682 = vsel %vm1677, %v1635, 0
      %v1685 = vsel %vm1677, %v1636, 0
      %v1688 = vsel %vm1677, %v1637, 0
      %v1691 = vsel %vm1677, %v1638, 0
      %v1694 = vsel %vm1677, %v1639, 0
      %v1697 = vsel %vm1677, %v1640, 0
      %v1700 = vsel %vm1677, %v1641, 0
      %v1703 = vsel %vm1677, %v1642, 0
      %v1706 = vsel %vm1677, %v1643, 0
      %v1709 = vsel %vm1677, %v1644, 0
      %v1712 = vsel %vm1677, %v1645, 0
      %v1715 = vsel %vm1677, %v1646, 0
      %v1718 = vsel %vm1677, %v1647, 0
      %v1721 = vsel %vm1677, %v1648, 0
      %v1724 = vsel %vm1677, %v1649, 0
      %vm1726 = vcmask 1041408
      %v1728 = vsel %vm1726, %v1674, 0
      %1730 = vmatprep.subr.bf16.mxu0 0
      %1731 = vmatpush1.bf16.msra.mxu0 %v1672
      %1732 = vmatprep.subr.bf16.mxu0 0
      %1733 = vmatpush1.bf16.msra.mxu0 %v1673
      %1734 = vmatprep.subr.bf16.mxu0 0
      %1735 = vmatpush1.bf16.msra.mxu0 %v1728
      %1736 = vmatprep.subr.bf16.mxu0 0
      %1737 = vmatpush1.bf16.msra.mxu0 0
      %1738 = vmatprep.subr.bf16.mxu0 0
      %1739 = vmatpush1.bf16.msra.mxu0 0
      %1740 = vmatprep.subr.bf16.mxu0 0
      %1741 = vmatpush1.bf16.msra.mxu0 0
      %1742 = vmatprep.subr.bf16.mxu0 0
      %1743 = vmatpush1.bf16.msra.mxu0 0
      %1744 = vmatprep.subr.bf16.mxu0 0
      %1745 = vmatpush1.bf16.msra.mxu0 0
      %1746 = vmatprep.subr.bf16.mxu0 0
      %1747 = vmatpush1.bf16.msra.mxu0 0
      %1748 = vmatprep.subr.bf16.mxu0 0
      %1749 = vmatpush1.bf16.msra.mxu0 0
      %1750 = vmatprep.subr.bf16.mxu0 0
      %1751 = vmatpush1.bf16.msra.mxu0 0
      %1752 = vmatprep.subr.bf16.mxu0 0
      %1753 = vmatpush1.bf16.msra.mxu0 0
      %1754 = vmatprep.subr.bf16.mxu0 0
      %1755 = vmatpush1.bf16.msra.mxu0 0
      %1756 = vmatprep.subr.bf16.mxu0 0
      %1757 = vmatpush1.bf16.msra.mxu0 0
      %1758 = vmatprep.subr.bf16.mxu0 0
      %1759 = vmatpush1.bf16.msra.mxu0 0
      %1760 = vmatprep.subr.bf16.mxu0 0
      %1761 = vmatpush1.bf16.msra.mxu0 0
      %1762 = vmatprep.mubr.bf16.mxu0 0
      %1763 = vmatmul.mubr.bf16.gmra.mrb[0].mxu0 %v1679
      %v1764 = vpop.f32.mrb[0].mxu0
      %v1765 = vadd.f32 %v1660, %v1764
      %v1766 = vpop.f32.mrb[0].mxu0
      %v1767 = vpop.f32.mrb[0].mxu0
      %v1768 = vadd.f32 %v1660, %v1767
      %v1769 = vpop.f32.mrb[0].mxu0
      %1770 = vmatprep.mubr.bf16.mxu0 0
      %1771 = vmatmul.mubr.bf16.gmra.mrb[0].mxu0 %v1682
      %v1772 = vpop.f32.mrb[0].mxu0
      %v1773 = vadd.f32 %v1660, %v1772
      %v1774 = vpop.f32.mrb[0].mxu0
      %v1775 = vpop.f32.mrb[0].mxu0
      %v1776 = vadd.f32 %v1660, %v1775
      %v1777 = vpop.f32.mrb[0].mxu0
      %1778 = vmatprep.mubr.bf16.mxu0 0
      %1779 = vmatmul.mubr.bf16.gmra.mrb[0].mxu0 %v1685
      %v1780 = vpop.f32.mrb[0].mxu0
      %v1781 = vadd.f32 %v1660, %v1780
      %v1782 = vpop.f32.mrb[0].mxu0
      %v1783 = vpop.f32.mrb[0].mxu0
      %v1784 = vadd.f32 %v1660, %v1783
      %v1785 = vpop.f32.mrb[0].mxu0
      %1786 = vmatprep.mubr.bf16.mxu0 0
      %1787 = vmatmul.mubr.bf16.gmra.mrb[0].mxu0 %v1688
      %v1788 = vpop.f32.mrb[0].mxu0
      %v1789 = vadd.f32 %v1660, %v1788
      %v1790 = vpop.f32.mrb[0].mxu0
      %v1791 = vpop.f32.mrb[0].mxu0
      %v1792 = vadd.f32 %v1660, %v1791
      %v1793 = vpop.f32.mrb[0].mxu0
      %1794 = vmatprep.mubr.bf16.mxu0 0
      %1795 = vmatmul.mubr.bf16.gmra.mrb[0].mxu0 %v1691
      %v1796 = vpop.f32.mrb[0].mxu0
      %v1797 = vadd.f32 %v1660, %v1796
      %v1798 = vpop.f32.mrb[0].mxu0
      %v1799 = vpop.f32.mrb[0].mxu0
      %v1800 = vadd.f32 %v1660, %v1799
      %v1801 = vpop.f32.mrb[0].mxu0
      %1802 = vmatprep.mubr.bf16.mxu0 0
      %1803 = vmatmul.mubr.bf16.gmra.mrb[0].mxu0 %v1694
      %v1804 = vpop.f32.mrb[0].mxu0
      %v1805 = vadd.f32 %v1660, %v1804
      %v1806 = vpop.f32.mrb[0].mxu0
      %v1807 = vpop.f32.mrb[0].mxu0
      %v1808 = vadd.f32 %v1660, %v1807
      %v1809 = vpop.f32.mrb[0].mxu0
      %1810 = vmatprep.mubr.bf16.mxu0 0
      %1811 = vmatmul.mubr.bf16.gmra.mrb[0].mxu0 %v1697
      %v1812 = vpop.f32.mrb[0].mxu0
      %v1813 = vadd.f32 %v1660, %v1812
      %v1814 = vpop.f32.mrb[0].mxu0
      %v1815 = vpop.f32.mrb[0].mxu0
      %v1816 = vadd.f32 %v1660, %v1815
      %v1817 = vpop.f32.mrb[0].mxu0
      %1818 = vmatprep.mubr.bf16.mxu0 0
      %1819 = vmatmul.mubr.bf16.gmra.mrb[0].mxu0 %v1700
      %v1820 = vpop.f32.mrb[0].mxu0
      %v1821 = vadd.f32 %v1660, %v1820
      %v1822 = vpop.f32.mrb[0].mxu0
      %v1823 = vpop.f32.mrb[0].mxu0
      %v1824 = vadd.f32 %v1660, %v1823
      %v1825 = vpop.f32.mrb[0].mxu0
      %1826 = vmatprep.mubr.bf16.mxu0 0
      %1827 = vmatmul.mubr.bf16.gmra.mrb[0].mxu0 %v1703
      %v1828 = vpop.f32.mrb[0].mxu0
      %v1829 = vadd.f32 %v1660, %v1828
      %v1830 = vpop.f32.mrb[0].mxu0
      %v1831 = vpop.f32.mrb[0].mxu0
      %v1832 = vadd.f32 %v1660, %v1831
      %v1833 = vpop.f32.mrb[0].mxu0
      %1834 = vmatprep.mubr.bf16.mxu0 0
      %1835 = vmatmul.mubr.bf16.gmra.mrb[0].mxu0 %v1706
      %v1836 = vpop.f32.mrb[0].mxu0
      %v1837 = vadd.f32 %v1660, %v1836
      %v1838 = vpop.f32.mrb[0].mxu0
      %v1839 = vpop.f32.mrb[0].mxu0
      %v1840 = vadd.f32 %v1660, %v1839
      %v1841 = vpop.f32.mrb[0].mxu0
      %1842 = vmatprep.mubr.bf16.mxu0 0
      %1843 = vmatmul.mubr.bf16.gmra.mrb[0].mxu0 %v1709
      %v1844 = vpop.f32.mrb[0].mxu0
      %v1845 = vadd.f32 %v1660, %v1844
      %v1846 = vpop.f32.mrb[0].mxu0
      %v1847 = vpop.f32.mrb[0].mxu0
      %v1848 = vadd.f32 %v1660, %v1847
      %v1849 = vpop.f32.mrb[0].mxu0
      %1850 = vmatprep.mubr.bf16.mxu0 0
      %1851 = vmatmul.mubr.bf16.gmra.mrb[0].mxu0 %v1712
      %v1852 = vpop.f32.mrb[0].mxu0
      %v1853 = vadd.f32 %v1660, %v1852
      %v1854 = vpop.f32.mrb[0].mxu0
      %v1855 = vpop.f32.mrb[0].mxu0
      %v1856 = vadd.f32 %v1660, %v1855
      %v1857 = vpop.f32.mrb[0].mxu0
      %1858 = vmatprep.mubr.bf16.mxu0 0
      %1859 = vmatmul.mubr.bf16.gmra.mrb[0].mxu0 %v1715
      %v1860 = vpop.f32.mrb[0].mxu0
      %v1861 = vadd.f32 %v1660, %v1860
      %v1862 = vpop.f32.mrb[0].mxu0
      %v1863 = vpop.f32.mrb[0].mxu0
      %v1864 = vadd.f32 %v1660, %v1863
      %v1865 = vpop.f32.mrb[0].mxu0
      %1866 = vmatprep.mubr.bf16.mxu0 0
      %1867 = vmatmul.mubr.bf16.gmra.mrb[0].mxu0 %v1718
      %v1868 = vpop.f32.mrb[0].mxu0
      %v1869 = vadd.f32 %v1660, %v1868
      %v1870 = vpop.f32.mrb[0].mxu0
      %v1871 = vpop.f32.mrb[0].mxu0
      %v1872 = vadd.f32 %v1660, %v1871
      %v1873 = vpop.f32.mrb[0].mxu0
      %1874 = vmatprep.mubr.bf16.mxu0 0
      %1875 = vmatmul.mubr.bf16.gmra.mrb[0].mxu0 %v1721
      %v1876 = vpop.f32.mrb[0].mxu0
      %v1877 = vadd.f32 %v1660, %v1876
      %v1878 = vpop.f32.mrb[0].mxu0
      %v1879 = vpop.f32.mrb[0].mxu0
      %v1880 = vadd.f32 %v1660, %v1879
      %v1881 = vpop.f32.mrb[0].mxu0
      %1882 = vmatprep.mubr.bf16.mxu0 0
      %1883 = vmatmul.mubr.bf16.gmra.mrb[0].mxu0 %v1724
      %v1884 = vpop.f32.mrb[0].mxu0
      %v1885 = vadd.f32 %v1660, %v1884
      %v1886 = vpop.f32.mrb[0].mxu0
      %v1887 = vpop.f32.mrb[0].mxu0
      %v1888 = vadd.f32 %v1660, %v1887
      %v1889 = vpop.f32.mrb[0].mxu0
      %1890 = vdwg.mxu0
      %v1891 = vmax.f32 %v1765, 0.0
      %v1892 = vmax.f32 %v1768, 0.0
      %v1893 = vmax.f32 %v1773, 0.0
      %v1894 = vmax.f32 %v1776, 0.0
      %v1895 = vmax.f32 %v1781, 0.0
      %v1896 = vmax.f32 %v1784, 0.0
      %v1897 = vmax.f32 %v1789, 0.0
      %v1898 = vmax.f32 %v1792, 0.0
      %v1899 = vmax.f32 %v1797, 0.0
      %v1900 = vmax.f32 %v1800, 0.0
      %v1901 = vmax.f32 %v1805, 0.0
      %v1902 = vmax.f32 %v1808, 0.0
      %v1903 = vmax.f32 %v1813, 0.0
      %v1904 = vmax.f32 %v1816, 0.0
      %v1905 = vmax.f32 %v1821, 0.0
      %v1906 = vmax.f32 %v1824, 0.0
      %v1907 = vmax.f32 %v1829, 0.0
      %v1908 = vmax.f32 %v1832, 0.0
      %v1909 = vmax.f32 %v1837, 0.0
      %v1910 = vmax.f32 %v1840, 0.0
      %v1911 = vmax.f32 %v1845, 0.0
      %v1912 = vmax.f32 %v1848, 0.0
      %v1913 = vmax.f32 %v1853, 0.0
      %v1914 = vmax.f32 %v1856, 0.0
      %v1915 = vmax.f32 %v1861, 0.0
      %v1916 = vmax.f32 %v1864, 0.0
      %v1917 = vmax.f32 %v1869, 0.0
      %v1918 = vmax.f32 %v1872, 0.0
      %v1919 = vmax.f32 %v1877, 0.0
      %v1920 = vmax.f32 %v1880, 0.0
      %v1921 = vmax.f32 %v1885, 0.0
      %v1922 = vmax.f32 %v1888, 0.0
      %1923 = vst.msk [vmem:[#allocation2] sm:$0xff] %vm1403, 0.0
      %1924 = vst.msk [vmem:[#allocation2 + $0x8] sm:$0xff] %vm1403, 0.0
      %vm1925 = vcmask 58368
      %1926 = vst.msk [vmem:[#allocation2 + $0x10] sm:$0x3] %vm1925, 0.0
      %s1927 = scalar_lea.vmem [#allocation2], 408
      %1928 = vst.msk [vmem:[%s1927] sm:$0xff] %vm1403, 0.0
      %1929 = vst.msk [vmem:[%s1927 + $0x8] sm:$0xff] %vm1403, 0.0
      %1930 = vst.msk [vmem:[%s1927 + $0x10] sm:$0x3] %vm1925, 0.0
      %s1931 = scalar_lea.vmem [#allocation2], 24
      %vm1932 = vcmask 57344
      %1933 = vst.msk [vmem:[%s1931] sm:$0x1] %vm1932, 0.0
      %1934 = vst.msk [vmem:[%s1931 + $0x18] sm:$0x1] %vm1932, 0.0
      %1935 = vst.msk [vmem:[%s1931 + $0x30] sm:$0x1] %vm1932, 0.0
      %1936 = vst.msk [vmem:[%s1931 + $0x48] sm:$0x1] %vm1932, 0.0
      %1937 = vst.msk [vmem:[%s1931 + $0x60] sm:$0x1] %vm1932, 0.0
      %1938 = vst.msk [vmem:[%s1931 + $0x78] sm:$0x1] %vm1932, 0.0
      %1939 = vst.msk [vmem:[%s1931 + $0x90] sm:$0x1] %vm1932, 0.0
      %1940 = vst.msk [vmem:[%s1931 + $0xa8] sm:$0x1] %vm1932, 0.0
      %1941 = vst.msk [vmem:[%s1931 + $0xc0] sm:$0x1] %vm1932, 0.0
      %1942 = vst.msk [vmem:[%s1931 + $0xd8] sm:$0x1] %vm1932, 0.0
      %1943 = vst.msk [vmem:[%s1931 + $0xf0] sm:$0x1] %vm1932, 0.0
      %1944 = vst.msk [vmem:[%s1931 + $0x108] sm:$0x1] %vm1932, 0.0
      %1945 = vst.msk [vmem:[%s1931 + $0x120] sm:$0x1] %vm1932, 0.0
      %1946 = vst.msk [vmem:[%s1931 + $0x138] sm:$0x1] %vm1932, 0.0
      %1947 = vst.msk [vmem:[%s1931 + $0x150] sm:$0x1] %vm1932, 0.0
      %1948 = vst.msk [vmem:[%s1931 + $0x168] sm:$0x1] %vm1932, 0.0
      %1949 = vst.msk [vmem:[%s1931 + $0x11] sm:$0x1] %vm1932, 0.0
      %1950 = vst.msk [vmem:[%s1931 + $0x29] sm:$0x1] %vm1932, 0.0
      %1951 = vst.msk [vmem:[%s1931 + $0x41] sm:$0x1] %vm1932, 0.0
      %1952 = vst.msk [vmem:[%s1931 + $0x59] sm:$0x1] %vm1932, 0.0
      %1953 = vst.msk [vmem:[%s1931 + $0x71] sm:$0x1] %vm1932, 0.0
      %1954 = vst.msk [vmem:[%s1931 + $0x89] sm:$0x1] %vm1932, 0.0
      %1955 = vst.msk [vmem:[%s1931 + $0xa1] sm:$0x1] %vm1932, 0.0
      %1956 = vst.msk [vmem:[%s1931 + $0xb9] sm:$0x1] %vm1932, 0.0
      %1957 = vst.msk [vmem:[%s1931 + $0xd1] sm:$0x1] %vm1932, 0.0
      %1958 = vst.msk [vmem:[%s1931 + $0xe9] sm:$0x1] %vm1932, 0.0
      %1959 = vst.msk [vmem:[%s1931 + $0x101] sm:$0x1] %vm1932, 0.0
      %1960 = vst.msk [vmem:[%s1931 + $0x119] sm:$0x1] %vm1932, 0.0
      %1961 = vst.msk [vmem:[%s1931 + $0x131] sm:$0x1] %vm1932, 0.0
      %1962 = vst.msk [vmem:[%s1931 + $0x149] sm:$0x1] %vm1932, 0.0
      %1963 = vst.msk [vmem:[%s1931 + $0x161] sm:$0x1] %vm1932, 0.0
      %1964 = vst.msk [vmem:[%s1931 + $0x179] sm:$0x1] %vm1932, 0.0
      %1965 = vst.msk [vmem:[%s1931 + $0x1] sm:$0xff] %vm1403, %v1891
      %1966 = vst.msk [vmem:[%s1931 + $0x9] sm:$0xff] %vm1403, %v1892
      %1967 = vst.msk [vmem:[%s1931 + $0x19] sm:$0xff] %vm1403, %v1893
      %1968 = vst.msk [vmem:[%s1931 + $0x21] sm:$0xff] %vm1403, %v1894
      %1969 = vst.msk [vmem:[%s1931 + $0x31] sm:$0xff] %vm1403, %v1895
      %1970 = vst.msk [vmem:[%s1931 + $0x39] sm:$0xff] %vm1403, %v1896
      %1971 = vst.msk [vmem:[%s1931 + $0x49] sm:$0xff] %vm1403, %v1897
      %1972 = vst.msk [vmem:[%s1931 + $0x51] sm:$0xff] %vm1403, %v1898
      %1973 = vst.msk [vmem:[%s1931 + $0x61] sm:$0xff] %vm1403, %v1899
      %1974 = vst.msk [vmem:[%s1931 + $0x69] sm:$0xff] %vm1403, %v1900
      %1975 = vst.msk [vmem:[%s1931 + $0x79] sm:$0xff] %vm1403, %v1901
      %1976 = vst.msk [vmem:[%s1931 + $0x81] sm:$0xff] %vm1403, %v1902
      %1977 = vst.msk [vmem:[%s1931 + $0x91] sm:$0xff] %vm1403, %v1903
      %1978 = vst.msk [vmem:[%s1931 + $0x99] sm:$0xff] %vm1403, %v1904
      %1979 = vst.msk [vmem:[%s1931 + $0xa9] sm:$0xff] %vm1403, %v1905
      %1980 = vst.msk [vmem:[%s1931 + $0xb1] sm:$0xff] %vm1403, %v1906
      %1981 = vst.msk [vmem:[%s1931 + $0xc1] sm:$0xff] %vm1403, %v1907
      %1982 = vst.msk [vmem:[%s1931 + $0xc9] sm:$0xff] %vm1403, %v1908
      %1983 = vst.msk [vmem:[%s1931 + $0xd9] sm:$0xff] %vm1403, %v1909
      %1984 = vst.msk [vmem:[%s1931 + $0xe1] sm:$0xff] %vm1403, %v1910
      %1985 = vst.msk [vmem:[%s1931 + $0xf1] sm:$0xff] %vm1403, %v1911
      %1986 = vst.msk [vmem:[%s1931 + $0xf9] sm:$0xff] %vm1403, %v1912
      %1987 = vst.msk [vmem:[%s1931 + $0x109] sm:$0xff] %vm1403, %v1913
      %1988 = vst.msk [vmem:[%s1931 + $0x111] sm:$0xff] %vm1403, %v1914
      %1989 = vst.msk [vmem:[%s1931 + $0x121] sm:$0xff] %vm1403, %v1915
      %1990 = vst.msk [vmem:[%s1931 + $0x129] sm:$0xff] %vm1403, %v1916
      %1991 = vst.msk [vmem:[%s1931 + $0x139] sm:$0xff] %vm1403, %v1917
      %1992 = vst.msk [vmem:[%s1931 + $0x141] sm:$0xff] %vm1403, %v1918
      %1993 = vst.msk [vmem:[%s1931 + $0x151] sm:$0xff] %vm1403, %v1919
      %1994 = vst.msk [vmem:[%s1931 + $0x159] sm:$0xff] %vm1403, %v1920
      %1995 = vst.msk [vmem:[%s1931 + $0x169] sm:$0xff] %vm1403, %v1921
      %1996 = vst.msk [vmem:[%s1931 + $0x171] sm:$0xff] %vm1403, %v1922
      %v1997 = vld [vmem:[#allocation2] sm:$0xff]
      %v1998 = vld [vmem:[#allocation2 + $0x8] sm:$0xff]
      %v1999 = vld [vmem:[#allocation2 + $0x18] sm:$0xff]
      %v2000 = vld [vmem:[#allocation2 + $0x20] sm:$0xff]
      %v2001 = vld [vmem:[#allocation2 + $0x30] sm:$0xff]
      %v2002 = vld [vmem:[#allocation2 + $0x38] sm:$0xff]
      %v2003 = vld [vmem:[#allocation2 + $0x48] sm:$0xff]
      %v2004 = vld [vmem:[#allocation2 + $0x50] sm:$0xff]
      %v2005 = vld [vmem:[#allocation2 + $0x60] sm:$0xff]
      %v2006 = vld [vmem:[#allocation2 + $0x68] sm:$0xff]
      %v2007 = vld [vmem:[#allocation2 + $0x78] sm:$0xff]
      %v2008 = vld [vmem:[#allocation2 + $0x80] sm:$0xff]
      %v2009 = vld [vmem:[#allocation2 + $0x90] sm:$0xff]
      %v2010 = vld [vmem:[#allocation2 + $0x98] sm:$0xff]
      %v2011 = vld [vmem:[#allocation2 + $0xa8] sm:$0xff]
      %v2012 = vld [vmem:[#allocation2 + $0xb0] sm:$0xff]
      %v2013 = vld [vmem:[#allocation2 + $0xc0] sm:$0xff]
      %v2014 = vld [vmem:[#allocation2 + $0xc8] sm:$0xff]
      %v2015 = vld [vmem:[#allocation2 + $0xd8] sm:$0xff]
      %v2016 = vld [vmem:[#allocation2 + $0xe0] sm:$0xff]
      %v2017 = vld [vmem:[#allocation2 + $0xf0] sm:$0xff]
      %v2018 = vld [vmem:[#allocation2 + $0xf8] sm:$0xff]
      %v2019 = vld [vmem:[#allocation2 + $0x108] sm:$0xff]
      %v2020 = vld [vmem:[#allocation2 + $0x110] sm:$0xff]
      %v2021 = vld [vmem:[#allocation2 + $0x120] sm:$0xff]
      %v2022 = vld [vmem:[#allocation2 + $0x128] sm:$0xff]
      %v2023 = vld [vmem:[#allocation2 + $0x138] sm:$0xff]
      %v2024 = vld [vmem:[#allocation2 + $0x140] sm:$0xff]
      %v2025 = vld [vmem:[#allocation2 + $0x150] sm:$0xff]
      %v2026 = vld [vmem:[#allocation2 + $0x158] sm:$0xff]
      %v2027 = vld [vmem:[#allocation2 + $0x168] sm:$0xff]
      %v2028 = vld [vmem:[#allocation2 + $0x170] sm:$0xff]
      %v2029 = vld [vmem:[#allocation2 + $0x1] sm:$0xff]
      %v2030 = vld [vmem:[#allocation2 + $0x9] sm:$0xff]
      %v2031 = vld [vmem:[#allocation2 + $0x19] sm:$0xff]
      %v2032 = vld [vmem:[#allocation2 + $0x21] sm:$0xff]
      %v2033 = vld [vmem:[#allocation2 + $0x31] sm:$0xff]
      %v2034 = vld [vmem:[#allocation2 + $0x39] sm:$0xff]
      %v2035 = vld [vmem:[#allocation2 + $0x49] sm:$0xff]
      %v2036 = vld [vmem:[#allocation2 + $0x51] sm:$0xff]
      %v2037 = vld [vmem:[#allocation2 + $0x61] sm:$0xff]
      %v2038 = vld [vmem:[#allocation2 + $0x69] sm:$0xff]
      %v2039 = vld [vmem:[#allocation2 + $0x79] sm:$0xff]
      %v2040 = vld [vmem:[#allocation2 + $0x81] sm:$0xff]
      %v2041 = vld [vmem:[#allocation2 + $0x91] sm:$0xff]
      %v2042 = vld [vmem:[#allocation2 + $0x99] sm:$0xff]
      %v2043 = vld [vmem:[#allocation2 + $0xa9] sm:$0xff]
      %v2044 = vld [vmem:[#allocation2 + $0xb1] sm:$0xff]
      %v2045 = vld [vmem:[#allocation2 + $0xc1] sm:$0xff]
      %v2046 = vld [vmem:[#allocation2 + $0xc9] sm:$0xff]
      %v2047 = vld [vmem:[#allocation2 + $0xd9] sm:$0xff]
      %v2048 = vld [vmem:[#allocation2 + $0xe1] sm:$0xff]
      %v2049 = vld [vmem:[#allocation2 + $0xf1] sm:$0xff]
      %v2050 = vld [vmem:[#allocation2 + $0xf9] sm:$0xff]
      %v2051 = vld [vmem:[#allocation2 + $0x109] sm:$0xff]
      %v2052 = vld [vmem:[#allocation2 + $0x111] sm:$0xff]
      %v2053 = vld [vmem:[#allocation2 + $0x121] sm:$0xff]
      %v2054 = vld [vmem:[#allocation2 + $0x129] sm:$0xff]
      %v2055 = vld [vmem:[#allocation2 + $0x139] sm:$0xff]
      %v2056 = vld [vmem:[#allocation2 + $0x141] sm:$0xff]
      %v2057 = vld [vmem:[#allocation2 + $0x151] sm:$0xff]
      %v2058 = vld [vmem:[#allocation2 + $0x159] sm:$0xff]
      %v2059 = vld [vmem:[#allocation2 + $0x169] sm:$0xff]
      %v2060 = vld [vmem:[#allocation2 + $0x171] sm:$0xff]
      %v2061 = vld [vmem:[#allocation2 + $0x2] sm:$0xff]
      %v2062 = vld [vmem:[#allocation2 + $0xa] sm:$0xff]
      %v2063 = vld [vmem:[#allocation2 + $0x1a] sm:$0xff]
      %v2064 = vld [vmem:[#allocation2 + $0x22] sm:$0xff]
      %v2065 = vld [vmem:[#allocation2 + $0x32] sm:$0xff]
      %v2066 = vld [vmem:[#allocation2 + $0x3a] sm:$0xff]
      %v2067 = vld [vmem:[#allocation2 + $0x4a] sm:$0xff]
      %v2068 = vld [vmem:[#allocation2 + $0x52] sm:$0xff]
      %v2069 = vld [vmem:[#allocation2 + $0x62] sm:$0xff]
      %v2070 = vld [vmem:[#allocation2 + $0x6a] sm:$0xff]
      %v2071 = vld [vmem:[#allocation2 + $0x7a] sm:$0xff]
      %v2072 = vld [vmem:[#allocation2 + $0x82] sm:$0xff]
      %v2073 = vld [vmem:[#allocation2 + $0x92] sm:$0xff]
      %v2074 = vld [vmem:[#allocation2 + $0x9a] sm:$0xff]
      %v2075 = vld [vmem:[#allocation2 + $0xaa] sm:$0xff]
      %v2076 = vld [vmem:[#allocation2 + $0xb2] sm:$0xff]
      %v2077 = vld [vmem:[#allocation2 + $0xc2] sm:$0xff]
      %v2078 = vld [vmem:[#allocation2 + $0xca] sm:$0xff]
      %v2079 = vld [vmem:[#allocation2 + $0xda] sm:$0xff]
      %v2080 = vld [vmem:[#allocation2 + $0xe2] sm:$0xff]
      %v2081 = vld [vmem:[#allocation2 + $0xf2] sm:$0xff]
      %v2082 = vld [vmem:[#allocation2 + $0xfa] sm:$0xff]
      %v2083 = vld [vmem:[#allocation2 + $0x10a] sm:$0xff]
      %v2084 = vld [vmem:[#allocation2 + $0x112] sm:$0xff]
      %v2085 = vld [vmem:[#allocation2 + $0x122] sm:$0xff]
      %v2086 = vld [vmem:[#allocation2 + $0x12a] sm:$0xff]
      %v2087 = vld [vmem:[#allocation2 + $0x13a] sm:$0xff]
      %v2088 = vld [vmem:[#allocation2 + $0x142] sm:$0xff]
      %v2089 = vld [vmem:[#allocation2 + $0x152] sm:$0xff]
      %v2090 = vld [vmem:[#allocation2 + $0x15a] sm:$0xff]
      %v2091 = vld [vmem:[#allocation2 + $0x16a] sm:$0xff]
      %v2092 = vld [vmem:[#allocation2 + $0x172] sm:$0xff]
      %v2093 = vld [vmem:[%s1931] sm:$0xff]
      %v2094 = vld [vmem:[%s1931 + $0x8] sm:$0xff]
      %v2095 = vld [vmem:[%s1931 + $0x18] sm:$0xff]
      %v2096 = vld [vmem:[%s1931 + $0x20] sm:$0xff]
      %v2097 = vld [vmem:[%s1931 + $0x30] sm:$0xff]
      %v2098 = vld [vmem:[%s1931 + $0x38] sm:$0xff]
      %v2099 = vld [vmem:[%s1931 + $0x48] sm:$0xff]
      %v2100 = vld [vmem:[%s1931 + $0x50] sm:$0xff]
      %v2101 = vld [vmem:[%s1931 + $0x60] sm:$0xff]
      %v2102 = vld [vmem:[%s1931 + $0x68] sm:$0xff]
      %v2103 = vld [vmem:[%s1931 + $0x78] sm:$0xff]
      %v2104 = vld [vmem:[%s1931 + $0x80] sm:$0xff]
      %v2105 = vld [vmem:[%s1931 + $0x90] sm:$0xff]
      %v2106 = vld [vmem:[%s1931 + $0x98] sm:$0xff]
      %v2107 = vld [vmem:[%s1931 + $0xa8] sm:$0xff]
      %v2108 = vld [vmem:[%s1931 + $0xb0] sm:$0xff]
      %v2109 = vld [vmem:[%s1931 + $0xc0] sm:$0xff]
      %v2110 = vld [vmem:[%s1931 + $0xc8] sm:$0xff]
      %v2111 = vld [vmem:[%s1931 + $0xd8] sm:$0xff]
      %v2112 = vld [vmem:[%s1931 + $0xe0] sm:$0xff]
      %v2113 = vld [vmem:[%s1931 + $0xf0] sm:$0xff]
      %v2114 = vld [vmem:[%s1931 + $0xf8] sm:$0xff]
      %v2115 = vld [vmem:[%s1931 + $0x108] sm:$0xff]
      %v2116 = vld [vmem:[%s1931 + $0x110] sm:$0xff]
      %v2117 = vld [vmem:[%s1931 + $0x120] sm:$0xff]
      %v2118 = vld [vmem:[%s1931 + $0x128] sm:$0xff]
      %v2119 = vld [vmem:[%s1931 + $0x138] sm:$0xff]
      %v2120 = vld [vmem:[%s1931 + $0x140] sm:$0xff]
      %v2121 = vld [vmem:[%s1931 + $0x150] sm:$0xff]
      %v2122 = vld [vmem:[%s1931 + $0x158] sm:$0xff]
      %v2123 = vld [vmem:[%s1931 + $0x168] sm:$0xff]
      %v2124 = vld [vmem:[%s1931 + $0x170] sm:$0xff]
      %v2125 = vld [vmem:[%s1931 + $0x1] sm:$0xff]
      %v2126 = vld [vmem:[%s1931 + $0x9] sm:$0xff]
      %v2127 = vld [vmem:[%s1931 + $0x19] sm:$0xff]
      %v2128 = vld [vmem:[%s1931 + $0x21] sm:$0xff]
      %v2129 = vld [vmem:[%s1931 + $0x31] sm:$0xff]
      %v2130 = vld [vmem:[%s1931 + $0x39] sm:$0xff]
      %v2131 = vld [vmem:[%s1931 + $0x49] sm:$0xff]
      %v2132 = vld [vmem:[%s1931 + $0x51] sm:$0xff]
      %v2133 = vld [vmem:[%s1931 + $0x61] sm:$0xff]
      %v2134 = vld [vmem:[%s1931 + $0x69] sm:$0xff]
      %v2135 = vld [vmem:[%s1931 + $0x79] sm:$0xff]
      %v2136 = vld [vmem:[%s1931 + $0x81] sm:$0xff]
      %v2137 = vld [vmem:[%s1931 + $0x91] sm:$0xff]
      %v2138 = vld [vmem:[%s1931 + $0x99] sm:$0xff]
      %v2139 = vld [vmem:[%s1931 + $0xa9] sm:$0xff]
      %v2140 = vld [vmem:[%s1931 + $0xb1] sm:$0xff]
      %v2141 = vld [vmem:[%s1931 + $0xc1] sm:$0xff]
      %v2142 = vld [vmem:[%s1931 + $0xc9] sm:$0xff]
      %v2143 = vld [vmem:[%s1931 + $0xd9] sm:$0xff]
      %v2144 = vld [vmem:[%s1931 + $0xe1] sm:$0xff]
      %v2145 = vld [vmem:[%s1931 + $0xf1] sm:$0xff]
      %v2146 = vld [vmem:[%s1931 + $0xf9] sm:$0xff]
      %v2147 = vld [vmem:[%s1931 + $0x109] sm:$0xff]
      %v2148 = vld [vmem:[%s1931 + $0x111] sm:$0xff]
      %v2149 = vld [vmem:[%s1931 + $0x121] sm:$0xff]
      %v2150 = vld [vmem:[%s1931 + $0x129] sm:$0xff]
      %v2151 = vld [vmem:[%s1931 + $0x139] sm:$0xff]
      %v2152 = vld [vmem:[%s1931 + $0x141] sm:$0xff]
      %v2153 = vld [vmem:[%s1931 + $0x151] sm:$0xff]
      %v2154 = vld [vmem:[%s1931 + $0x159] sm:$0xff]
      %v2155 = vld [vmem:[%s1931 + $0x169] sm:$0xff]
      %v2156 = vld [vmem:[%s1931 + $0x171] sm:$0xff]
      %v2157 = vld [vmem:[%s1931 + $0x2] sm:$0xff]
      %v2158 = vld [vmem:[%s1931 + $0xa] sm:$0xff]
      %v2159 = vld [vmem:[%s1931 + $0x1a] sm:$0xff]
      %v2160 = vld [vmem:[%s1931 + $0x22] sm:$0xff]
      %v2161 = vld [vmem:[%s1931 + $0x32] sm:$0xff]
      %v2162 = vld [vmem:[%s1931 + $0x3a] sm:$0xff]
      %v2163 = vld [vmem:[%s1931 + $0x4a] sm:$0xff]
      %v2164 = vld [vmem:[%s1931 + $0x52] sm:$0xff]
      %v2165 = vld [vmem:[%s1931 + $0x62] sm:$0xff]
      %v2166 = vld [vmem:[%s1931 + $0x6a] sm:$0xff]
      %v2167 = vld [vmem:[%s1931 + $0x7a] sm:$0xff]
      %v2168 = vld [vmem:[%s1931 + $0x82] sm:$0xff]
      %v2169 = vld [vmem:[%s1931 + $0x92] sm:$0xff]
      %v2170 = vld [vmem:[%s1931 + $0x9a] sm:$0xff]
      %v2171 = vld [vmem:[%s1931 + $0xaa] sm:$0xff]
      %v2172 = vld [vmem:[%s1931 + $0xb2] sm:$0xff]
      %v2173 = vld [vmem:[%s1931 + $0xc2] sm:$0xff]
      %v2174 = vld [vmem:[%s1931 + $0xca] sm:$0xff]
      %v2175 = vld [vmem:[%s1931 + $0xda] sm:$0xff]
      %v2176 = vld [vmem:[%s1931 + $0xe2] sm:$0xff]
      %v2177 = vld [vmem:[%s1931 + $0xf2] sm:$0xff]
      %v2178 = vld [vmem:[%s1931 + $0xfa] sm:$0xff]
      %v2179 = vld [vmem:[%s1931 + $0x10a] sm:$0xff]
      %v2180 = vld [vmem:[%s1931 + $0x112] sm:$0xff]
      %v2181 = vld [vmem:[%s1931 + $0x122] sm:$0xff]
      %v2182 = vld [vmem:[%s1931 + $0x12a] sm:$0xff]
      %v2183 = vld [vmem:[%s1931 + $0x13a] sm:$0xff]
      %v2184 = vld [vmem:[%s1931 + $0x142] sm:$0xff]
      %v2185 = vld [vmem:[%s1931 + $0x152] sm:$0xff]
      %v2186 = vld [vmem:[%s1931 + $0x15a] sm:$0xff]
      %v2187 = vld [vmem:[%s1931 + $0x16a] sm:$0xff]
      %v2188 = vld [vmem:[%s1931 + $0x172] sm:$0xff]
      %s2189 = scalar_lea.vmem [#allocation2], 48
      %v2190 = vld [vmem:[%s2189] sm:$0xff]
      %v2191 = vld [vmem:[%s2189 + $0x8] sm:$0xff]
      %v2192 = vld [vmem:[%s2189 + $0x18] sm:$0xff]
      %v2193 = vld [vmem:[%s2189 + $0x20] sm:$0xff]
      %v2194 = vld [vmem:[%s2189 + $0x30] sm:$0xff]
      %v2195 = vld [vmem:[%s2189 + $0x38] sm:$0xff]
      %v2196 = vld [vmem:[%s2189 + $0x48] sm:$0xff]
      %v2197 = vld [vmem:[%s2189 + $0x50] sm:$0xff]
      %v2198 = vld [vmem:[%s2189 + $0x60] sm:$0xff]
      %v2199 = vld [vmem:[%s2189 + $0x68] sm:$0xff]
      %v2200 = vld [vmem:[%s2189 + $0x78] sm:$0xff]
      %v2201 = vld [vmem:[%s2189 + $0x80] sm:$0xff]
      %v2202 = vld [vmem:[%s2189 + $0x90] sm:$0xff]
      %v2203 = vld [vmem:[%s2189 + $0x98] sm:$0xff]
      %v2204 = vld [vmem:[%s2189 + $0xa8] sm:$0xff]
      %v2205 = vld [vmem:[%s2189 + $0xb0] sm:$0xff]
      %v2206 = vld [vmem:[%s2189 + $0xc0] sm:$0xff]
      %v2207 = vld [vmem:[%s2189 + $0xc8] sm:$0xff]
      %v2208 = vld [vmem:[%s2189 + $0xd8] sm:$0xff]
      %v2209 = vld [vmem:[%s2189 + $0xe0] sm:$0xff]
      %v2210 = vld [vmem:[%s2189 + $0xf0] sm:$0xff]
      %v2211 = vld [vmem:[%s2189 + $0xf8] sm:$0xff]
      %v2212 = vld [vmem:[%s2189 + $0x108] sm:$0xff]
      %v2213 = vld [vmem:[%s2189 + $0x110] sm:$0xff]
      %v2214 = vld [vmem:[%s2189 + $0x120] sm:$0xff]
      %v2215 = vld [vmem:[%s2189 + $0x128] sm:$0xff]
      %v2216 = vld [vmem:[%s2189 + $0x138] sm:$0xff]
      %v2217 = vld [vmem:[%s2189 + $0x140] sm:$0xff]
      %v2218 = vld [vmem:[%s2189 + $0x150] sm:$0xff]
      %v2219 = vld [vmem:[%s2189 + $0x158] sm:$0xff]
      %v2220 = vld [vmem:[%s2189 + $0x168] sm:$0xff]
      %v2221 = vld [vmem:[%s2189 + $0x170] sm:$0xff]
      %v2222 = vld [vmem:[%s2189 + $0x1] sm:$0xff]
      %v2223 = vld [vmem:[%s2189 + $0x9] sm:$0xff]
      %v2224 = vld [vmem:[%s2189 + $0x19] sm:$0xff]
      %v2225 = vld [vmem:[%s2189 + $0x21] sm:$0xff]
      %v2226 = vld [vmem:[%s2189 + $0x31] sm:$0xff]
      %v2227 = vld [vmem:[%s2189 + $0x39] sm:$0xff]
      %v2228 = vld [vmem:[%s2189 + $0x49] sm:$0xff]
      %v2229 = vld [vmem:[%s2189 + $0x51] sm:$0xff]
      %v2230 = vld [vmem:[%s2189 + $0x61] sm:$0xff]
      %v2231 = vld [vmem:[%s2189 + $0x69] sm:$0xff]
      %v2232 = vld [vmem:[%s2189 + $0x79] sm:$0xff]
      %v2233 = vld [vmem:[%s2189 + $0x81] sm:$0xff]
      %v2234 = vld [vmem:[%s2189 + $0x91] sm:$0xff]
      %v2235 = vld [vmem:[%s2189 + $0x99] sm:$0xff]
      %v2236 = vld [vmem:[%s2189 + $0xa9] sm:$0xff]
      %v2237 = vld [vmem:[%s2189 + $0xb1] sm:$0xff]
      %v2238 = vld [vmem:[%s2189 + $0xc1] sm:$0xff]
      %v2239 = vld [vmem:[%s2189 + $0xc9] sm:$0xff]
      %v2240 = vld [vmem:[%s2189 + $0xd9] sm:$0xff]
      %v2241 = vld [vmem:[%s2189 + $0xe1] sm:$0xff]
      %v2242 = vld [vmem:[%s2189 + $0xf1] sm:$0xff]
      %v2243 = vld [vmem:[%s2189 + $0xf9] sm:$0xff]
      %v2244 = vld [vmem:[%s2189 + $0x109] sm:$0xff]
      %v2245 = vld [vmem:[%s2189 + $0x111] sm:$0xff]
      %v2246 = vld [vmem:[%s2189 + $0x121] sm:$0xff]
      %v2247 = vld [vmem:[%s2189 + $0x129] sm:$0xff]
      %v2248 = vld [vmem:[%s2189 + $0x139] sm:$0xff]
      %v2249 = vld [vmem:[%s2189 + $0x141] sm:$0xff]
      %v2250 = vld [vmem:[%s2189 + $0x151] sm:$0xff]
      %v2251 = vld [vmem:[%s2189 + $0x159] sm:$0xff]
      %v2252 = vld [vmem:[%s2189 + $0x169] sm:$0xff]
      %v2253 = vld [vmem:[%s2189 + $0x171] sm:$0xff]
      %v2254 = vld [vmem:[%s2189 + $0x2] sm:$0xff]
      %v2255 = vld [vmem:[%s2189 + $0xa] sm:$0xff]
      %v2256 = vld [vmem:[%s2189 + $0x1a] sm:$0xff]
      %v2257 = vld [vmem:[%s2189 + $0x22] sm:$0xff]
      %v2258 = vld [vmem:[%s2189 + $0x32] sm:$0xff]
      %v2259 = vld [vmem:[%s2189 + $0x3a] sm:$0xff]
      %v2260 = vld [vmem:[%s2189 + $0x4a] sm:$0xff]
      %v2261 = vld [vmem:[%s2189 + $0x52] sm:$0xff]
      %v2262 = vld [vmem:[%s2189 + $0x62] sm:$0xff]
      %v2263 = vld [vmem:[%s2189 + $0x6a] sm:$0xff]
      %v2264 = vld [vmem:[%s2189 + $0x7a] sm:$0xff]
      %v2265 = vld [vmem:[%s2189 + $0x82] sm:$0xff]
      %v2266 = vld [vmem:[%s2189 + $0x92] sm:$0xff]
      %v2267 = vld [vmem:[%s2189 + $0x9a] sm:$0xff]
      %v2268 = vld [vmem:[%s2189 + $0xaa] sm:$0xff]
      %v2269 = vld [vmem:[%s2189 + $0xb2] sm:$0xff]
      %v2270 = vld [vmem:[%s2189 + $0xc2] sm:$0xff]
      %v2271 = vld [vmem:[%s2189 + $0xca] sm:$0xff]
      %v2272 = vld [vmem:[%s2189 + $0xda] sm:$0xff]
      %v2273 = vld [vmem:[%s2189 + $0xe2] sm:$0xff]
      %v2274 = vld [vmem:[%s2189 + $0xf2] sm:$0xff]
      %v2275 = vld [vmem:[%s2189 + $0xfa] sm:$0xff]
      %v2276 = vld [vmem:[%s2189 + $0x10a] sm:$0xff]
      %v2277 = vld [vmem:[%s2189 + $0x112] sm:$0xff]
      %v2278 = vld [vmem:[%s2189 + $0x122] sm:$0xff]
      %v2279 = vld [vmem:[%s2189 + $0x12a] sm:$0xff]
      %v2280 = vld [vmem:[%s2189 + $0x13a] sm:$0xff]
      %v2281 = vld [vmem:[%s2189 + $0x142] sm:$0xff]
      %v2282 = vld [vmem:[%s2189 + $0x152] sm:$0xff]
      %v2283 = vld [vmem:[%s2189 + $0x15a] sm:$0xff]
      %v2284 = vld [vmem:[%s2189 + $0x16a] sm:$0xff]
      %v2285 = vld [vmem:[%s2189 + $0x172] sm:$0xff]
      %2318 = vrot.lane.b32.xlu0 %v2029, 8
      %v2319 = vpop.permute.xlu0 %2318
      %2320 = vrot.lane.b32.xlu0 %v2030, 8
      %v2321 = vpop.permute.xlu0 %2320
      %2322 = vrot.lane.b32.xlu0 %v2031, 8
      %v2323 = vpop.permute.xlu0 %2322
      %2324 = vrot.lane.b32.xlu0 %v2032, 8
      %v2325 = vpop.permute.xlu0 %2324
      %2326 = vrot.lane.b32.xlu0 %v2033, 8
      %v2327 = vpop.permute.xlu0 %2326
      %2328 = vrot.lane.b32.xlu0 %v2034, 8
      %v2329 = vpop.permute.xlu0 %2328
      %2330 = vrot.lane.b32.xlu0 %v2035, 8
      %v2331 = vpop.permute.xlu0 %2330
      %2332 = vrot.lane.b32.xlu0 %v2036, 8
      %v2333 = vpop.permute.xlu0 %2332
      %2334 = vrot.lane.b32.xlu0 %v2037, 8
      %v2335 = vpop.permute.xlu0 %2334
      %2336 = vrot.lane.b32.xlu0 %v2038, 8
      %v2337 = vpop.permute.xlu0 %2336
      %2338 = vrot.lane.b32.xlu0 %v2039, 8
      %v2339 = vpop.permute.xlu0 %2338
      %2340 = vrot.lane.b32.xlu0 %v2040, 8
      %v2341 = vpop.permute.xlu0 %2340
      %2342 = vrot.lane.b32.xlu0 %v2041, 8
      %v2343 = vpop.permute.xlu0 %2342
      %2344 = vrot.lane.b32.xlu0 %v2042, 8
      %v2345 = vpop.permute.xlu0 %2344
      %2346 = vrot.lane.b32.xlu0 %v2043, 8
      %v2347 = vpop.permute.xlu0 %2346
      %2348 = vrot.lane.b32.xlu0 %v2044, 8
      %v2349 = vpop.permute.xlu0 %2348
      %2350 = vrot.lane.b32.xlu0 %v2045, 8
      %v2351 = vpop.permute.xlu0 %2350
      %2352 = vrot.lane.b32.xlu0 %v2046, 8
      %v2353 = vpop.permute.xlu0 %2352
      %2354 = vrot.lane.b32.xlu0 %v2047, 8
      %v2355 = vpop.permute.xlu0 %2354
      %2356 = vrot.lane.b32.xlu0 %v2048, 8
      %v2357 = vpop.permute.xlu0 %2356
      %2358 = vrot.lane.b32.xlu0 %v2049, 8
      %v2359 = vpop.permute.xlu0 %2358
      %2360 = vrot.lane.b32.xlu0 %v2050, 8
      %v2361 = vpop.permute.xlu0 %2360
      %2362 = vrot.lane.b32.xlu0 %v2051, 8
      %v2363 = vpop.permute.xlu0 %2362
      %2364 = vrot.lane.b32.xlu0 %v2052, 8
      %v2365 = vpop.permute.xlu0 %2364
      %2366 = vrot.lane.b32.xlu0 %v2053, 8
      %v2367 = vpop.permute.xlu0 %2366
      %2368 = vrot.lane.b32.xlu0 %v2054, 8
      %v2369 = vpop.permute.xlu0 %2368
      %2370 = vrot.lane.b32.xlu0 %v2055, 8
      %v2371 = vpop.permute.xlu0 %2370
      %2372 = vrot.lane.b32.xlu0 %v2056, 8
      %v2373 = vpop.permute.xlu0 %2372
      %2374 = vrot.lane.b32.xlu0 %v2057, 8
      %v2375 = vpop.permute.xlu0 %2374
      %2376 = vrot.lane.b32.xlu0 %v2058, 8
      %v2377 = vpop.permute.xlu0 %2376
      %2378 = vrot.lane.b32.xlu0 %v2059, 8
      %v2379 = vpop.permute.xlu0 %2378
      %2380 = vrot.lane.b32.xlu0 %v2060, 8
      %v2381 = vpop.permute.xlu0 %2380
      %2446 = vrot.lane.b32.xlu0 %v2061, 16
      %v2447 = vpop.permute.xlu0 %2446
      %2448 = vrot.lane.b32.xlu0 %v2062, 16
      %v2449 = vpop.permute.xlu0 %2448
      %2450 = vrot.lane.b32.xlu0 %v2063, 16
      %v2451 = vpop.permute.xlu0 %2450
      %2452 = vrot.lane.b32.xlu0 %v2064, 16
      %v2453 = vpop.permute.xlu0 %2452
      %2454 = vrot.lane.b32.xlu0 %v2065, 16
      %v2455 = vpop.permute.xlu0 %2454
      %2456 = vrot.lane.b32.xlu0 %v2066, 16
      %v2457 = vpop.permute.xlu0 %2456
      %2458 = vrot.lane.b32.xlu0 %v2067, 16
      %v2459 = vpop.permute.xlu0 %2458
      %2460 = vrot.lane.b32.xlu0 %v2068, 16
      %v2461 = vpop.permute.xlu0 %2460
      %2462 = vrot.lane.b32.xlu0 %v2069, 16
      %v2463 = vpop.permute.xlu0 %2462
      %2464 = vrot.lane.b32.xlu0 %v2070, 16
      %v2465 = vpop.permute.xlu0 %2464
      %2466 = vrot.lane.b32.xlu0 %v2071, 16
      %v2467 = vpop.permute.xlu0 %2466
      %2468 = vrot.lane.b32.xlu0 %v2072, 16
      %v2469 = vpop.permute.xlu0 %2468
      %2470 = vrot.lane.b32.xlu0 %v2073, 16
      %v2471 = vpop.permute.xlu0 %2470
      %2472 = vrot.lane.b32.xlu0 %v2074, 16
      %v2473 = vpop.permute.xlu0 %2472
      %2474 = vrot.lane.b32.xlu0 %v2075, 16
      %v2475 = vpop.permute.xlu0 %2474
      %2476 = vrot.lane.b32.xlu0 %v2076, 16
      %v2477 = vpop.permute.xlu0 %2476
      %2478 = vrot.lane.b32.xlu0 %v2077, 16
      %v2479 = vpop.permute.xlu0 %2478
      %2480 = vrot.lane.b32.xlu0 %v2078, 16
      %v2481 = vpop.permute.xlu0 %2480
      %2482 = vrot.lane.b32.xlu0 %v2079, 16
      %v2483 = vpop.permute.xlu0 %2482
      %2484 = vrot.lane.b32.xlu0 %v2080, 16
      %v2485 = vpop.permute.xlu0 %2484
      %2486 = vrot.lane.b32.xlu0 %v2081, 16
      %v2487 = vpop.permute.xlu0 %2486
      %2488 = vrot.lane.b32.xlu0 %v2082, 16
      %v2489 = vpop.permute.xlu0 %2488
      %2490 = vrot.lane.b32.xlu0 %v2083, 16
      %v2491 = vpop.permute.xlu0 %2490
      %2492 = vrot.lane.b32.xlu0 %v2084, 16
      %v2493 = vpop.permute.xlu0 %2492
      %2494 = vrot.lane.b32.xlu0 %v2085, 16
      %v2495 = vpop.permute.xlu0 %2494
      %2496 = vrot.lane.b32.xlu0 %v2086, 16
      %v2497 = vpop.permute.xlu0 %2496
      %2498 = vrot.lane.b32.xlu0 %v2087, 16
      %v2499 = vpop.permute.xlu0 %2498
      %2500 = vrot.lane.b32.xlu0 %v2088, 16
      %v2501 = vpop.permute.xlu0 %2500
      %2502 = vrot.lane.b32.xlu0 %v2089, 16
      %v2503 = vpop.permute.xlu0 %2502
      %2504 = vrot.lane.b32.xlu0 %v2090, 16
      %v2505 = vpop.permute.xlu0 %2504
      %2506 = vrot.lane.b32.xlu0 %v2091, 16
      %v2507 = vpop.permute.xlu0 %2506
      %2508 = vrot.lane.b32.xlu0 %v2092, 16
      %v2509 = vpop.permute.xlu0 %2508
      %2574 = vrot.lane.b32.xlu0 %v2093, 24
      %v2575 = vpop.permute.xlu0 %2574
      %2576 = vrot.lane.b32.xlu0 %v2094, 24
      %v2577 = vpop.permute.xlu0 %2576
      %2578 = vrot.lane.b32.xlu0 %v2095, 24
      %v2579 = vpop.permute.xlu0 %2578
      %2580 = vrot.lane.b32.xlu0 %v2096, 24
      %v2581 = vpop.permute.xlu0 %2580
      %2582 = vrot.lane.b32.xlu0 %v2097, 24
      %v2583 = vpop.permute.xlu0 %2582
      %2584 = vrot.lane.b32.xlu0 %v2098, 24
      %v2585 = vpop.permute.xlu0 %2584
      %2586 = vrot.lane.b32.xlu0 %v2099, 24
      %v2587 = vpop.permute.xlu0 %2586
      %2588 = vrot.lane.b32.xlu0 %v2100, 24
      %v2589 = vpop.permute.xlu0 %2588
      %2590 = vrot.lane.b32.xlu0 %v2101, 24
      %v2591 = vpop.permute.xlu0 %2590
      %2592 = vrot.lane.b32.xlu0 %v2102, 24
      %v2593 = vpop.permute.xlu0 %2592
      %2594 = vrot.lane.b32.xlu0 %v2103, 24
      %v2595 = vpop.permute.xlu0 %2594
      %2596 = vrot.lane.b32.xlu0 %v2104, 24
      %v2597 = vpop.permute.xlu0 %2596
      %2598 = vrot.lane.b32.xlu0 %v2105, 24
      %v2599 = vpop.permute.xlu0 %2598
      %2600 = vrot.lane.b32.xlu0 %v2106, 24
      %v2601 = vpop.permute.xlu0 %2600
      %2602 = vrot.lane.b32.xlu0 %v2107, 24
      %v2603 = vpop.permute.xlu0 %2602
      %2604 = vrot.lane.b32.xlu0 %v2108, 24
      %v2605 = vpop.permute.xlu0 %2604
      %2606 = vrot.lane.b32.xlu0 %v2109, 24
      %v2607 = vpop.permute.xlu0 %2606
      %2608 = vrot.lane.b32.xlu0 %v2110, 24
      %v2609 = vpop.permute.xlu0 %2608
      %2610 = vrot.lane.b32.xlu0 %v2111, 24
      %v2611 = vpop.permute.xlu0 %2610
      %2612 = vrot.lane.b32.xlu0 %v2112, 24
      %v2613 = vpop.permute.xlu0 %2612
      %2614 = vrot.lane.b32.xlu0 %v2113, 24
      %v2615 = vpop.permute.xlu0 %2614
      %2616 = vrot.lane.b32.xlu0 %v2114, 24
      %v2617 = vpop.permute.xlu0 %2616
      %2618 = vrot.lane.b32.xlu0 %v2115, 24
      %v2619 = vpop.permute.xlu0 %2618
      %2620 = vrot.lane.b32.xlu0 %v2116, 24
      %v2621 = vpop.permute.xlu0 %2620
      %2622 = vrot.lane.b32.xlu0 %v2117, 24
      %v2623 = vpop.permute.xlu0 %2622
      %2624 = vrot.lane.b32.xlu0 %v2118, 24
      %v2625 = vpop.permute.xlu0 %2624
      %2626 = vrot.lane.b32.xlu0 %v2119, 24
      %v2627 = vpop.permute.xlu0 %2626
      %2628 = vrot.lane.b32.xlu0 %v2120, 24
      %v2629 = vpop.permute.xlu0 %2628
      %2630 = vrot.lane.b32.xlu0 %v2121, 24
      %v2631 = vpop.permute.xlu0 %2630
      %2632 = vrot.lane.b32.xlu0 %v2122, 24
      %v2633 = vpop.permute.xlu0 %2632
      %2634 = vrot.lane.b32.xlu0 %v2123, 24
      %v2635 = vpop.permute.xlu0 %2634
      %2636 = vrot.lane.b32.xlu0 %v2124, 24
      %v2637 = vpop.permute.xlu0 %2636
      %2702 = vrot.lane.b32.xlu0 %v2125, 32
      %v2703 = vpop.permute.xlu0 %2702
      %2704 = vrot.lane.b32.xlu0 %v2126, 32
      %v2705 = vpop.permute.xlu0 %2704
      %2706 = vrot.lane.b32.xlu0 %v2127, 32
      %v2707 = vpop.permute.xlu0 %2706
      %2708 = vrot.lane.b32.xlu0 %v2128, 32
      %v2709 = vpop.permute.xlu0 %2708
      %2710 = vrot.lane.b32.xlu0 %v2129, 32
      %v2711 = vpop.permute.xlu0 %2710
      %2712 = vrot.lane.b32.xlu0 %v2130, 32
      %v2713 = vpop.permute.xlu0 %2712
      %2714 = vrot.lane.b32.xlu0 %v2131, 32
      %v2715 = vpop.permute.xlu0 %2714
      %2716 = vrot.lane.b32.xlu0 %v2132, 32
      %v2717 = vpop.permute.xlu0 %2716
      %2718 = vrot.lane.b32.xlu0 %v2133, 32
      %v2719 = vpop.permute.xlu0 %2718
      %2720 = vrot.lane.b32.xlu0 %v2134, 32
      %v2721 = vpop.permute.xlu0 %2720
      %2722 = vrot.lane.b32.xlu0 %v2135, 32
      %v2723 = vpop.permute.xlu0 %2722
      %2724 = vrot.lane.b32.xlu0 %v2136, 32
      %v2725 = vpop.permute.xlu0 %2724
      %2726 = vrot.lane.b32.xlu0 %v2137, 32
      %v2727 = vpop.permute.xlu0 %2726
      %2728 = vrot.lane.b32.xlu0 %v2138, 32
      %v2729 = vpop.permute.xlu0 %2728
      %2730 = vrot.lane.b32.xlu0 %v2139, 32
      %v2731 = vpop.permute.xlu0 %2730
      %2732 = vrot.lane.b32.xlu0 %v2140, 32
      %v2733 = vpop.permute.xlu0 %2732
      %2734 = vrot.lane.b32.xlu0 %v2141, 32
      %v2735 = vpop.permute.xlu0 %2734
      %2736 = vrot.lane.b32.xlu0 %v2142, 32
      %v2737 = vpop.permute.xlu0 %2736
      %2738 = vrot.lane.b32.xlu0 %v2143, 32
      %v2739 = vpop.permute.xlu0 %2738
      %2740 = vrot.lane.b32.xlu0 %v2144, 32
      %v2741 = vpop.permute.xlu0 %2740
      %2742 = vrot.lane.b32.xlu0 %v2145, 32
      %v2743 = vpop.permute.xlu0 %2742
      %2744 = vrot.lane.b32.xlu0 %v2146, 32
      %v2745 = vpop.permute.xlu0 %2744
      %2746 = vrot.lane.b32.xlu0 %v2147, 32
      %v2747 = vpop.permute.xlu0 %2746
      %2748 = vrot.lane.b32.xlu0 %v2148, 32
      %v2749 = vpop.permute.xlu0 %2748
      %2750 = vrot.lane.b32.xlu0 %v2149, 32
      %v2751 = vpop.permute.xlu0 %2750
      %2752 = vrot.lane.b32.xlu0 %v2150, 32
      %v2753 = vpop.permute.xlu0 %2752
      %2754 = vrot.lane.b32.xlu0 %v2151, 32
      %v2755 = vpop.permute.xlu0 %2754
      %2756 = vrot.lane.b32.xlu0 %v2152, 32
      %v2757 = vpop.permute.xlu0 %2756
      %2758 = vrot.lane.b32.xlu0 %v2153, 32
      %v2759 = vpop.permute.xlu0 %2758
      %2760 = vrot.lane.b32.xlu0 %v2154, 32
      %v2761 = vpop.permute.xlu0 %2760
      %2762 = vrot.lane.b32.xlu0 %v2155, 32
      %v2763 = vpop.permute.xlu0 %2762
      %2764 = vrot.lane.b32.xlu0 %v2156, 32
      %v2765 = vpop.permute.xlu0 %2764
      %2830 = vrot.lane.b32.xlu0 %v2157, 40
      %v2831 = vpop.permute.xlu0 %2830
      %2832 = vrot.lane.b32.xlu0 %v2158, 40
      %v2833 = vpop.permute.xlu0 %2832
      %2834 = vrot.lane.b32.xlu0 %v2159, 40
      %v2835 = vpop.permute.xlu0 %2834
      %2836 = vrot.lane.b32.xlu0 %v2160, 40
      %v2837 = vpop.permute.xlu0 %2836
      %2838 = vrot.lane.b32.xlu0 %v2161, 40
      %v2839 = vpop.permute.xlu0 %2838
      %2840 = vrot.lane.b32.xlu0 %v2162, 40
      %v2841 = vpop.permute.xlu0 %2840
      %2842 = vrot.lane.b32.xlu0 %v2163, 40
      %v2843 = vpop.permute.xlu0 %2842
      %2844 = vrot.lane.b32.xlu0 %v2164, 40
      %v2845 = vpop.permute.xlu0 %2844
      %2846 = vrot.lane.b32.xlu0 %v2165, 40
      %v2847 = vpop.permute.xlu0 %2846
      %2848 = vrot.lane.b32.xlu0 %v2166, 40
      %v2849 = vpop.permute.xlu0 %2848
      %2850 = vrot.lane.b32.xlu0 %v2167, 40
      %v2851 = vpop.permute.xlu0 %2850
      %2852 = vrot.lane.b32.xlu0 %v2168, 40
      %v2853 = vpop.permute.xlu0 %2852
      %2854 = vrot.lane.b32.xlu0 %v2169, 40
      %v2855 = vpop.permute.xlu0 %2854
      %2856 = vrot.lane.b32.xlu0 %v2170, 40
      %v2857 = vpop.permute.xlu0 %2856
      %2858 = vrot.lane.b32.xlu0 %v2171, 40
      %v2859 = vpop.permute.xlu0 %2858
      %2860 = vrot.lane.b32.xlu0 %v2172, 40
      %v2861 = vpop.permute.xlu0 %2860
      %2862 = vrot.lane.b32.xlu0 %v2173, 40
      %v2863 = vpop.permute.xlu0 %2862
      %2864 = vrot.lane.b32.xlu0 %v2174, 40
      %v2865 = vpop.permute.xlu0 %2864
      %2866 = vrot.lane.b32.xlu0 %v2175, 40
      %v2867 = vpop.permute.xlu0 %2866
      %2868 = vrot.lane.b32.xlu0 %v2176, 40
      %v2869 = vpop.permute.xlu0 %2868
      %2870 = vrot.lane.b32.xlu0 %v2177, 40
      %v2871 = vpop.permute.xlu0 %2870
      %2872 = vrot.lane.b32.xlu0 %v2178, 40
      %v2873 = vpop.permute.xlu0 %2872
      %2874 = vrot.lane.b32.xlu0 %v2179, 40
      %v2875 = vpop.permute.xlu0 %2874
      %2876 = vrot.lane.b32.xlu0 %v2180, 40
      %v2877 = vpop.permute.xlu0 %2876
      %2878 = vrot.lane.b32.xlu0 %v2181, 40
      %v2879 = vpop.permute.xlu0 %2878
      %2880 = vrot.lane.b32.xlu0 %v2182, 40
      %v2881 = vpop.permute.xlu0 %2880
      %2882 = vrot.lane.b32.xlu0 %v2183, 40
      %v2883 = vpop.permute.xlu0 %2882
      %2884 = vrot.lane.b32.xlu0 %v2184, 40
      %v2885 = vpop.permute.xlu0 %2884
      %2886 = vrot.lane.b32.xlu0 %v2185, 40
      %v2887 = vpop.permute.xlu0 %2886
      %2888 = vrot.lane.b32.xlu0 %v2186, 40
      %v2889 = vpop.permute.xlu0 %2888
      %2890 = vrot.lane.b32.xlu0 %v2187, 40
      %v2891 = vpop.permute.xlu0 %2890
      %2892 = vrot.lane.b32.xlu0 %v2188, 40
      %v2893 = vpop.permute.xlu0 %2892
      %2958 = vrot.lane.b32.xlu0 %v2190, 48
      %v2959 = vpop.permute.xlu0 %2958
      %2960 = vrot.lane.b32.xlu0 %v2191, 48
      %v2961 = vpop.permute.xlu0 %2960
      %2962 = vrot.lane.b32.xlu0 %v2192, 48
      %v2963 = vpop.permute.xlu0 %2962
      %2964 = vrot.lane.b32.xlu0 %v2193, 48
      %v2965 = vpop.permute.xlu0 %2964
      %2966 = vrot.lane.b32.xlu0 %v2194, 48
      %v2967 = vpop.permute.xlu0 %2966
      %2968 = vrot.lane.b32.xlu0 %v2195, 48
      %v2969 = vpop.permute.xlu0 %2968
      %2970 = vrot.lane.b32.xlu0 %v2196, 48
      %v2971 = vpop.permute.xlu0 %2970
      %2972 = vrot.lane.b32.xlu0 %v2197, 48
      %v2973 = vpop.permute.xlu0 %2972
      %2974 = vrot.lane.b32.xlu0 %v2198, 48
      %v2975 = vpop.permute.xlu0 %2974
      %2976 = vrot.lane.b32.xlu0 %v2199, 48
      %v2977 = vpop.permute.xlu0 %2976
      %2978 = vrot.lane.b32.xlu0 %v2200, 48
      %v2979 = vpop.permute.xlu0 %2978
      %2980 = vrot.lane.b32.xlu0 %v2201, 48
      %v2981 = vpop.permute.xlu0 %2980
      %2982 = vrot.lane.b32.xlu0 %v2202, 48
      %v2983 = vpop.permute.xlu0 %2982
      %2984 = vrot.lane.b32.xlu0 %v2203, 48
      %v2985 = vpop.permute.xlu0 %2984
      %2986 = vrot.lane.b32.xlu0 %v2204, 48
      %v2987 = vpop.permute.xlu0 %2986
      %2988 = vrot.lane.b32.xlu0 %v2205, 48
      %v2989 = vpop.permute.xlu0 %2988
      %2990 = vrot.lane.b32.xlu0 %v2206, 48
      %v2991 = vpop.permute.xlu0 %2990
      %2992 = vrot.lane.b32.xlu0 %v2207, 48
      %v2993 = vpop.permute.xlu0 %2992
      %2994 = vrot.lane.b32.xlu0 %v2208, 48
      %v2995 = vpop.permute.xlu0 %2994
      %2996 = vrot.lane.b32.xlu0 %v2209, 48
      %v2997 = vpop.permute.xlu0 %2996
      %2998 = vrot.lane.b32.xlu0 %v2210, 48
      %v2999 = vpop.permute.xlu0 %2998
      %3000 = vrot.lane.b32.xlu0 %v2211, 48
      %v3001 = vpop.permute.xlu0 %3000
      %3002 = vrot.lane.b32.xlu0 %v2212, 48
      %v3003 = vpop.permute.xlu0 %3002
      %3004 = vrot.lane.b32.xlu0 %v2213, 48
      %v3005 = vpop.permute.xlu0 %3004
      %3006 = vrot.lane.b32.xlu0 %v2214, 48
      %v3007 = vpop.permute.xlu0 %3006
      %3008 = vrot.lane.b32.xlu0 %v2215, 48
      %v3009 = vpop.permute.xlu0 %3008
      %3010 = vrot.lane.b32.xlu0 %v2216, 48
      %v3011 = vpop.permute.xlu0 %3010
      %3012 = vrot.lane.b32.xlu0 %v2217, 48
      %v3013 = vpop.permute.xlu0 %3012
      %3014 = vrot.lane.b32.xlu0 %v2218, 48
      %v3015 = vpop.permute.xlu0 %3014
      %3016 = vrot.lane.b32.xlu0 %v2219, 48
      %v3017 = vpop.permute.xlu0 %3016
      %3018 = vrot.lane.b32.xlu0 %v2220, 48
      %v3019 = vpop.permute.xlu0 %3018
      %3020 = vrot.lane.b32.xlu0 %v2221, 48
      %v3021 = vpop.permute.xlu0 %3020
      %3086 = vrot.lane.b32.xlu0 %v2222, 56
      %v3087 = vpop.permute.xlu0 %3086
      %3088 = vrot.lane.b32.xlu0 %v2223, 56
      %v3089 = vpop.permute.xlu0 %3088
      %3090 = vrot.lane.b32.xlu0 %v2224, 56
      %v3091 = vpop.permute.xlu0 %3090
      %3092 = vrot.lane.b32.xlu0 %v2225, 56
      %v3093 = vpop.permute.xlu0 %3092
      %3094 = vrot.lane.b32.xlu0 %v2226, 56
      %v3095 = vpop.permute.xlu0 %3094
      %3096 = vrot.lane.b32.xlu0 %v2227, 56
      %v3097 = vpop.permute.xlu0 %3096
      %3098 = vrot.lane.b32.xlu0 %v2228, 56
      %v3099 = vpop.permute.xlu0 %3098
      %3100 = vrot.lane.b32.xlu0 %v2229, 56
      %v3101 = vpop.permute.xlu0 %3100
      %3102 = vrot.lane.b32.xlu0 %v2230, 56
      %v3103 = vpop.permute.xlu0 %3102
      %3104 = vrot.lane.b32.xlu0 %v2231, 56
      %v3105 = vpop.permute.xlu0 %3104
      %3106 = vrot.lane.b32.xlu0 %v2232, 56
      %v3107 = vpop.permute.xlu0 %3106
      %3108 = vrot.lane.b32.xlu0 %v2233, 56
      %v3109 = vpop.permute.xlu0 %3108
      %3110 = vrot.lane.b32.xlu0 %v2234, 56
      %v3111 = vpop.permute.xlu0 %3110
      %3112 = vrot.lane.b32.xlu0 %v2235, 56
      %v3113 = vpop.permute.xlu0 %3112
      %3114 = vrot.lane.b32.xlu0 %v2236, 56
      %v3115 = vpop.permute.xlu0 %3114
      %3116 = vrot.lane.b32.xlu0 %v2237, 56
      %v3117 = vpop.permute.xlu0 %3116
      %3118 = vrot.lane.b32.xlu0 %v2238, 56
      %v3119 = vpop.permute.xlu0 %3118
      %3120 = vrot.lane.b32.xlu0 %v2239, 56
      %v3121 = vpop.permute.xlu0 %3120
      %3122 = vrot.lane.b32.xlu0 %v2240, 56
      %v3123 = vpop.permute.xlu0 %3122
      %3124 = vrot.lane.b32.xlu0 %v2241, 56
      %v3125 = vpop.permute.xlu0 %3124
      %3126 = vrot.lane.b32.xlu0 %v2242, 56
      %v3127 = vpop.permute.xlu0 %3126
      %3128 = vrot.lane.b32.xlu0 %v2243, 56
      %v3129 = vpop.permute.xlu0 %3128
      %3130 = vrot.lane.b32.xlu0 %v2244, 56
      %v3131 = vpop.permute.xlu0 %3130
      %3132 = vrot.lane.b32.xlu0 %v2245, 56
      %v3133 = vpop.permute.xlu0 %3132
      %3134 = vrot.lane.b32.xlu0 %v2246, 56
      %v3135 = vpop.permute.xlu0 %3134
      %3136 = vrot.lane.b32.xlu0 %v2247, 56
      %v3137 = vpop.permute.xlu0 %3136
      %3138 = vrot.lane.b32.xlu0 %v2248, 56
      %v3139 = vpop.permute.xlu0 %3138
      %3140 = vrot.lane.b32.xlu0 %v2249, 56
      %v3141 = vpop.permute.xlu0 %3140
      %3142 = vrot.lane.b32.xlu0 %v2250, 56
      %v3143 = vpop.permute.xlu0 %3142
      %3144 = vrot.lane.b32.xlu0 %v2251, 56
      %v3145 = vpop.permute.xlu0 %3144
      %3146 = vrot.lane.b32.xlu0 %v2252, 56
      %v3147 = vpop.permute.xlu0 %3146
      %3148 = vrot.lane.b32.xlu0 %v2253, 56
      %v3149 = vpop.permute.xlu0 %3148
      %3214 = vrot.lane.b32.xlu0 %v2254, 64
      %v3215 = vpop.permute.xlu0 %3214
      %3216 = vrot.lane.b32.xlu0 %v2255, 64
      %v3217 = vpop.permute.xlu0 %3216
      %3218 = vrot.lane.b32.xlu0 %v2256, 64
      %v3219 = vpop.permute.xlu0 %3218
      %3220 = vrot.lane.b32.xlu0 %v2257, 64
      %v3221 = vpop.permute.xlu0 %3220
      %3222 = vrot.lane.b32.xlu0 %v2258, 64
      %v3223 = vpop.permute.xlu0 %3222
      %3224 = vrot.lane.b32.xlu0 %v2259, 64
      %v3225 = vpop.permute.xlu0 %3224
      %3226 = vrot.lane.b32.xlu0 %v2260, 64
      %v3227 = vpop.permute.xlu0 %3226
      %3228 = vrot.lane.b32.xlu0 %v2261, 64
      %v3229 = vpop.permute.xlu0 %3228
      %3230 = vrot.lane.b32.xlu0 %v2262, 64
      %v3231 = vpop.permute.xlu0 %3230
      %3232 = vrot.lane.b32.xlu0 %v2263, 64
      %v3233 = vpop.permute.xlu0 %3232
      %3234 = vrot.lane.b32.xlu0 %v2264, 64
      %v3235 = vpop.permute.xlu0 %3234
      %3236 = vrot.lane.b32.xlu0 %v2265, 64
      %v3237 = vpop.permute.xlu0 %3236
      %3238 = vrot.lane.b32.xlu0 %v2266, 64
      %v3239 = vpop.permute.xlu0 %3238
      %3240 = vrot.lane.b32.xlu0 %v2267, 64
      %v3241 = vpop.permute.xlu0 %3240
      %3242 = vrot.lane.b32.xlu0 %v2268, 64
      %v3243 = vpop.permute.xlu0 %3242
      %3244 = vrot.lane.b32.xlu0 %v2269, 64
      %v3245 = vpop.permute.xlu0 %3244
      %3246 = vrot.lane.b32.xlu0 %v2270, 64
      %v3247 = vpop.permute.xlu0 %3246
      %3248 = vrot.lane.b32.xlu0 %v2271, 64
      %v3249 = vpop.permute.xlu0 %3248
      %3250 = vrot.lane.b32.xlu0 %v2272, 64
      %v3251 = vpop.permute.xlu0 %3250
      %3252 = vrot.lane.b32.xlu0 %v2273, 64
      %v3253 = vpop.permute.xlu0 %3252
      %3254 = vrot.lane.b32.xlu0 %v2274, 64
      %v3255 = vpop.permute.xlu0 %3254
      %3256 = vrot.lane.b32.xlu0 %v2275, 64
      %v3257 = vpop.permute.xlu0 %3256
      %3258 = vrot.lane.b32.xlu0 %v2276, 64
      %v3259 = vpop.permute.xlu0 %3258
      %3260 = vrot.lane.b32.xlu0 %v2277, 64
      %v3261 = vpop.permute.xlu0 %3260
      %3262 = vrot.lane.b32.xlu0 %v2278, 64
      %v3263 = vpop.permute.xlu0 %3262
      %3264 = vrot.lane.b32.xlu0 %v2279, 64
      %v3265 = vpop.permute.xlu0 %3264
      %3266 = vrot.lane.b32.xlu0 %v2280, 64
      %v3267 = vpop.permute.xlu0 %3266
      %3268 = vrot.lane.b32.xlu0 %v2281, 64
      %v3269 = vpop.permute.xlu0 %3268
      %3270 = vrot.lane.b32.xlu0 %v2282, 64
      %v3271 = vpop.permute.xlu0 %3270
      %3272 = vrot.lane.b32.xlu0 %v2283, 64
      %v3273 = vpop.permute.xlu0 %3272
      %3274 = vrot.lane.b32.xlu0 %v2284, 64
      %v3275 = vpop.permute.xlu0 %3274
      %3276 = vrot.lane.b32.xlu0 %v2285, 64
      %v3277 = vpop.permute.xlu0 %3276
      %v3310 = vsel %vm1403, %v1997, %v2319
      %v3311 = vsel %vm1403, %v1998, %v2321
      %v3312 = vsel %vm1403, %v1999, %v2323
      %v3313 = vsel %vm1403, %v2000, %v2325
      %v3314 = vsel %vm1403, %v2001, %v2327
      %v3315 = vsel %vm1403, %v2002, %v2329
      %v3316 = vsel %vm1403, %v2003, %v2331
      %v3317 = vsel %vm1403, %v2004, %v2333
      %v3318 = vsel %vm1403, %v2005, %v2335
      %v3319 = vsel %vm1403, %v2006, %v2337
      %v3320 = vsel %vm1403, %v2007, %v2339
      %v3321 = vsel %vm1403, %v2008, %v2341
      %v3322 = vsel %vm1403, %v2009, %v2343
      %v3323 = vsel %vm1403, %v2010, %v2345
      %v3324 = vsel %vm1403, %v2011, %v2347
      %v3325 = vsel %vm1403, %v2012, %v2349
      %v3326 = vsel %vm1403, %v2013, %v2351
      %v3327 = vsel %vm1403, %v2014, %v2353
      %v3328 = vsel %vm1403, %v2015, %v2355
      %v3329 = vsel %vm1403, %v2016, %v2357
      %v3330 = vsel %vm1403, %v2017, %v2359
      %v3331 = vsel %vm1403, %v2018, %v2361
      %v3332 = vsel %vm1403, %v2019, %v2363
      %v3333 = vsel %vm1403, %v2020, %v2365
      %v3334 = vsel %vm1403, %v2021, %v2367
      %v3335 = vsel %vm1403, %v2022, %v2369
      %v3336 = vsel %vm1403, %v2023, %v2371
      %v3337 = vsel %vm1403, %v2024, %v2373
      %v3338 = vsel %vm1403, %v2025, %v2375
      %v3339 = vsel %vm1403, %v2026, %v2377
      %v3340 = vsel %vm1403, %v2027, %v2379
      %v3341 = vsel %vm1403, %v2028, %v2381
      %v3342 = vsel %vm1469, %v3310, %v2447
      %v3343 = vsel %vm1469, %v3311, %v2449
      %v3344 = vsel %vm1469, %v3312, %v2451
      %v3345 = vsel %vm1469, %v3313, %v2453
      %v3346 = vsel %vm1469, %v3314, %v2455
      %v3347 = vsel %vm1469, %v3315, %v2457
      %v3348 = vsel %vm1469, %v3316, %v2459
      %v3349 = vsel %vm1469, %v3317, %v2461
      %v3350 = vsel %vm1469, %v3318, %v2463
      %v3351 = vsel %vm1469, %v3319, %v2465
      %v3352 = vsel %vm1469, %v3320, %v2467
      %v3353 = vsel %vm1469, %v3321, %v2469
      %v3354 = vsel %vm1469, %v3322, %v2471
      %v3355 = vsel %vm1469, %v3323, %v2473
      %v3356 = vsel %vm1469, %v3324, %v2475
      %v3357 = vsel %vm1469, %v3325, %v2477
      %v3358 = vsel %vm1469, %v3326, %v2479
      %v3359 = vsel %vm1469, %v3327, %v2481
      %v3360 = vsel %vm1469, %v3328, %v2483
      %v3361 = vsel %vm1469, %v3329, %v2485
      %v3362 = vsel %vm1469, %v3330, %v2487
      %v3363 = vsel %vm1469, %v3331, %v2489
      %v3364 = vsel %vm1469, %v3332, %v2491
      %v3365 = vsel %vm1469, %v3333, %v2493
      %v3366 = vsel %vm1469, %v3334, %v2495
      %v3367 = vsel %vm1469, %v3335, %v2497
      %v3368 = vsel %vm1469, %v3336, %v2499
      %v3369 = vsel %vm1469, %v3337, %v2501
      %v3370 = vsel %vm1469, %v3338, %v2503
      %v3371 = vsel %vm1469, %v3339, %v2505
      %v3372 = vsel %vm1469, %v3340, %v2507
      %v3373 = vsel %vm1469, %v3341, %v2509
      %v3374 = vsel %vm1535, %v3342, %v2575
      %v3375 = vsel %vm1535, %v3343, %v2577
      %v3376 = vsel %vm1535, %v3344, %v2579
      %v3377 = vsel %vm1535, %v3345, %v2581
      %v3378 = vsel %vm1535, %v3346, %v2583
      %v3379 = vsel %vm1535, %v3347, %v2585
      %v3380 = vsel %vm1535, %v3348, %v2587
      %v3381 = vsel %vm1535, %v3349, %v2589
      %v3382 = vsel %vm1535, %v3350, %v2591
      %v3383 = vsel %vm1535, %v3351, %v2593
      %v3384 = vsel %vm1535, %v3352, %v2595
      %v3385 = vsel %vm1535, %v3353, %v2597
      %v3386 = vsel %vm1535, %v3354, %v2599
      %v3387 = vsel %vm1535, %v3355, %v2601
      %v3388 = vsel %vm1535, %v3356, %v2603
      %v3389 = vsel %vm1535, %v3357, %v2605
      %v3390 = vsel %vm1535, %v3358, %v2607
      %v3391 = vsel %vm1535, %v3359, %v2609
      %v3392 = vsel %vm1535, %v3360, %v2611
      %v3393 = vsel %vm1535, %v3361, %v2613
      %v3394 = vsel %vm1535, %v3362, %v2615
      %v3395 = vsel %vm1535, %v3363, %v2617
      %v3396 = vsel %vm1535, %v3364, %v2619
      %v3397 = vsel %vm1535, %v3365, %v2621
      %v3398 = vsel %vm1535, %v3366, %v2623
      %v3399 = vsel %vm1535, %v3367, %v2625
      %v3400 = vsel %vm1535, %v3368, %v2627
      %v3401 = vsel %vm1535, %v3369, %v2629
      %v3402 = vsel %vm1535, %v3370, %v2631
      %v3403 = vsel %vm1535, %v3371, %v2633
      %v3404 = vsel %vm1535, %v3372, %v2635
      %v3405 = vsel %vm1535, %v3373, %v2637
      %v3406 = vsel %vm1601, %v3374, %v2703
      %v3407 = vsel %vm1601, %v3375, %v2705
      %v3408 = vsel %vm1601, %v3376, %v2707
      %v3409 = vsel %vm1601, %v3377, %v2709
      %v3410 = vsel %vm1601, %v3378, %v2711
      %v3411 = vsel %vm1601, %v3379, %v2713
      %v3412 = vsel %vm1601, %v3380, %v2715
      %v3413 = vsel %vm1601, %v3381, %v2717
      %v3414 = vsel %vm1601, %v3382, %v2719
      %v3415 = vsel %vm1601, %v3383, %v2721
      %v3416 = vsel %vm1601, %v3384, %v2723
      %v3417 = vsel %vm1601, %v3385, %v2725
      %v3418 = vsel %vm1601, %v3386, %v2727
      %v3419 = vsel %vm1601, %v3387, %v2729
      %v3420 = vsel %vm1601, %v3388, %v2731
      %v3421 = vsel %vm1601, %v3389, %v2733
      %v3422 = vsel %vm1601, %v3390, %v2735
      %v3423 = vsel %vm1601, %v3391, %v2737
      %v3424 = vsel %vm1601, %v3392, %v2739
      %v3425 = vsel %vm1601, %v3393, %v2741
      %v3426 = vsel %vm1601, %v3394, %v2743
      %v3427 = vsel %vm1601, %v3395, %v2745
      %v3428 = vsel %vm1601, %v3396, %v2747
      %v3429 = vsel %vm1601, %v3397, %v2749
      %v3430 = vsel %vm1601, %v3398, %v2751
      %v3431 = vsel %vm1601, %v3399, %v2753
      %v3432 = vsel %vm1601, %v3400, %v2755
      %v3433 = vsel %vm1601, %v3401, %v2757
      %v3434 = vsel %vm1601, %v3402, %v2759
      %v3435 = vsel %vm1601, %v3403, %v2761
      %v3436 = vsel %vm1601, %v3404, %v2763
      %v3437 = vsel %vm1601, %v3405, %v2765
      %vm3438 = vcmask 326656
      %v3439 = vsel %vm3438, %v3406, %v2831
      %v3440 = vsel %vm3438, %v3407, %v2833
      %v3441 = vsel %vm3438, %v3408, %v2835
      %v3442 = vsel %vm3438, %v3409, %v2837
      %v3443 = vsel %vm3438, %v3410, %v2839
      %v3444 = vsel %vm3438, %v3411, %v2841
      %v3445 = vsel %vm3438, %v3412, %v2843
      %v3446 = vsel %vm3438, %v3413, %v2845
      %v3447 = vsel %vm3438, %v3414, %v2847
      %v3448 = vsel %vm3438, %v3415, %v2849
      %v3449 = vsel %vm3438, %v3416, %v2851
      %v3450 = vsel %vm3438, %v3417, %v2853
      %v3451 = vsel %vm3438, %v3418, %v2855
      %v3452 = vsel %vm3438, %v3419, %v2857
      %v3453 = vsel %vm3438, %v3420, %v2859
      %v3454 = vsel %vm3438, %v3421, %v2861
      %v3455 = vsel %vm3438, %v3422, %v2863
      %v3456 = vsel %vm3438, %v3423, %v2865
      %v3457 = vsel %vm3438, %v3424, %v2867
      %v3458 = vsel %vm3438, %v3425, %v2869
      %v3459 = vsel %vm3438, %v3426, %v2871
      %v3460 = vsel %vm3438, %v3427, %v2873
      %v3461 = vsel %vm3438, %v3428, %v2875
      %v3462 = vsel %vm3438, %v3429, %v2877
      %v3463 = vsel %vm3438, %v3430, %v2879
      %v3464 = vsel %vm3438, %v3431, %v2881
      %v3465 = vsel %vm3438, %v3432, %v2883
      %v3466 = vsel %vm3438, %v3433, %v2885
      %v3467 = vsel %vm3438, %v3434, %v2887
      %v3468 = vsel %vm3438, %v3435, %v2889
      %v3469 = vsel %vm3438, %v3436, %v2891
      %v3470 = vsel %vm3438, %v3437, %v2893
      %vm3471 = vcmask 392192
      %v3472 = vsel %vm3471, %v3439, %v2959
      %v3473 = vsel %vm3471, %v3440, %v2961
      %v3474 = vsel %vm3471, %v3441, %v2963
      %v3475 = vsel %vm3471, %v3442, %v2965
      %v3476 = vsel %vm3471, %v3443, %v2967
      %v3477 = vsel %vm3471, %v3444, %v2969
      %v3478 = vsel %vm3471, %v3445, %v2971
      %v3479 = vsel %vm3471, %v3446, %v2973
      %v3480 = vsel %vm3471, %v3447, %v2975
      %v3481 = vsel %vm3471, %v3448, %v2977
      %v3482 = vsel %vm3471, %v3449, %v2979
      %v3483 = vsel %vm3471, %v3450, %v2981
      %v3484 = vsel %vm3471, %v3451, %v2983
      %v3485 = vsel %vm3471, %v3452, %v2985
      %v3486 = vsel %vm3471, %v3453, %v2987
      %v3487 = vsel %vm3471, %v3454, %v2989
      %v3488 = vsel %vm3471, %v3455, %v2991
      %v3489 = vsel %vm3471, %v3456, %v2993
      %v3490 = vsel %vm3471, %v3457, %v2995
      %v3491 = vsel %vm3471, %v3458, %v2997
      %v3492 = vsel %vm3471, %v3459, %v2999
      %v3493 = vsel %vm3471, %v3460, %v3001
      %v3494 = vsel %vm3471, %v3461, %v3003
      %v3495 = vsel %vm3471, %v3462, %v3005
      %v3496 = vsel %vm3471, %v3463, %v3007
      %v3497 = vsel %vm3471, %v3464, %v3009
      %v3498 = vsel %vm3471, %v3465, %v3011
      %v3499 = vsel %vm3471, %v3466, %v3013
      %v3500 = vsel %vm3471, %v3467, %v3015
      %v3501 = vsel %vm3471, %v3468, %v3017
      %v3502 = vsel %vm3471, %v3469, %v3019
      %v3503 = vsel %vm3471, %v3470, %v3021
      %vm3504 = vcmask 457728
      %v3505 = vsel %vm3504, %v3472, %v3087
      %v3506 = vsel %vm3504, %v3473, %v3089
      %v3507 = vsel %vm3504, %v3474, %v3091
      %v3508 = vsel %vm3504, %v3475, %v3093
      %v3509 = vsel %vm3504, %v3476, %v3095
      %v3510 = vsel %vm3504, %v3477, %v3097
      %v3511 = vsel %vm3504, %v3478, %v3099
      %v3512 = vsel %vm3504, %v3479, %v3101
      %v3513 = vsel %vm3504, %v3480, %v3103
      %v3514 = vsel %vm3504, %v3481, %v3105
      %v3515 = vsel %vm3504, %v3482, %v3107
      %v3516 = vsel %vm3504, %v3483, %v3109
      %v3517 = vsel %vm3504, %v3484, %v3111
      %v3518 = vsel %vm3504, %v3485, %v3113
      %v3519 = vsel %vm3504, %v3486, %v3115
      %v3520 = vsel %vm3504, %v3487, %v3117
      %v3521 = vsel %vm3504, %v3488, %v3119
      %v3522 = vsel %vm3504, %v3489, %v3121
      %v3523 = vsel %vm3504, %v3490, %v3123
      %v3524 = vsel %vm3504, %v3491, %v3125
      %v3525 = vsel %vm3504, %v3492, %v3127
      %v3526 = vsel %vm3504, %v3493, %v3129
      %v3527 = vsel %vm3504, %v3494, %v3131
      %v3528 = vsel %vm3504, %v3495, %v3133
      %v3529 = vsel %vm3504, %v3496, %v3135
      %v3530 = vsel %vm3504, %v3497, %v3137
      %v3531 = vsel %vm3504, %v3498, %v3139
      %v3532 = vsel %vm3504, %v3499, %v3141
      %v3533 = vsel %vm3504, %v3500, %v3143
      %v3534 = vsel %vm3504, %v3501, %v3145
      %v3535 = vsel %vm3504, %v3502, %v3147
      %v3536 = vsel %vm3504, %v3503, %v3149
      %vm3537 = vcmask 523264
      %v3538 = vsel %vm3537, %v3505, %v3215
      %v3539 = vsel %vm3537, %v3506, %v3217
      %v3540 = vsel %vm3537, %v3507, %v3219
      %v3541 = vsel %vm3537, %v3508, %v3221
      %v3542 = vsel %vm3537, %v3509, %v3223
      %v3543 = vsel %vm3537, %v3510, %v3225
      %v3544 = vsel %vm3537, %v3511, %v3227
      %v3545 = vsel %vm3537, %v3512, %v3229
      %v3546 = vsel %vm3537, %v3513, %v3231
      %v3547 = vsel %vm3537, %v3514, %v3233
      %v3548 = vsel %vm3537, %v3515, %v3235
      %v3549 = vsel %vm3537, %v3516, %v3237
      %v3550 = vsel %vm3537, %v3517, %v3239
      %v3551 = vsel %vm3537, %v3518, %v3241
      %v3552 = vsel %vm3537, %v3519, %v3243
      %v3553 = vsel %vm3537, %v3520, %v3245
      %v3554 = vsel %vm3537, %v3521, %v3247
      %v3555 = vsel %vm3537, %v3522, %v3249
      %v3556 = vsel %vm3537, %v3523, %v3251
      %v3557 = vsel %vm3537, %v3524, %v3253
      %v3558 = vsel %vm3537, %v3525, %v3255
      %v3559 = vsel %vm3537, %v3526, %v3257
      %v3560 = vsel %vm3537, %v3527, %v3259
      %v3561 = vsel %vm3537, %v3528, %v3261
      %v3562 = vsel %vm3537, %v3529, %v3263
      %v3563 = vsel %vm3537, %v3530, %v3265
      %v3564 = vsel %vm3537, %v3531, %v3267
      %v3565 = vsel %vm3537, %v3532, %v3269
      %v3566 = vsel %vm3537, %v3533, %v3271
      %v3567 = vsel %vm3537, %v3534, %v3273
      %v3568 = vsel %vm3537, %v3535, %v3275
      %v3569 = vsel %vm3537, %v3536, %v3277
      %v3570 = vpack.c.bf16 %v3539, %v3538
      %v3571 = vpack.c.bf16 %v3541, %v3540
      %v3572 = vpack.c.bf16 %v3543, %v3542
      %v3573 = vpack.c.bf16 %v3545, %v3544
      %v3574 = vpack.c.bf16 %v3547, %v3546
      %v3575 = vpack.c.bf16 %v3549, %v3548
      %v3576 = vpack.c.bf16 %v3551, %v3550
      %v3577 = vpack.c.bf16 %v3553, %v3552
      %v3578 = vpack.c.bf16 %v3555, %v3554
      %v3579 = vpack.c.bf16 %v3557, %v3556
      %v3580 = vpack.c.bf16 %v3559, %v3558
      %v3581 = vpack.c.bf16 %v3561, %v3560
      %v3582 = vpack.c.bf16 %v3563, %v3562
      %v3583 = vpack.c.bf16 %v3565, %v3564
      %v3584 = vpack.c.bf16 %v3567, %v3566
      %v3585 = vpack.c.bf16 %v3569, %v3568
      %v3586 = vld [vmem:[%s3] sm:$0xf]
      %v3587 = vld [vmem:[%s3 + $0x4] sm:$0xf]
      %v3588 = vld [vmem:[%s3 + $0x8] sm:$0xf]
      %v3589 = vld [vmem:[%s3 + $0xc] sm:$0xf]
      %v3590 = vld [vmem:[%s3 + $0x10] sm:$0xf]
      %v3591 = vld [vmem:[%s3 + $0x14] sm:$0xf]
      %v3592 = vld [vmem:[%s3 + $0x18] sm:$0xf]
      %v3593 = vld [vmem:[%s3 + $0x1c] sm:$0xf]
      %v3594 = vld [vmem:[%s3 + $0x20] sm:$0xf]
      %v3595 = vld [vmem:[%s4] sm:$0x1]
      %v3597 = vlaneseq
      %v3598 = vshrl.u32 %v3597, 7
      %v3599 = vsub.s32 0, %v3598
      %v3600 = vrot.slane %v3595, %v3599
      %v3611 = vunpack.c.l.b16 %v3586
      %v3612 = vunpack.c.l.b16 %v3587
      %v3613 = vunpack.c.l.b16 %v3588
      %v3614 = vunpack.c.l.b16 %v3589
      %v3615 = vunpack.c.l.b16 %v3590
      %v3616 = vunpack.c.l.b16 %v3591
      %v3617 = vunpack.c.l.b16 %v3592
      %v3618 = vunpack.c.l.b16 %v3593
      %v3619 = vunpack.c.l.b16 %v3594
      %v3620 = vpack.c.b16 %v3612, %v3611
      %v3621 = vpack.c.b16 %v3614, %v3613
      %v3622 = vpack.c.b16 %v3616, %v3615
      %v3623 = vpack.c.b16 %v3618, %v3617
      %v3624 = vpack.c.b16 %v3619, %v3619
      %vm3629 = vcmask 588800
      %v3631 = vsel %vm3629, %v3570, 0
      %v3634 = vsel %vm3629, %v3571, 0
      %v3637 = vsel %vm3629, %v3572, 0
      %v3640 = vsel %vm3629, %v3573, 0
      %v3643 = vsel %vm3629, %v3574, 0
      %v3646 = vsel %vm3629, %v3575, 0
      %v3649 = vsel %vm3629, %v3576, 0
      %v3652 = vsel %vm3629, %v3577, 0
      %v3655 = vsel %vm3629, %v3578, 0
      %v3658 = vsel %vm3629, %v3579, 0
      %v3661 = vsel %vm3629, %v3580, 0
      %v3664 = vsel %vm3629, %v3581, 0
      %v3667 = vsel %vm3629, %v3582, 0
      %v3670 = vsel %vm3629, %v3583, 0
      %v3673 = vsel %vm3629, %v3584, 0
      %v3676 = vsel %vm3629, %v3585, 0
      %vm3678 = vcmask 1043456
      %v3680 = vsel %vm3678, %v3624, 0
      %3682 = vmatprep.subr.bf16.mxu0 0
      %3683 = vmatpush1.bf16.msra.mxu0 %v3620
      %3684 = vmatprep.subr.bf16.mxu0 0
      %3685 = vmatpush1.bf16.msra.mxu0 %v3621
      %3686 = vmatprep.subr.bf16.mxu0 0
      %3687 = vmatpush1.bf16.msra.mxu0 %v3622
      %3688 = vmatprep.subr.bf16.mxu0 0
      %3689 = vmatpush1.bf16.msra.mxu0 %v3623
      %3690 = vmatprep.subr.bf16.mxu0 0
      %3691 = vmatpush1.bf16.msra.mxu0 %v3680
      %3692 = vmatprep.subr.bf16.mxu0 0
      %3693 = vmatpush1.bf16.msra.mxu0 0
      %3694 = vmatprep.subr.bf16.mxu0 0
      %3695 = vmatpush1.bf16.msra.mxu0 0
      %3696 = vmatprep.subr.bf16.mxu0 0
      %3697 = vmatpush1.bf16.msra.mxu0 0
      %3698 = vmatprep.subr.bf16.mxu0 0
      %3699 = vmatpush1.bf16.msra.mxu0 0
      %3700 = vmatprep.subr.bf16.mxu0 0
      %3701 = vmatpush1.bf16.msra.mxu0 0
      %3702 = vmatprep.subr.bf16.mxu0 0
      %3703 = vmatpush1.bf16.msra.mxu0 0
      %3704 = vmatprep.subr.bf16.mxu0 0
      %3705 = vmatpush1.bf16.msra.mxu0 0
      %3706 = vmatprep.subr.bf16.mxu0 0
      %3707 = vmatpush1.bf16.msra.mxu0 0
      %3708 = vmatprep.subr.bf16.mxu0 0
      %3709 = vmatpush1.bf16.msra.mxu0 0
      %3710 = vmatprep.subr.bf16.mxu0 0
      %3711 = vmatpush1.bf16.msra.mxu0 0
      %3712 = vmatprep.subr.bf16.mxu0 0
      %3713 = vmatpush1.bf16.msra.mxu0 0
      %3714 = vmatprep.mubr.bf16.mxu0 0
      %3715 = vmatmul.mubr.bf16.gmra.mrb[0].mxu0 %v3631
      %v3716 = vpop.f32.mrb[0].mxu0
      %v3717 = vadd.f32 %v3600, %v3716
      %v3718 = vpop.f32.mrb[0].mxu0
      %v3719 = vpop.f32.mrb[0].mxu0
      %v3720 = vadd.f32 %v3600, %v3719
      %v3721 = vpop.f32.mrb[0].mxu0
      %3722 = vmatprep.mubr.bf16.mxu0 0
      %3723 = vmatmul.mubr.bf16.gmra.mrb[0].mxu0 %v3634
      %v3724 = vpop.f32.mrb[0].mxu0
      %v3725 = vadd.f32 %v3600, %v3724
      %v3726 = vpop.f32.mrb[0].mxu0
      %v3727 = vpop.f32.mrb[0].mxu0
      %v3728 = vadd.f32 %v3600, %v3727
      %v3729 = vpop.f32.mrb[0].mxu0
      %3730 = vmatprep.mubr.bf16.mxu0 0
      %3731 = vmatmul.mubr.bf16.gmra.mrb[0].mxu0 %v3637
      %v3732 = vpop.f32.mrb[0].mxu0
      %v3733 = vadd.f32 %v3600, %v3732
      %v3734 = vpop.f32.mrb[0].mxu0
      %v3735 = vpop.f32.mrb[0].mxu0
      %v3736 = vadd.f32 %v3600, %v3735
      %v3737 = vpop.f32.mrb[0].mxu0
      %3738 = vmatprep.mubr.bf16.mxu0 0
      %3739 = vmatmul.mubr.bf16.gmra.mrb[0].mxu0 %v3640
      %v3740 = vpop.f32.mrb[0].mxu0
      %v3741 = vadd.f32 %v3600, %v3740
      %v3742 = vpop.f32.mrb[0].mxu0
      %v3743 = vpop.f32.mrb[0].mxu0
      %v3744 = vadd.f32 %v3600, %v3743
      %v3745 = vpop.f32.mrb[0].mxu0
      %3746 = vmatprep.mubr.bf16.mxu0 0
      %3747 = vmatmul.mubr.bf16.gmra.mrb[0].mxu0 %v3643
      %v3748 = vpop.f32.mrb[0].mxu0
      %v3749 = vadd.f32 %v3600, %v3748
      %v3750 = vpop.f32.mrb[0].mxu0
      %v3751 = vpop.f32.mrb[0].mxu0
      %v3752 = vadd.f32 %v3600, %v3751
      %v3753 = vpop.f32.mrb[0].mxu0
      %3754 = vmatprep.mubr.bf16.mxu0 0
      %3755 = vmatmul.mubr.bf16.gmra.mrb[0].mxu0 %v3646
      %v3756 = vpop.f32.mrb[0].mxu0
      %v3757 = vadd.f32 %v3600, %v3756
      %v3758 = vpop.f32.mrb[0].mxu0
      %v3759 = vpop.f32.mrb[0].mxu0
      %v3760 = vadd.f32 %v3600, %v3759
      %v3761 = vpop.f32.mrb[0].mxu0
      %3762 = vmatprep.mubr.bf16.mxu0 0
      %3763 = vmatmul.mubr.bf16.gmra.mrb[0].mxu0 %v3649
      %v3764 = vpop.f32.mrb[0].mxu0
      %v3765 = vadd.f32 %v3600, %v3764
      %v3766 = vpop.f32.mrb[0].mxu0
      %v3767 = vpop.f32.mrb[0].mxu0
      %v3768 = vadd.f32 %v3600, %v3767
      %v3769 = vpop.f32.mrb[0].mxu0
      %3770 = vmatprep.mubr.bf16.mxu0 0
      %3771 = vmatmul.mubr.bf16.gmra.mrb[0].mxu0 %v3652
      %v3772 = vpop.f32.mrb[0].mxu0
      %v3773 = vadd.f32 %v3600, %v3772
      %v3774 = vpop.f32.mrb[0].mxu0
      %v3775 = vpop.f32.mrb[0].mxu0
      %v3776 = vadd.f32 %v3600, %v3775
      %v3777 = vpop.f32.mrb[0].mxu0
      %3778 = vmatprep.mubr.bf16.mxu0 0
      %3779 = vmatmul.mubr.bf16.gmra.mrb[0].mxu0 %v3655
      %v3780 = vpop.f32.mrb[0].mxu0
      %v3781 = vadd.f32 %v3600, %v3780
      %v3782 = vpop.f32.mrb[0].mxu0
      %v3783 = vpop.f32.mrb[0].mxu0
      %v3784 = vadd.f32 %v3600, %v3783
      %v3785 = vpop.f32.mrb[0].mxu0
      %3786 = vmatprep.mubr.bf16.mxu0 0
      %3787 = vmatmul.mubr.bf16.gmra.mrb[0].mxu0 %v3658
      %v3788 = vpop.f32.mrb[0].mxu0
      %v3789 = vadd.f32 %v3600, %v3788
      %v3790 = vpop.f32.mrb[0].mxu0
      %v3791 = vpop.f32.mrb[0].mxu0
      %v3792 = vadd.f32 %v3600, %v3791
      %v3793 = vpop.f32.mrb[0].mxu0
      %3794 = vmatprep.mubr.bf16.mxu0 0
      %3795 = vmatmul.mubr.bf16.gmra.mrb[0].mxu0 %v3661
      %v3796 = vpop.f32.mrb[0].mxu0
      %v3797 = vadd.f32 %v3600, %v3796
      %v3798 = vpop.f32.mrb[0].mxu0
      %v3799 = vpop.f32.mrb[0].mxu0
      %v3800 = vadd.f32 %v3600, %v3799
      %v3801 = vpop.f32.mrb[0].mxu0
      %3802 = vmatprep.mubr.bf16.mxu0 0
      %3803 = vmatmul.mubr.bf16.gmra.mrb[0].mxu0 %v3664
      %v3804 = vpop.f32.mrb[0].mxu0
      %v3805 = vadd.f32 %v3600, %v3804
      %v3806 = vpop.f32.mrb[0].mxu0
      %v3807 = vpop.f32.mrb[0].mxu0
      %v3808 = vadd.f32 %v3600, %v3807
      %v3809 = vpop.f32.mrb[0].mxu0
      %3810 = vmatprep.mubr.bf16.mxu0 0
      %3811 = vmatmul.mubr.bf16.gmra.mrb[0].mxu0 %v3667
      %v3812 = vpop.f32.mrb[0].mxu0
      %v3813 = vadd.f32 %v3600, %v3812
      %v3814 = vpop.f32.mrb[0].mxu0
      %v3815 = vpop.f32.mrb[0].mxu0
      %v3816 = vadd.f32 %v3600, %v3815
      %v3817 = vpop.f32.mrb[0].mxu0
      %3818 = vmatprep.mubr.bf16.mxu0 0
      %3819 = vmatmul.mubr.bf16.gmra.mrb[0].mxu0 %v3670
      %v3820 = vpop.f32.mrb[0].mxu0
      %v3821 = vadd.f32 %v3600, %v3820
      %v3822 = vpop.f32.mrb[0].mxu0
      %v3823 = vpop.f32.mrb[0].mxu0
      %v3824 = vadd.f32 %v3600, %v3823
      %v3825 = vpop.f32.mrb[0].mxu0
      %3826 = vmatprep.mubr.bf16.mxu0 0
      %3827 = vmatmul.mubr.bf16.gmra.mrb[0].mxu0 %v3673
      %v3828 = vpop.f32.mrb[0].mxu0
      %v3829 = vadd.f32 %v3600, %v3828
      %v3830 = vpop.f32.mrb[0].mxu0
      %v3831 = vpop.f32.mrb[0].mxu0
      %v3832 = vadd.f32 %v3600, %v3831
      %v3833 = vpop.f32.mrb[0].mxu0
      %3834 = vmatprep.mubr.bf16.mxu0 0
      %3835 = vmatmul.mubr.bf16.gmra.mrb[0].mxu0 %v3676
      %v3836 = vpop.f32.mrb[0].mxu0
      %v3837 = vadd.f32 %v3600, %v3836
      %v3838 = vpop.f32.mrb[0].mxu0
      %v3839 = vpop.f32.mrb[0].mxu0
      %v3840 = vadd.f32 %v3600, %v3839
      %v3841 = vpop.f32.mrb[0].mxu0
      %3842 = vdwg.mxu0
      %v3843 = vpack.c.bf16 %v392, %v390
      %v3844 = vpack.c.bf16 %v397, %v395
      %v3845 = vpack.c.bf16 %v402, %v400
      %v3846 = vpack.c.bf16 %v407, %v405
      %v3847 = vpack.c.bf16 %v412, %v410
      %v3848 = vpack.c.bf16 %v417, %v415
      %v3849 = vpack.c.bf16 %v422, %v420
      %v3850 = vpack.c.bf16 %v427, %v425
      %v3851 = vpack.c.bf16 %v432, %v430
      %v3852 = vpack.c.bf16 %v437, %v435
      %v3853 = vpack.c.bf16 %v442, %v440
      %v3854 = vpack.c.bf16 %v447, %v445
      %v3855 = vpack.c.bf16 %v452, %v450
      %v3856 = vpack.c.bf16 %v457, %v455
      %v3857 = vpack.c.bf16 %v462, %v460
      %v3858 = vpack.c.bf16 %v551, %v549
      %v3859 = vld [vmem:[%s5] sm:$0x3]
      %v3860 = vld [vmem:[%s6] sm:$0x1]
      %v3862 = vlaneseq
      %v3863 = vshrl.u32 %v3862, 7
      %v3864 = vsub.s32 0, %v3863
      %v3865 = vrot.slane %v3860, %v3864
      %v3868 = vsel %vm1370, %v3843, 0
      %v3871 = vsel %vm1370, %v3844, 0
      %v3874 = vsel %vm1370, %v3845, 0
      %v3877 = vsel %vm1370, %v3846, 0
      %v3880 = vsel %vm1370, %v3847, 0
      %v3883 = vsel %vm1370, %v3848, 0
      %v3886 = vsel %vm1370, %v3849, 0
      %v3889 = vsel %vm1370, %v3850, 0
      %v3892 = vsel %vm1370, %v3851, 0
      %v3895 = vsel %vm1370, %v3852, 0
      %v3898 = vsel %vm1370, %v3853, 0
      %v3901 = vsel %vm1370, %v3854, 0
      %v3904 = vsel %vm1370, %v3855, 0
      %v3907 = vsel %vm1370, %v3856, 0
      %v3910 = vsel %vm1370, %v3857, 0
      %v3913 = vsel %vm1370, %v3858, 0
      %v3916 = vsel %vm1726, %v3859, 0
      %3918 = vmatprep.subr.bf16.mxu0 0
      %3919 = vmatpush1.bf16.msra.mxu0 %v3916
      %3920 = vmatprep.subr.bf16.mxu0 0
      %3921 = vmatpush1.bf16.msra.mxu0 0
      %3922 = vmatprep.subr.bf16.mxu0 0
      %3923 = vmatpush1.bf16.msra.mxu0 0
      %3924 = vmatprep.subr.bf16.mxu0 0
      %3925 = vmatpush1.bf16.msra.mxu0 0
      %3926 = vmatprep.subr.bf16.mxu0 0
      %3927 = vmatpush1.bf16.msra.mxu0 0
      %3928 = vmatprep.subr.bf16.mxu0 0
      %3929 = vmatpush1.bf16.msra.mxu0 0
      %3930 = vmatprep.subr.bf16.mxu0 0
      %3931 = vmatpush1.bf16.msra.mxu0 0
      %3932 = vmatprep.subr.bf16.mxu0 0
      %3933 = vmatpush1.bf16.msra.mxu0 0
      %3934 = vmatprep.subr.bf16.mxu0 0
      %3935 = vmatpush1.bf16.msra.mxu0 0
      %3936 = vmatprep.subr.bf16.mxu0 0
      %3937 = vmatpush1.bf16.msra.mxu0 0
      %3938 = vmatprep.subr.bf16.mxu0 0
      %3939 = vmatpush1.bf16.msra.mxu0 0
      %3940 = vmatprep.subr.bf16.mxu0 0
      %3941 = vmatpush1.bf16.msra.mxu0 0
      %3942 = vmatprep.subr.bf16.mxu0 0
      %3943 = vmatpush1.bf16.msra.mxu0 0
      %3944 = vmatprep.subr.bf16.mxu0 0
      %3945 = vmatpush1.bf16.msra.mxu0 0
      %3946 = vmatprep.subr.bf16.mxu0 0
      %3947 = vmatpush1.bf16.msra.mxu0 0
      %3948 = vmatprep.subr.bf16.mxu0 0
      %3949 = vmatpush1.bf16.msra.mxu0 0
      %3950 = vmatprep.mubr.bf16.mxu0 0
      %3951 = vmatmul.mubr.bf16.gmra.mrb[0].mxu0 %v3868
      %v3952 = vpop.f32.mrb[0].mxu0
      %v3953 = vadd.f32 %v3865, %v3952
      %v3954 = vpop.f32.mrb[0].mxu0
      %v3955 = vpop.f32.mrb[0].mxu0
      %v3956 = vadd.f32 %v3865, %v3955
      %v3957 = vpop.f32.mrb[0].mxu0
      %3958 = vmatprep.mubr.bf16.mxu0 0
      %3959 = vmatmul.mubr.bf16.gmra.mrb[0].mxu0 %v3871
      %v3960 = vpop.f32.mrb[0].mxu0
      %v3961 = vadd.f32 %v3865, %v3960
      %v3962 = vpop.f32.mrb[0].mxu0
      %v3963 = vpop.f32.mrb[0].mxu0
      %v3964 = vadd.f32 %v3865, %v3963
      %v3965 = vpop.f32.mrb[0].mxu0
      %3966 = vmatprep.mubr.bf16.mxu0 0
      %3967 = vmatmul.mubr.bf16.gmra.mrb[0].mxu0 %v3874
      %v3968 = vpop.f32.mrb[0].mxu0
      %v3969 = vadd.f32 %v3865, %v3968
      %v3970 = vpop.f32.mrb[0].mxu0
      %v3971 = vpop.f32.mrb[0].mxu0
      %v3972 = vadd.f32 %v3865, %v3971
      %v3973 = vpop.f32.mrb[0].mxu0
      %3974 = vmatprep.mubr.bf16.mxu0 0
      %3975 = vmatmul.mubr.bf16.gmra.mrb[0].mxu0 %v3877
      %v3976 = vpop.f32.mrb[0].mxu0
      %v3977 = vadd.f32 %v3865, %v3976
      %v3978 = vpop.f32.mrb[0].mxu0
      %v3979 = vpop.f32.mrb[0].mxu0
      %v3980 = vadd.f32 %v3865, %v3979
      %v3981 = vpop.f32.mrb[0].mxu0
      %3982 = vmatprep.mubr.bf16.mxu0 0
      %3983 = vmatmul.mubr.bf16.gmra.mrb[0].mxu0 %v3880
      %v3984 = vpop.f32.mrb[0].mxu0
      %v3985 = vadd.f32 %v3865, %v3984
      %v3986 = vpop.f32.mrb[0].mxu0
      %v3987 = vpop.f32.mrb[0].mxu0
      %v3988 = vadd.f32 %v3865, %v3987
      %v3989 = vpop.f32.mrb[0].mxu0
      %3990 = vmatprep.mubr.bf16.mxu0 0
      %3991 = vmatmul.mubr.bf16.gmra.mrb[0].mxu0 %v3883
      %v3992 = vpop.f32.mrb[0].mxu0
      %v3993 = vadd.f32 %v3865, %v3992
      %v3994 = vpop.f32.mrb[0].mxu0
      %v3995 = vpop.f32.mrb[0].mxu0
      %v3996 = vadd.f32 %v3865, %v3995
      %v3997 = vpop.f32.mrb[0].mxu0
      %3998 = vmatprep.mubr.bf16.mxu0 0
      %3999 = vmatmul.mubr.bf16.gmra.mrb[0].mxu0 %v3886
      %v4000 = vpop.f32.mrb[0].mxu0
      %v4001 = vadd.f32 %v3865, %v4000
      %v4002 = vpop.f32.mrb[0].mxu0
      %v4003 = vpop.f32.mrb[0].mxu0
      %v4004 = vadd.f32 %v3865, %v4003
      %v4005 = vpop.f32.mrb[0].mxu0
      %4006 = vmatprep.mubr.bf16.mxu0 0
      %4007 = vmatmul.mubr.bf16.gmra.mrb[0].mxu0 %v3889
      %v4008 = vpop.f32.mrb[0].mxu0
      %v4009 = vadd.f32 %v3865, %v4008
      %v4010 = vpop.f32.mrb[0].mxu0
      %v4011 = vpop.f32.mrb[0].mxu0
      %v4012 = vadd.f32 %v3865, %v4011
      %v4013 = vpop.f32.mrb[0].mxu0
      %4014 = vmatprep.mubr.bf16.mxu0 0
      %4015 = vmatmul.mubr.bf16.gmra.mrb[0].mxu0 %v3892
      %v4016 = vpop.f32.mrb[0].mxu0
      %v4017 = vadd.f32 %v3865, %v4016
      %v4018 = vpop.f32.mrb[0].mxu0
      %v4019 = vpop.f32.mrb[0].mxu0
      %v4020 = vadd.f32 %v3865, %v4019
      %v4021 = vpop.f32.mrb[0].mxu0
      %4022 = vmatprep.mubr.bf16.mxu0 0
      %4023 = vmatmul.mubr.bf16.gmra.mrb[0].mxu0 %v3895
      %v4024 = vpop.f32.mrb[0].mxu0
      %v4025 = vadd.f32 %v3865, %v4024
      %v4026 = vpop.f32.mrb[0].mxu0
      %v4027 = vpop.f32.mrb[0].mxu0
      %v4028 = vadd.f32 %v3865, %v4027
      %v4029 = vpop.f32.mrb[0].mxu0
      %4030 = vmatprep.mubr.bf16.mxu0 0
      %4031 = vmatmul.mubr.bf16.gmra.mrb[0].mxu0 %v3898
      %v4032 = vpop.f32.mrb[0].mxu0
      %v4033 = vadd.f32 %v3865, %v4032
      %v4034 = vpop.f32.mrb[0].mxu0
      %v4035 = vpop.f32.mrb[0].mxu0
      %v4036 = vadd.f32 %v3865, %v4035
      %v4037 = vpop.f32.mrb[0].mxu0
      %4038 = vmatprep.mubr.bf16.mxu0 0
      %4039 = vmatmul.mubr.bf16.gmra.mrb[0].mxu0 %v3901
      %v4040 = vpop.f32.mrb[0].mxu0
      %v4041 = vadd.f32 %v3865, %v4040
      %v4042 = vpop.f32.mrb[0].mxu0
      %v4043 = vpop.f32.mrb[0].mxu0
      %v4044 = vadd.f32 %v3865, %v4043
      %v4045 = vpop.f32.mrb[0].mxu0
      %4046 = vmatprep.mubr.bf16.mxu0 0
      %4047 = vmatmul.mubr.bf16.gmra.mrb[0].mxu0 %v3904
      %v4048 = vpop.f32.mrb[0].mxu0
      %v4049 = vadd.f32 %v3865, %v4048
      %v4050 = vpop.f32.mrb[0].mxu0
      %v4051 = vpop.f32.mrb[0].mxu0
      %v4052 = vadd.f32 %v3865, %v4051
      %v4053 = vpop.f32.mrb[0].mxu0
      %4054 = vmatprep.mubr.bf16.mxu0 0
      %4055 = vmatmul.mubr.bf16.gmra.mrb[0].mxu0 %v3907
      %v4056 = vpop.f32.mrb[0].mxu0
      %v4057 = vadd.f32 %v3865, %v4056
      %v4058 = vpop.f32.mrb[0].mxu0
      %v4059 = vpop.f32.mrb[0].mxu0
      %v4060 = vadd.f32 %v3865, %v4059
      %v4061 = vpop.f32.mrb[0].mxu0
      %4062 = vmatprep.mubr.bf16.mxu0 0
      %4063 = vmatmul.mubr.bf16.gmra.mrb[0].mxu0 %v3910
      %v4064 = vpop.f32.mrb[0].mxu0
      %v4065 = vadd.f32 %v3865, %v4064
      %v4066 = vpop.f32.mrb[0].mxu0
      %v4067 = vpop.f32.mrb[0].mxu0
      %v4068 = vadd.f32 %v3865, %v4067
      %v4069 = vpop.f32.mrb[0].mxu0
      %4070 = vmatprep.mubr.bf16.mxu0 0
      %4071 = vmatmul.mubr.bf16.gmra.mrb[0].mxu0 %v3913
      %v4072 = vpop.f32.mrb[0].mxu0
      %v4073 = vadd.f32 %v3865, %v4072
      %v4074 = vpop.f32.mrb[0].mxu0
      %v4075 = vpop.f32.mrb[0].mxu0
      %v4076 = vadd.f32 %v3865, %v4075
      %v4077 = vpop.f32.mrb[0].mxu0
      %4078 = vdwg.mxu0
      %v4079 = vadd.f32 %v3717, %v3953
      %v4080 = vadd.f32 %v3720, %v3956
      %v4081 = vadd.f32 %v3725, %v3961
      %v4082 = vadd.f32 %v3728, %v3964
      %v4083 = vadd.f32 %v3733, %v3969
      %v4084 = vadd.f32 %v3736, %v3972
      %v4085 = vadd.f32 %v3741, %v3977
      %v4086 = vadd.f32 %v3744, %v3980
      %v4087 = vadd.f32 %v3749, %v3985
      %v4088 = vadd.f32 %v3752, %v3988
      %v4089 = vadd.f32 %v3757, %v3993
      %v4090 = vadd.f32 %v3760, %v3996
      %v4091 = vadd.f32 %v3765, %v4001
      %v4092 = vadd.f32 %v3768, %v4004
      %v4093 = vadd.f32 %v3773, %v4009
      %v4094 = vadd.f32 %v3776, %v4012
      %v4095 = vadd.f32 %v3781, %v4017
      %v4096 = vadd.f32 %v3784, %v4020
      %v4097 = vadd.f32 %v3789, %v4025
      %v4098 = vadd.f32 %v3792, %v4028
      %v4099 = vadd.f32 %v3797, %v4033
      %v4100 = vadd.f32 %v3800, %v4036
      %v4101 = vadd.f32 %v3805, %v4041
      %v4102 = vadd.f32 %v3808, %v4044
      %v4103 = vadd.f32 %v3813, %v4049
      %v4104 = vadd.f32 %v3816, %v4052
      %v4105 = vadd.f32 %v3821, %v4057
      %v4106 = vadd.f32 %v3824, %v4060
      %v4107 = vadd.f32 %v3829, %v4065
      %v4108 = vadd.f32 %v3832, %v4068
      %v4109 = vadd.f32 %v3837, %v4073
      %v4110 = vadd.f32 %v3840, %v4076
      %v4111 = vmax.f32 %v4079, 0.0
      %v4112 = vmax.f32 %v4080, 0.0
      %v4113 = vmax.f32 %v4081, 0.0
      %v4114 = vmax.f32 %v4082, 0.0
      %v4115 = vmax.f32 %v4083, 0.0
      %v4116 = vmax.f32 %v4084, 0.0
      %v4117 = vmax.f32 %v4085, 0.0
      %v4118 = vmax.f32 %v4086, 0.0
      %v4119 = vmax.f32 %v4087, 0.0
      %v4120 = vmax.f32 %v4088, 0.0
      %v4121 = vmax.f32 %v4089, 0.0
      %v4122 = vmax.f32 %v4090, 0.0
      %v4123 = vmax.f32 %v4091, 0.0
      %v4124 = vmax.f32 %v4092, 0.0
      %v4125 = vmax.f32 %v4093, 0.0
      %v4126 = vmax.f32 %v4094, 0.0
      %v4127 = vmax.f32 %v4095, 0.0
      %v4128 = vmax.f32 %v4096, 0.0
      %v4129 = vmax.f32 %v4097, 0.0
      %v4130 = vmax.f32 %v4098, 0.0
      %v4131 = vmax.f32 %v4099, 0.0
      %v4132 = vmax.f32 %v4100, 0.0
      %v4133 = vmax.f32 %v4101, 0.0
      %v4134 = vmax.f32 %v4102, 0.0
      %v4135 = vmax.f32 %v4103, 0.0
      %v4136 = vmax.f32 %v4104, 0.0
      %v4137 = vmax.f32 %v4105, 0.0
      %v4138 = vmax.f32 %v4106, 0.0
      %v4139 = vmax.f32 %v4107, 0.0
      %v4140 = vmax.f32 %v4108, 0.0
      %v4141 = vmax.f32 %v4109, 0.0
      %v4142 = vmax.f32 %v4110, 0.0
      %4143 = vst.msk [vmem:[%s278] sm:$0xff] %vm1403, %v4111
      %4144 = vst.msk [vmem:[%s278 + $0x8] sm:$0xff] %vm1403, %v4112
      %4145 = vst.msk [vmem:[%s278 + $0x10] sm:$0xff] %vm1403, %v4113
      %4146 = vst.msk [vmem:[%s278 + $0x18] sm:$0xff] %vm1403, %v4114
      %4147 = vst.msk [vmem:[%s278 + $0x20] sm:$0xff] %vm1403, %v4115
      %4148 = vst.msk [vmem:[%s278 + $0x28] sm:$0xff] %vm1403, %v4116
      %4149 = vst.msk [vmem:[%s278 + $0x30] sm:$0xff] %vm1403, %v4117
      %4150 = vst.msk [vmem:[%s278 + $0x38] sm:$0xff] %vm1403, %v4118
      %4151 = vst.msk [vmem:[%s278 + $0x40] sm:$0xff] %vm1403, %v4119
      %4152 = vst.msk [vmem:[%s278 + $0x48] sm:$0xff] %vm1403, %v4120
      %4153 = vst.msk [vmem:[%s278 + $0x50] sm:$0xff] %vm1403, %v4121
      %4154 = vst.msk [vmem:[%s278 + $0x58] sm:$0xff] %vm1403, %v4122
      %4155 = vst.msk [vmem:[%s278 + $0x60] sm:$0xff] %vm1403, %v4123
      %4156 = vst.msk [vmem:[%s278 + $0x68] sm:$0xff] %vm1403, %v4124
      %4157 = vst.msk [vmem:[%s278 + $0x70] sm:$0xff] %vm1403, %v4125
      %4158 = vst.msk [vmem:[%s278 + $0x78] sm:$0xff] %vm1403, %v4126
      %4159 = vst.msk [vmem:[%s278 + $0x80] sm:$0xff] %vm1403, %v4127
      %4160 = vst.msk [vmem:[%s278 + $0x88] sm:$0xff] %vm1403, %v4128
      %4161 = vst.msk [vmem:[%s278 + $0x90] sm:$0xff] %vm1403, %v4129
      %4162 = vst.msk [vmem:[%s278 + $0x98] sm:$0xff] %vm1403, %v4130
      %4163 = vst.msk [vmem:[%s278 + $0xa0] sm:$0xff] %vm1403, %v4131
      %4164 = vst.msk [vmem:[%s278 + $0xa8] sm:$0xff] %vm1403, %v4132
      %4165 = vst.msk [vmem:[%s278 + $0xb0] sm:$0xff] %vm1403, %v4133
      %4166 = vst.msk [vmem:[%s278 + $0xb8] sm:$0xff] %vm1403, %v4134
      %4167 = vst.msk [vmem:[%s278 + $0xc0] sm:$0xff] %vm1403, %v4135
      %4168 = vst.msk [vmem:[%s278 + $0xc8] sm:$0xff] %vm1403, %v4136
      %4169 = vst.msk [vmem:[%s278 + $0xd0] sm:$0xff] %vm1403, %v4137
      %4170 = vst.msk [vmem:[%s278 + $0xd8] sm:$0xff] %vm1403, %v4138
      %4171 = vst.msk [vmem:[%s278 + $0xe0] sm:$0xff] %vm1403, %v4139
      %4172 = vst.msk [vmem:[%s278 + $0xe8] sm:$0xff] %vm1403, %v4140
      %4173 = vst.msk [vmem:[%s278 + $0xf0] sm:$0xff] %vm1403, %v4141
      %4174 = vst.msk [vmem:[%s278 + $0xf8] sm:$0xff] %vm1403, %v4142
      %p4175 = scmp.lt.s32.totalorder %s18, 1
      %s4176 = scalar_select %p4175, %s18, 1
      %s4177 = smul.addr %s4176, 32
      %s4178 = smul.addr %s4177, 8
      %s4179 = scalar_lea.vmem %s7, %s4178
      // Predicated region
      $region49: #{tpu_custom_call.1} parent=47 // pred_check
        %p4180 = pneg %p188
      $region50: #{tpu_custom_call.1} parent=47 // pred_check_branch
        %4182 = sbr.rel (%p4180) target = $region52
      $region51: #{tpu_custom_call.1} parent=47 // pred_region
        _
      $region52: #{tpu_custom_call.1} parent=47 // pred_fallthru
        _
    $region48: #{tpu_custom_call.1} parent=5 // pred_fallthru
      _
    %p4183 = scmp.le.s32.totalorder 2, %s13
    // Predicated region
    $region53: #{tpu_custom_call.1} parent=5 // pred_check
      %p4184 = pneg %p4183
    $region54: #{tpu_custom_call.1} parent=5 // pred_check_branch
      %4186 = sbr.rel (%p4184) target = $region56
    $region55: #{tpu_custom_call.1} parent=5 // pred_region
      %s4187 = ssub.s32 %s13, 2
      // Predicated region
      $region57: #{tpu_custom_call.1} parent=55 // pred_check
        %p4188 = pneg %p194
      $region58: #{tpu_custom_call.1} parent=55 // pred_check_branch
        %4190 = sbr.rel (%p4188) target = $region60
      $region59: #{tpu_custom_call.1} parent=55 // pred_region
        %p4191 = scmp.lt.s32.totalorder %s19, 1
        %s4192 = scalar_select %p4191, %s19, 1
        %s4193 = smul.addr %s4192, 32
        %s4194 = smul.addr %s4193, 8
        %s4195 = scalar_lea.vmem %s7, %s4194
      $region60: #{tpu_custom_call.1} parent=55 // pred_fallthru
        _
    $region56: #{tpu_custom_call.1} parent=5 // pred_fallthru
      _
  $region6: #{tpu_custom_call.1} parent=0 // loop_footer
    %s17 = sadd.s32 1, %s13
  $region7: #{tpu_custom_call.1} parent=0 // loop_footer_branch
    %12 = sbr.rel target = $region3
  $region8: #{tpu_custom_call.1} parent=0 // loop_exit
    _

</llo_original>
